<compile_context>
chip_gen: v5e
topology: v5e:2x2
jax: 0.10.0
libtpu: 0.0.40
codegen_flags: <defaults>
</compile_context>

<pallas_src>
import functools
import numpy as np

import jax
import jax.numpy as jnp
from jax import lax
from jax.experimental import pallas as pl
from jax.experimental.pallas import tpu as pltpu


TB_DEFAULT = 8     # samples per grid step (lane-batching factor)
_C1_ROWS = 88      # 6*14 pooled conv1 rows (84) padded up to a multiple of 8


# ------------------------- fused Pallas kernel -------------------------

def _lenet_kernel(tb, x_ref,
                  n1e_ref, n1o_ref, b1e_ref, b1o_ref, se1_ref, so1_ref,
                  m2e_ref, m2o_ref, b2e_ref, b2o_ref, se2_ref, so2_ref,
                  fw1_ref, fb1_ref, fw2_ref, fb2_ref, fw3_ref, fb3_ref,
                  out_ref, xw_ref, a1w_ref, a2w_ref):
    f32 = jnp.float32

    def dot(a, b):
        return jnp.dot(a, b, preferred_element_type=f32)

    # ---- conv1 (1->6, 5x5, valid) + ReLU + 2x2 max-pool --------------------
    # x: (32, 32*tb), lanes = w*tb + b.  Stage the 5 shifted windows along K.
    x = x_ref[0]
    for kj in range(5):
        xw_ref[kj * 32:(kj + 1) * 32, :] = x[:, kj * tb: kj * tb + 28 * tb]
    xw = xw_ref[...]                                              # (160, 28*tb)
    # even/odd conv1 output rows (H-direction pool folded into the weights)
    ze = jnp.maximum(dot(n1e_ref[...], xw) + b1e_ref[...], 0.0)   # (88, 28*tb)
    zo = jnp.maximum(dot(n1o_ref[...], xw) + b1o_ref[...], 0.0)
    c1 = jnp.maximum(ze, zo)                                      # H-pooled
    # W-direction pool: even/odd lane-group selection matmuls
    a1 = jnp.maximum(dot(c1, se1_ref[...]), dot(c1, so1_ref[...]))  # (88, 14*tb)

    # ---- conv2 (6->16, 5x5, valid) + ReLU + 2x2 max-pool -------------------
    for kj in range(5):
        a1w_ref[kj * _C1_ROWS:(kj + 1) * _C1_ROWS, :] = (
            a1[:, kj * tb: kj * tb + 10 * tb])
    a1w = a1w_ref[...]                                            # (440, 10*tb)
    z2e = jnp.maximum(dot(m2e_ref[...], a1w) + b2e_ref[...], 0.0)  # (80, 10*tb)
    z2o = jnp.maximum(dot(m2o_ref[...], a1w) + b2o_ref[...], 0.0)
    c2 = jnp.maximum(z2e, z2o)
    a2 = jnp.maximum(dot(c2, se2_ref[...]), dot(c2, so2_ref[...]))  # (80, 5*tb)

    # ---- fc1/fc2/fc3, batched over tb lanes ---------------------------------
    for w in range(5):
        a2w_ref[w * 80:(w + 1) * 80, :] = a2[:, w * tb: (w + 1) * tb]
    h1 = jnp.maximum(dot(fw1_ref[...], a2w_ref[...]) + fb1_ref[...], 0.0)
    h2 = jnp.maximum(dot(fw2_ref[...], h1) + fb2_ref[...], 0.0)   # (84, tb)
    out_ref[0] = dot(fw3_ref[...], h2) + fb3_ref[...]             # (10, tb)


# ------------------------- one-time parameter preparation -------------------------

def _conv_relu_hpool_mats(w, bias, h_in, k_block, rows_pad):
    """Toeplitz-style matrices for 'conv 5x5 valid' with the H-direction half of
    the following 2x2 max-pool folded in (even / odd output-row matrices).

    Input activation rows are laid out as c_in*h_in + h, repeated per kj block
    of size k_block (>= c_in*h_in, zero-padded).  Output rows: c_out*h_pool + p,
    padded to rows_pad."""
    c_out, c_in, kk, _ = w.shape
    h_pool = (h_in - (kk - 1)) // 2
    ne = np.zeros((rows_pad, kk * k_block), np.float32)
    no = np.zeros_like(ne)
    be = np.zeros((rows_pad, 1), np.float32)
    bo = np.zeros((rows_pad, 1), np.float32)
    for o in range(c_out):
        for p in range(h_pool):
            row = o * h_pool + p
            be[row, 0] = bias[o]
            bo[row, 0] = bias[o]
            for ci in range(c_in):
                for ki in range(kk):
                    for kj in range(kk):
                        col = kj * k_block + ci * h_in
                        ne[row, col + 2 * p + ki] = w[o, ci, ki, kj]
                        no[row, col + 2 * p + 1 + ki] = w[o, ci, ki, kj]
    return ne, no, be, bo


def _pool_selectors(w_in, tb):
    """One-hot (w_in*tb, w_out*tb) matrices selecting even / odd lane groups
    (lane layout = w*tb + b) for the W-direction half of the 2x2 max-pool."""
    w_out = w_in // 2
    se = np.zeros((w_in * tb, w_out * tb), np.float32)
    so = np.zeros_like(se)
    for q in range(w_out):
        for b in range(tb):
            se[(2 * q) * tb + b, q * tb + b] = 1.0
            so[(2 * q + 1) * tb + b, q * tb + b] = 1.0
    return se, so


def prepare_params(p, tb=TB_DEFAULT):
    """Rearrange PyTorch-layout params into the MXU-friendly matrices the fused
    kernel consumes (runs once, outside the jitted forward)."""
    w1 = np.asarray(p["conv1_w"], np.float32)
    b1 = np.asarray(p["conv1_b"], np.float32)
    w2 = np.asarray(p["conv2_w"], np.float32)
    b2 = np.asarray(p["conv2_b"], np.float32)

    n1e, n1o, b1e, b1o = _conv_relu_hpool_mats(w1, b1, h_in=32, k_block=32,
                                               rows_pad=_C1_ROWS)
    m2e, m2o, b2e, b2o = _conv_relu_hpool_mats(w2, b2, h_in=14,
                                               k_block=_C1_ROWS, rows_pad=80)
    se1, so1 = _pool_selectors(28, tb)
    se2, so2 = _pool_selectors(10, tb)

    # fc1 with NCHW flatten + window-concat row layout folded in:
    #   fw1[n, q*80 + o*5 + p] = fc1_w[n, o*25 + p*5 + q]
    fc1_w = np.asarray(p["fc1_w"], np.float32)
    fw1 = fc1_w.reshape(120, 16, 5, 5).transpose(0, 3, 1, 2).reshape(120, 400)

    def wt(a):                       # big matrices -> bf16 (f32 accumulation)
        return jnp.asarray(a, jnp.bfloat16)

    def bs(a):                       # biases -> f32 column vectors
        return jnp.asarray(np.asarray(a, np.float32).reshape(-1, 1), jnp.float32)

    return (wt(n1e), wt(n1o), jnp.asarray(b1e), jnp.asarray(b1o),
            wt(se1), wt(so1),
            wt(m2e), wt(m2o), jnp.asarray(b2e), jnp.asarray(b2o),
            wt(se2), wt(so2),
            wt(fw1), bs(p["fc1_b"]),
            wt(np.asarray(p["fc2_w"], np.float32)), bs(p["fc2_b"]),
            wt(np.asarray(p["fc3_w"], np.float32)), bs(p["fc3_b"]))


def _const_index_map(ndim):
    zeros = (0,) * ndim
    return lambda t: zeros


@functools.partial(jax.jit, static_argnames=("tb",))
def net_forward(prep, x, tb=TB_DEFAULT):
    B = x.shape[0]
    T = pl.cdiv(B, tb)
    pad = T * tb - B
    if pad:
        x = jnp.concatenate(
            [x, jnp.zeros((pad,) + x.shape[1:], x.dtype)], axis=0)
    # (T*tb, 1, 32, 32) -> (T, 32, 32*tb) with lane index = w*tb + b
    xt = x.reshape(T, tb, 32, 32).transpose(0, 2, 3, 1).reshape(T, 32, 32 * tb)

    in_specs = [pl.BlockSpec((1, 32, 32 * tb), lambda t: (t, 0, 0))]
    for w in prep:
        in_specs.append(pl.BlockSpec(w.shape, _const_index_map(w.ndim)))

    out = pl.pallas_call(
        functools.partial(_lenet_kernel, tb),
        out_shape=jax.ShapeDtypeStruct((T, 10, tb), jnp.float32),
        grid=(T,),
        in_specs=in_specs,
        out_specs=pl.BlockSpec((1, 10, tb), lambda t: (t, 0, 0)),
        scratch_shapes=[pltpu.VMEM((160, 28 * tb), jnp.float32),
                        pltpu.VMEM((5 * _C1_ROWS, 10 * tb), jnp.float32),
                        pltpu.VMEM((400, tb), jnp.float32)],
        compiler_params=pltpu.CompilerParams(
            dimension_semantics=("parallel",)),
    )(xt, *prep)

    # (T, 10, tb) -> (B, 10)
    return out.transpose(0, 2, 1).reshape(T * tb, 10)[:B]


# ------------------------- init & reference -------------------------

def init_params(key):
    """Deterministic PyTorch-default-style U(-1/sqrt(fan_in), 1/sqrt(fan_in))."""
    def uniform(k, shape, fan_in):
        bound = 1.0 / float(fan_in) ** 0.5
        return jax.random.uniform(k, shape, jnp.float32, -bound, bound)

    ks = jax.random.split(key, 10)
    return {
        "conv1_w": uniform(ks[0], (6, 1, 5, 5), 1 * 5 * 5),
        "conv1_b": uniform(ks[1], (6,), 1 * 5 * 5),
        "conv2_w": uniform(ks[2], (16, 6, 5, 5), 6 * 5 * 5),
        "conv2_b": uniform(ks[3], (16,), 6 * 5 * 5),
        "fc1_w": uniform(ks[4], (120, 16 * 5 * 5), 16 * 5 * 5),
        "fc1_b": uniform(ks[5], (120,), 16 * 5 * 5),
        "fc2_w": uniform(ks[6], (84, 120), 120),
        "fc2_b": uniform(ks[7], (84,), 120),
        "fc3_w": uniform(ks[8], (10, 84), 84),
        "fc3_b": uniform(ks[9], (10,), 84),
    }


def reference_forward(p, x):
    dn = ("NCHW", "OIHW", "NCHW")

    def pool(a):
        return lax.reduce_window(a, -jnp.inf, lax.max,
                                 (1, 1, 2, 2), (1, 1, 2, 2), "VALID")

    a = lax.conv_general_dilated(x, p["conv1_w"], (1, 1), "VALID",
                                 dimension_numbers=dn)
    a = pool(jnp.maximum(a + p["conv1_b"][None, :, None, None], 0.0))
    a = lax.conv_general_dilated(a, p["conv2_w"], (1, 1), "VALID",
                                 dimension_numbers=dn)
    a = pool(jnp.maximum(a + p["conv2_b"][None, :, None, None], 0.0))
    a = a.reshape(a.shape[0], -1)
    a = jnp.maximum(a @ p["fc1_w"].T + p["fc1_b"], 0.0)
    a = jnp.maximum(a @ p["fc2_w"].T + p["fc2_b"], 0.0)
    return a @ p["fc3_w"].T + p["fc3_b"]


if __name__ == "__main__":
    key = jax.random.PRNGKey(0)
    pkey, xkey = jax.random.split(key)
    params = init_params(pkey)

    TB = 8                      # samples per grid step
    B = 16                      # -> grid of 2 steps (both TCs on v7x)
    prep = prepare_params(params, TB)
    x = jax.random.normal(xkey, (B, 1, 32, 32), jnp.float32)

    out = net_forward(prep, x, tb=TB)
    jax.block_until_ready(out)
    assert out.shape == (B, 10) and out.dtype == jnp.float32

    ref = reference_forward(params, x)
    err = float(jnp.max(jnp.abs(out - ref)))
    assert jnp.allclose(out, ref, atol=2e-3, rtol=2e-3), err
    print("KERNEL_OK")
</pallas_src>

<mosaic_0001>
module attributes {stable_mosaic.version = 11 : i64} {
  func.func @_lenet_kernel(%arg0: i32, %arg1: memref<1x32x256xf32, #tpu.memory_space<vmem>>, %arg2: memref<88x160xbf16, #tpu.memory_space<vmem>>, %arg3: memref<88x160xbf16, #tpu.memory_space<vmem>>, %arg4: memref<88x1xf32, #tpu.memory_space<vmem>>, %arg5: memref<88x1xf32, #tpu.memory_space<vmem>>, %arg6: memref<224x112xbf16, #tpu.memory_space<vmem>>, %arg7: memref<224x112xbf16, #tpu.memory_space<vmem>>, %arg8: memref<80x440xbf16, #tpu.memory_space<vmem>>, %arg9: memref<80x440xbf16, #tpu.memory_space<vmem>>, %arg10: memref<80x1xf32, #tpu.memory_space<vmem>>, %arg11: memref<80x1xf32, #tpu.memory_space<vmem>>, %arg12: memref<80x40xbf16, #tpu.memory_space<vmem>>, %arg13: memref<80x40xbf16, #tpu.memory_space<vmem>>, %arg14: memref<120x400xbf16, #tpu.memory_space<vmem>>, %arg15: memref<120x1xf32, #tpu.memory_space<vmem>>, %arg16: memref<84x120xbf16, #tpu.memory_space<vmem>>, %arg17: memref<84x1xf32, #tpu.memory_space<vmem>>, %arg18: memref<10x84xbf16, #tpu.memory_space<vmem>>, %arg19: memref<10x1xf32, #tpu.memory_space<vmem>>, %arg20: memref<1x10x8xf32, #tpu.memory_space<vmem>>, %arg21: memref<160x224xf32, #tpu.memory_space<vmem>>, %arg22: memref<440x80xf32, #tpu.memory_space<vmem>>, %arg23: memref<400x8xf32, #tpu.memory_space<vmem>>) attributes {dimension_semantics = [#tpu.dimension_semantics<parallel>], iteration_bounds = array<i64: 2>, scalar_prefetch = 0 : i64, scratch_operands = 3 : i64, tpu.core_type = #tpu.core_type<tc>, window_params = [{transform_indices = @transform_0, window_bounds = array<i64: 1, 32, 256>}, {pipeline_mode = #tpu.pipeline_mode<synchronous>, transform_indices = @transform_1, window_bounds = array<i64: 88, 160>}, {pipeline_mode = #tpu.pipeline_mode<synchronous>, transform_indices = @transform_2, window_bounds = array<i64: 88, 160>}, {pipeline_mode = #tpu.pipeline_mode<synchronous>, transform_indices = @transform_3, window_bounds = array<i64: 88, 1>}, {pipeline_mode = #tpu.pipeline_mode<synchronous>, transform_indices = @transform_4, window_bounds = array<i64: 88, 1>}, {pipeline_mode = #tpu.pipeline_mode<synchronous>, transform_indices = @transform_5, window_bounds = array<i64: 224, 112>}, {pipeline_mode = #tpu.pipeline_mode<synchronous>, transform_indices = @transform_6, window_bounds = array<i64: 224, 112>}, {pipeline_mode = #tpu.pipeline_mode<synchronous>, transform_indices = @transform_7, window_bounds = array<i64: 80, 440>}, {pipeline_mode = #tpu.pipeline_mode<synchronous>, transform_indices = @transform_8, window_bounds = array<i64: 80, 440>}, {pipeline_mode = #tpu.pipeline_mode<synchronous>, transform_indices = @transform_9, window_bounds = array<i64: 80, 1>}, {pipeline_mode = #tpu.pipeline_mode<synchronous>, transform_indices = @transform_10, window_bounds = array<i64: 80, 1>}, {pipeline_mode = #tpu.pipeline_mode<synchronous>, transform_indices = @transform_11, window_bounds = array<i64: 80, 40>}, {pipeline_mode = #tpu.pipeline_mode<synchronous>, transform_indices = @transform_12, window_bounds = array<i64: 80, 40>}, {pipeline_mode = #tpu.pipeline_mode<synchronous>, transform_indices = @transform_13, window_bounds = array<i64: 120, 400>}, {pipeline_mode = #tpu.pipeline_mode<synchronous>, transform_indices = @transform_14, window_bounds = array<i64: 120, 1>}, {pipeline_mode = #tpu.pipeline_mode<synchronous>, transform_indices = @transform_15, window_bounds = array<i64: 84, 120>}, {pipeline_mode = #tpu.pipeline_mode<synchronous>, transform_indices = @transform_16, window_bounds = array<i64: 84, 1>}, {pipeline_mode = #tpu.pipeline_mode<synchronous>, transform_indices = @transform_17, window_bounds = array<i64: 10, 84>}, {pipeline_mode = #tpu.pipeline_mode<synchronous>, transform_indices = @transform_18, window_bounds = array<i64: 10, 1>}, {transform_indices = @transform_19, window_bounds = array<i64: 1, 10, 8>}]} {
    %c0 = arith.constant 0 : index
    %c0_0 = arith.constant 0 : index
    %c0_1 = arith.constant 0 : index
    %0 = vector.load %arg1[%c0, %c0_0, %c0_1] : memref<1x32x256xf32, #tpu.memory_space<vmem>>, vector<1x32x256xf32>
    %1 = vector.shape_cast %0 : vector<1x32x256xf32> to vector<32x256xf32>
    %2 = vector.extract_strided_slice %1 {offsets = [0, 0], sizes = [32, 224], strides = [1, 1]} : vector<32x256xf32> to vector<32x224xf32>
    %c0_2 = arith.constant 0 : index
    %c0_3 = arith.constant 0 : index
    %3 = vector.load %arg21[%c0_2, %c0_3] : memref<160x224xf32, #tpu.memory_space<vmem>>, vector<32x224xf32>
    tpu.vector_store %arg21[%c0_2, %c0_3], %2 {strides = array<i32>} : memref<160x224xf32, #tpu.memory_space<vmem>>, vector<32x224xf32>,
    %4 = vector.extract_strided_slice %1 {offsets = [0, 8], sizes = [32, 224], strides = [1, 1]} : vector<32x256xf32> to vector<32x224xf32>
    %c32 = arith.constant 32 : index
    %c0_4 = arith.constant 0 : index
    %5 = vector.load %arg21[%c32, %c0_4] : memref<160x224xf32, #tpu.memory_space<vmem>>, vector<32x224xf32>
    tpu.vector_store %arg21[%c32, %c0_4], %4 {strides = array<i32>} : memref<160x224xf32, #tpu.memory_space<vmem>>, vector<32x224xf32>,
    %6 = vector.extract_strided_slice %1 {offsets = [0, 16], sizes = [32, 224], strides = [1, 1]} : vector<32x256xf32> to vector<32x224xf32>
    %c64 = arith.constant 64 : index
    %c0_5 = arith.constant 0 : index
    %7 = vector.load %arg21[%c64, %c0_5] : memref<160x224xf32, #tpu.memory_space<vmem>>, vector<32x224xf32>
    tpu.vector_store %arg21[%c64, %c0_5], %6 {strides = array<i32>} : memref<160x224xf32, #tpu.memory_space<vmem>>, vector<32x224xf32>,
    %8 = vector.extract_strided_slice %1 {offsets = [0, 24], sizes = [32, 224], strides = [1, 1]} : vector<32x256xf32> to vector<32x224xf32>
    %c96 = arith.constant 96 : index
    %c0_6 = arith.constant 0 : index
    %9 = vector.load %arg21[%c96, %c0_6] : memref<160x224xf32, #tpu.memory_space<vmem>>, vector<32x224xf32>
    tpu.vector_store %arg21[%c96, %c0_6], %8 {strides = array<i32>} : memref<160x224xf32, #tpu.memory_space<vmem>>, vector<32x224xf32>,
    %10 = vector.extract_strided_slice %1 {offsets = [0, 32], sizes = [32, 224], strides = [1, 1]} : vector<32x256xf32> to vector<32x224xf32>
    %c128 = arith.constant 128 : index
    %c0_7 = arith.constant 0 : index
    %11 = vector.load %arg21[%c128, %c0_7] : memref<160x224xf32, #tpu.memory_space<vmem>>, vector<32x224xf32>
    tpu.vector_store %arg21[%c128, %c0_7], %10 {strides = array<i32>} : memref<160x224xf32, #tpu.memory_space<vmem>>, vector<32x224xf32>,
    %c0_8 = arith.constant 0 : index
    %c0_9 = arith.constant 0 : index
    %12 = vector.load %arg21[%c0_8, %c0_9] : memref<160x224xf32, #tpu.memory_space<vmem>>, vector<160x224xf32>
    %c0_10 = arith.constant 0 : index
    %c0_11 = arith.constant 0 : index
    %13 = vector.load %arg2[%c0_10, %c0_11] : memref<88x160xbf16, #tpu.memory_space<vmem>>, vector<88x160xbf16>
    %cst = arith.constant dense<0.000000e+00> : vector<88x224xf32>
    %14 = tpu.matmul %13, %12, %cst {dimension_numbers = #tpu.dot_dimension_numbers<[1], [0], [0], [1], [0, 0, 1, 1], [], []>} : vector<88x160xbf16>, vector<160x224xf32>, vector<88x224xf32> -> vector<88x224xf32>
    %c0_12 = arith.constant 0 : index
    %c0_13 = arith.constant 0 : index
    %15 = vector.load %arg4[%c0_12, %c0_13] : memref<88x1xf32, #tpu.memory_space<vmem>>, vector<88x1xf32>
    %16 = vector.broadcast %15 : vector<88x1xf32> to vector<88x224xf32>
    %17 = arith.addf %14, %16 : vector<88x224xf32>
    %cst_14 = arith.constant 0.000000e+00 : f32
    %18 = vector.broadcast %cst_14 : f32 to vector<88x224xf32>
    %19 = arith.maximumf %17, %18 : vector<88x224xf32>
    %c0_15 = arith.constant 0 : index
    %c0_16 = arith.constant 0 : index
    %20 = vector.load %arg3[%c0_15, %c0_16] : memref<88x160xbf16, #tpu.memory_space<vmem>>, vector<88x160xbf16>
    %cst_17 = arith.constant dense<0.000000e+00> : vector<88x224xf32>
    %21 = tpu.matmul %20, %12, %cst_17 {dimension_numbers = #tpu.dot_dimension_numbers<[1], [0], [0], [1], [0, 0, 1, 1], [], []>} : vector<88x160xbf16>, vector<160x224xf32>, vector<88x224xf32> -> vector<88x224xf32>
    %c0_18 = arith.constant 0 : index
    %c0_19 = arith.constant 0 : index
    %22 = vector.load %arg5[%c0_18, %c0_19] : memref<88x1xf32, #tpu.memory_space<vmem>>, vector<88x1xf32>
    %23 = vector.broadcast %22 : vector<88x1xf32> to vector<88x224xf32>
    %24 = arith.addf %21, %23 : vector<88x224xf32>
    %cst_20 = arith.constant 0.000000e+00 : f32
    %25 = vector.broadcast %cst_20 : f32 to vector<88x224xf32>
    %26 = arith.maximumf %24, %25 : vector<88x224xf32>
    %27 = arith.maximumf %19, %26 : vector<88x224xf32>
    %c0_21 = arith.constant 0 : index
    %c0_22 = arith.constant 0 : index
    %28 = vector.load %arg6[%c0_21, %c0_22] : memref<224x112xbf16, #tpu.memory_space<vmem>>, vector<224x112xbf16>
    %cst_23 = arith.constant dense<0.000000e+00> : vector<88x112xf32>
    %29 = tpu.matmul %27, %28, %cst_23 {dimension_numbers = #tpu.dot_dimension_numbers<[1], [0], [0], [1], [0, 0, 1, 1], [], []>} : vector<88x224xf32>, vector<224x112xbf16>, vector<88x112xf32> -> vector<88x112xf32>
    %c0_24 = arith.constant 0 : index
    %c0_25 = arith.constant 0 : index
    %30 = vector.load %arg7[%c0_24, %c0_25] : memref<224x112xbf16, #tpu.memory_space<vmem>>, vector<224x112xbf16>
    %cst_26 = arith.constant dense<0.000000e+00> : vector<88x112xf32>
    %31 = tpu.matmul %27, %30, %cst_26 {dimension_numbers = #tpu.dot_dimension_numbers<[1], [0], [0], [1], [0, 0, 1, 1], [], []>} : vector<88x224xf32>, vector<224x112xbf16>, vector<88x112xf32> -> vector<88x112xf32>
    %32 = arith.maximumf %29, %31 : vector<88x112xf32>
    %33 = vector.extract_strided_slice %32 {offsets = [0, 0], sizes = [88, 80], strides = [1, 1]} : vector<88x112xf32> to vector<88x80xf32>
    %c0_27 = arith.constant 0 : index
    %c0_28 = arith.constant 0 : index
    %34 = vector.load %arg22[%c0_27, %c0_28] : memref<440x80xf32, #tpu.memory_space<vmem>>, vector<88x80xf32>
    tpu.vector_store %arg22[%c0_27, %c0_28], %33 {strides = array<i32>} : memref<440x80xf32, #tpu.memory_space<vmem>>, vector<88x80xf32>,
    %35 = vector.extract_strided_slice %32 {offsets = [0, 8], sizes = [88, 80], strides = [1, 1]} : vector<88x112xf32> to vector<88x80xf32>
    %c88 = arith.constant 88 : index
    %c0_29 = arith.constant 0 : index
    %36 = vector.load %arg22[%c88, %c0_29] : memref<440x80xf32, #tpu.memory_space<vmem>>, vector<88x80xf32>
    tpu.vector_store %arg22[%c88, %c0_29], %35 {strides = array<i32>} : memref<440x80xf32, #tpu.memory_space<vmem>>, vector<88x80xf32>,
    %37 = vector.extract_strided_slice %32 {offsets = [0, 16], sizes = [88, 80], strides = [1, 1]} : vector<88x112xf32> to vector<88x80xf32>
    %c176 = arith.constant 176 : index
    %c0_30 = arith.constant 0 : index
    %38 = vector.load %arg22[%c176, %c0_30] : memref<440x80xf32, #tpu.memory_space<vmem>>, vector<88x80xf32>
    tpu.vector_store %arg22[%c176, %c0_30], %37 {strides = array<i32>} : memref<440x80xf32, #tpu.memory_space<vmem>>, vector<88x80xf32>,
    %39 = vector.extract_strided_slice %32 {offsets = [0, 24], sizes = [88, 80], strides = [1, 1]} : vector<88x112xf32> to vector<88x80xf32>
    %c264 = arith.constant 264 : index
    %c0_31 = arith.constant 0 : index
    %40 = vector.load %arg22[%c264, %c0_31] : memref<440x80xf32, #tpu.memory_space<vmem>>, vector<88x80xf32>
    tpu.vector_store %arg22[%c264, %c0_31], %39 {strides = array<i32>} : memref<440x80xf32, #tpu.memory_space<vmem>>, vector<88x80xf32>,
    %41 = vector.extract_strided_slice %32 {offsets = [0, 32], sizes = [88, 80], strides = [1, 1]} : vector<88x112xf32> to vector<88x80xf32>
    %c352 = arith.constant 352 : index
    %c0_32 = arith.constant 0 : index
    %42 = vector.load %arg22[%c352, %c0_32] : memref<440x80xf32, #tpu.memory_space<vmem>>, vector<88x80xf32>
    tpu.vector_store %arg22[%c352, %c0_32], %41 {strides = array<i32>} : memref<440x80xf32, #tpu.memory_space<vmem>>, vector<88x80xf32>,
    %c0_33 = arith.constant 0 : index
    %c0_34 = arith.constant 0 : index
    %43 = vector.load %arg22[%c0_33, %c0_34] : memref<440x80xf32, #tpu.memory_space<vmem>>, vector<440x80xf32>
    %c0_35 = arith.constant 0 : index
    %c0_36 = arith.constant 0 : index
    %44 = vector.load %arg8[%c0_35, %c0_36] : memref<80x440xbf16, #tpu.memory_space<vmem>>, vector<80x440xbf16>
    %cst_37 = arith.constant dense<0.000000e+00> : vector<80x80xf32>
    %45 = tpu.matmul %44, %43, %cst_37 {dimension_numbers = #tpu.dot_dimension_numbers<[1], [0], [0], [1], [0, 0, 1, 1], [], []>} : vector<80x440xbf16>, vector<440x80xf32>, vector<80x80xf32> -> vector<80x80xf32>
    %c0_38 = arith.constant 0 : index
    %c0_39 = arith.constant 0 : index
    %46 = vector.load %arg10[%c0_38, %c0_39] : memref<80x1xf32, #tpu.memory_space<vmem>>, vector<80x1xf32>
    %47 = vector.broadcast %46 : vector<80x1xf32> to vector<80x80xf32>
    %48 = arith.addf %45, %47 : vector<80x80xf32>
    %cst_40 = arith.constant 0.000000e+00 : f32
    %49 = vector.broadcast %cst_40 : f32 to vector<80x80xf32>
    %50 = arith.maximumf %48, %49 : vector<80x80xf32>
    %c0_41 = arith.constant 0 : index
    %c0_42 = arith.constant 0 : index
    %51 = vector.load %arg9[%c0_41, %c0_42] : memref<80x440xbf16, #tpu.memory_space<vmem>>, vector<80x440xbf16>
    %cst_43 = arith.constant dense<0.000000e+00> : vector<80x80xf32>
    %52 = tpu.matmul %51, %43, %cst_43 {dimension_numbers = #tpu.dot_dimension_numbers<[1], [0], [0], [1], [0, 0, 1, 1], [], []>} : vector<80x440xbf16>, vector<440x80xf32>, vector<80x80xf32> -> vector<80x80xf32>
    %c0_44 = arith.constant 0 : index
    %c0_45 = arith.constant 0 : index
    %53 = vector.load %arg11[%c0_44, %c0_45] : memref<80x1xf32, #tpu.memory_space<vmem>>, vector<80x1xf32>
    %54 = vector.broadcast %53 : vector<80x1xf32> to vector<80x80xf32>
    %55 = arith.addf %52, %54 : vector<80x80xf32>
    %cst_46 = arith.constant 0.000000e+00 : f32
    %56 = vector.broadcast %cst_46 : f32 to vector<80x80xf32>
    %57 = arith.maximumf %55, %56 : vector<80x80xf32>
    %58 = arith.maximumf %50, %57 : vector<80x80xf32>
    %c0_47 = arith.constant 0 : index
    %c0_48 = arith.constant 0 : index
    %59 = vector.load %arg12[%c0_47, %c0_48] : memref<80x40xbf16, #tpu.memory_space<vmem>>, vector<80x40xbf16>
    %cst_49 = arith.constant dense<0.000000e+00> : vector<80x40xf32>
    %60 = tpu.matmul %58, %59, %cst_49 {dimension_numbers = #tpu.dot_dimension_numbers<[1], [0], [0], [1], [0, 0, 1, 1], [], []>} : vector<80x80xf32>, vector<80x40xbf16>, vector<80x40xf32> -> vector<80x40xf32>
    %c0_50 = arith.constant 0 : index
    %c0_51 = arith.constant 0 : index
    %61 = vector.load %arg13[%c0_50, %c0_51] : memref<80x40xbf16, #tpu.memory_space<vmem>>, vector<80x40xbf16>
    %cst_52 = arith.constant dense<0.000000e+00> : vector<80x40xf32>
    %62 = tpu.matmul %58, %61, %cst_52 {dimension_numbers = #tpu.dot_dimension_numbers<[1], [0], [0], [1], [0, 0, 1, 1], [], []>} : vector<80x80xf32>, vector<80x40xbf16>, vector<80x40xf32> -> vector<80x40xf32>
    %63 = arith.maximumf %60, %62 : vector<80x40xf32>
    %64 = vector.extract_strided_slice %63 {offsets = [0, 0], sizes = [80, 8], strides = [1, 1]} : vector<80x40xf32> to vector<80x8xf32>
    %c0_53 = arith.constant 0 : index
    %c0_54 = arith.constant 0 : index
    %65 = vector.load %arg23[%c0_53, %c0_54] : memref<400x8xf32, #tpu.memory_space<vmem>>, vector<80x8xf32>
    tpu.vector_store %arg23[%c0_53, %c0_54], %64 {strides = array<i32>} : memref<400x8xf32, #tpu.memory_space<vmem>>, vector<80x8xf32>,
    %66 = vector.extract_strided_slice %63 {offsets = [0, 8], sizes = [80, 8], strides = [1, 1]} : vector<80x40xf32> to vector<80x8xf32>
    %c80 = arith.constant 80 : index
    %c0_55 = arith.constant 0 : index
    %67 = vector.load %arg23[%c80, %c0_55] : memref<400x8xf32, #tpu.memory_space<vmem>>, vector<80x8xf32>
    tpu.vector_store %arg23[%c80, %c0_55], %66 {strides = array<i32>} : memref<400x8xf32, #tpu.memory_space<vmem>>, vector<80x8xf32>,
    %68 = vector.extract_strided_slice %63 {offsets = [0, 16], sizes = [80, 8], strides = [1, 1]} : vector<80x40xf32> to vector<80x8xf32>
    %c160 = arith.constant 160 : index
    %c0_56 = arith.constant 0 : index
    %69 = vector.load %arg23[%c160, %c0_56] : memref<400x8xf32, #tpu.memory_space<vmem>>, vector<80x8xf32>
    tpu.vector_store %arg23[%c160, %c0_56], %68 {strides = array<i32>} : memref<400x8xf32, #tpu.memory_space<vmem>>, vector<80x8xf32>,
    %70 = vector.extract_strided_slice %63 {offsets = [0, 24], sizes = [80, 8], strides = [1, 1]} : vector<80x40xf32> to vector<80x8xf32>
    %c240 = arith.constant 240 : index
    %c0_57 = arith.constant 0 : index
    %71 = vector.load %arg23[%c240, %c0_57] : memref<400x8xf32, #tpu.memory_space<vmem>>, vector<80x8xf32>
    tpu.vector_store %arg23[%c240, %c0_57], %70 {strides = array<i32>} : memref<400x8xf32, #tpu.memory_space<vmem>>, vector<80x8xf32>,
    %72 = vector.extract_strided_slice %63 {offsets = [0, 32], sizes = [80, 8], strides = [1, 1]} : vector<80x40xf32> to vector<80x8xf32>
    %c320 = arith.constant 320 : index
    %c0_58 = arith.constant 0 : index
    %73 = vector.load %arg23[%c320, %c0_58] : memref<400x8xf32, #tpu.memory_space<vmem>>, vector<80x8xf32>
    tpu.vector_store %arg23[%c320, %c0_58], %72 {strides = array<i32>} : memref<400x8xf32, #tpu.memory_space<vmem>>, vector<80x8xf32>,
    %c0_59 = arith.constant 0 : index
    %c0_60 = arith.constant 0 : index
    %74 = vector.load %arg14[%c0_59, %c0_60] : memref<120x400xbf16, #tpu.memory_space<vmem>>, vector<120x400xbf16>
    %c0_61 = arith.constant 0 : index
    %c0_62 = arith.constant 0 : index
    %75 = vector.load %arg23[%c0_61, %c0_62] : memref<400x8xf32, #tpu.memory_space<vmem>>, vector<400x8xf32>
    %cst_63 = arith.constant dense<0.000000e+00> : vector<120x8xf32>
    %76 = tpu.matmul %74, %75, %cst_63 {dimension_numbers = #tpu.dot_dimension_numbers<[1], [0], [0], [1], [0, 0, 1, 1], [], []>} : vector<120x400xbf16>, vector<400x8xf32>, vector<120x8xf32> -> vector<120x8xf32>
    %c0_64 = arith.constant 0 : index
    %c0_65 = arith.constant 0 : index
    %77 = vector.load %arg15[%c0_64, %c0_65] : memref<120x1xf32, #tpu.memory_space<vmem>>, vector<120x1xf32>
    %78 = vector.broadcast %77 : vector<120x1xf32> to vector<120x8xf32>
    %79 = arith.addf %76, %78 : vector<120x8xf32>
    %cst_66 = arith.constant 0.000000e+00 : f32
    %80 = vector.broadcast %cst_66 : f32 to vector<120x8xf32>
    %81 = arith.maximumf %79, %80 : vector<120x8xf32>
    %c0_67 = arith.constant 0 : index
    %c0_68 = arith.constant 0 : index
    %82 = vector.load %arg16[%c0_67, %c0_68] : memref<84x120xbf16, #tpu.memory_space<vmem>>, vector<84x120xbf16>
    %cst_69 = arith.constant dense<0.000000e+00> : vector<84x8xf32>
    %83 = tpu.matmul %82, %81, %cst_69 {dimension_numbers = #tpu.dot_dimension_numbers<[1], [0], [0], [1], [0, 0, 1, 1], [], []>} : vector<84x120xbf16>, vector<120x8xf32>, vector<84x8xf32> -> vector<84x8xf32>
    %c0_70 = arith.constant 0 : index
    %c0_71 = arith.constant 0 : index
    %84 = vector.load %arg17[%c0_70, %c0_71] : memref<84x1xf32, #tpu.memory_space<vmem>>, vector<84x1xf32>
    %85 = vector.broadcast %84 : vector<84x1xf32> to vector<84x8xf32>
    %86 = arith.addf %83, %85 : vector<84x8xf32>
    %cst_72 = arith.constant 0.000000e+00 : f32
    %87 = vector.broadcast %cst_72 : f32 to vector<84x8xf32>
    %88 = arith.maximumf %86, %87 : vector<84x8xf32>
    %c0_73 = arith.constant 0 : index
    %c0_74 = arith.constant 0 : index
    %89 = vector.load %arg18[%c0_73, %c0_74] : memref<10x84xbf16, #tpu.memory_space<vmem>>, vector<10x84xbf16>
    %cst_75 = arith.constant dense<0.000000e+00> : vector<10x8xf32>
    %90 = tpu.matmul %89, %88, %cst_75 {dimension_numbers = #tpu.dot_dimension_numbers<[1], [0], [0], [1], [0, 0, 1, 1], [], []>} : vector<10x84xbf16>, vector<84x8xf32>, vector<10x8xf32> -> vector<10x8xf32>
    %c0_76 = arith.constant 0 : index
    %c0_77 = arith.constant 0 : index
    %91 = vector.load %arg19[%c0_76, %c0_77] : memref<10x1xf32, #tpu.memory_space<vmem>>, vector<10x1xf32>
    %92 = vector.broadcast %91 : vector<10x1xf32> to vector<10x8xf32>
    %93 = arith.addf %90, %92 : vector<10x8xf32>
    %c0_78 = arith.constant 0 : index
    %c0_79 = arith.constant 0 : index
    %c0_80 = arith.constant 0 : index
    %94 = vector.load %arg20[%c0_78, %c0_79, %c0_80] : memref<1x10x8xf32, #tpu.memory_space<vmem>>, vector<1x10x8xf32>
    %95 = vector.shape_cast %94 : vector<1x10x8xf32> to vector<10x8xf32>
    %96 = vector.shape_cast %93 : vector<10x8xf32> to vector<1x10x8xf32>
    tpu.vector_store %arg20[%c0_78, %c0_79, %c0_80], %96 {strides = array<i32>} : memref<1x10x8xf32, #tpu.memory_space<vmem>>, vector<1x10x8xf32>,
    return
  }
  func.func @transform_0(%arg0: i32) -> (i32, i32, i32) {
    %c0_i32 = arith.constant 0 : i32
    %c0_i32_0 = arith.constant 0 : i32
    %c0_i32_1 = arith.constant 0 : i32
    return %arg0, %c0_i32, %c0_i32_0 : i32, i32, i32
  }
  func.func @transform_1(%arg0: i32) -> (i32, i32) {
    %c0_i32 = arith.constant 0 : i32
    %c0_i32_0 = arith.constant 0 : i32
    %c0_i32_1 = arith.constant 0 : i32
    return %c0_i32, %c0_i32_0 : i32, i32
  }
  func.func @transform_2(%arg0: i32) -> (i32, i32) {
    %c0_i32 = arith.constant 0 : i32
    %c0_i32_0 = arith.constant 0 : i32
    %c0_i32_1 = arith.constant 0 : i32
    return %c0_i32, %c0_i32_0 : i32, i32
  }
  func.func @transform_3(%arg0: i32) -> (i32, i32) {
    %c0_i32 = arith.constant 0 : i32
    %c0_i32_0 = arith.constant 0 : i32
    %c0_i32_1 = arith.constant 0 : i32
    return %c0_i32, %c0_i32_0 : i32, i32
  }
  func.func @transform_4(%arg0: i32) -> (i32, i32) {
    %c0_i32 = arith.constant 0 : i32
    %c0_i32_0 = arith.constant 0 : i32
    %c0_i32_1 = arith.constant 0 : i32
    return %c0_i32, %c0_i32_0 : i32, i32
  }
  func.func @transform_5(%arg0: i32) -> (i32, i32) {
    %c0_i32 = arith.constant 0 : i32
    %c0_i32_0 = arith.constant 0 : i32
    %c0_i32_1 = arith.constant 0 : i32
    return %c0_i32, %c0_i32_0 : i32, i32
  }
  func.func @transform_6(%arg0: i32) -> (i32, i32) {
    %c0_i32 = arith.constant 0 : i32
    %c0_i32_0 = arith.constant 0 : i32
    %c0_i32_1 = arith.constant 0 : i32
    return %c0_i32, %c0_i32_0 : i32, i32
  }
  func.func @transform_7(%arg0: i32) -> (i32, i32) {
    %c0_i32 = arith.constant 0 : i32
    %c0_i32_0 = arith.constant 0 : i32
    %c0_i32_1 = arith.constant 0 : i32
    return %c0_i32, %c0_i32_0 : i32, i32
  }
  func.func @transform_8(%arg0: i32) -> (i32, i32) {
    %c0_i32 = arith.constant 0 : i32
    %c0_i32_0 = arith.constant 0 : i32
    %c0_i32_1 = arith.constant 0 : i32
    return %c0_i32, %c0_i32_0 : i32, i32
  }
  func.func @transform_9(%arg0: i32) -> (i32, i32) {
    %c0_i32 = arith.constant 0 : i32
    %c0_i32_0 = arith.constant 0 : i32
    %c0_i32_1 = arith.constant 0 : i32
    return %c0_i32, %c0_i32_0 : i32, i32
  }
  func.func @transform_10(%arg0: i32) -> (i32, i32) {
    %c0_i32 = arith.constant 0 : i32
    %c0_i32_0 = arith.constant 0 : i32
    %c0_i32_1 = arith.constant 0 : i32
    return %c0_i32, %c0_i32_0 : i32, i32
  }
  func.func @transform_11(%arg0: i32) -> (i32, i32) {
    %c0_i32 = arith.constant 0 : i32
    %c0_i32_0 = arith.constant 0 : i32
    %c0_i32_1 = arith.constant 0 : i32
    return %c0_i32, %c0_i32_0 : i32, i32
  }
  func.func @transform_12(%arg0: i32) -> (i32, i32) {
    %c0_i32 = arith.constant 0 : i32
    %c0_i32_0 = arith.constant 0 : i32
    %c0_i32_1 = arith.constant 0 : i32
    return %c0_i32, %c0_i32_0 : i32, i32
  }
  func.func @transform_13(%arg0: i32) -> (i32, i32) {
    %c0_i32 = arith.constant 0 : i32
    %c0_i32_0 = arith.constant 0 : i32
    %c0_i32_1 = arith.constant 0 : i32
    return %c0_i32, %c0_i32_0 : i32, i32
  }
  func.func @transform_14(%arg0: i32) -> (i32, i32) {
    %c0_i32 = arith.constant 0 : i32
    %c0_i32_0 = arith.constant 0 : i32
    %c0_i32_1 = arith.constant 0 : i32
    return %c0_i32, %c0_i32_0 : i32, i32
  }
  func.func @transform_15(%arg0: i32) -> (i32, i32) {
    %c0_i32 = arith.constant 0 : i32
    %c0_i32_0 = arith.constant 0 : i32
    %c0_i32_1 = arith.constant 0 : i32
    return %c0_i32, %c0_i32_0 : i32, i32
  }
  func.func @transform_16(%arg0: i32) -> (i32, i32) {
    %c0_i32 = arith.constant 0 : i32
    %c0_i32_0 = arith.constant 0 : i32
    %c0_i32_1 = arith.constant 0 : i32
    return %c0_i32, %c0_i32_0 : i32, i32
  }
  func.func @transform_17(%arg0: i32) -> (i32, i32) {
    %c0_i32 = arith.constant 0 : i32
    %c0_i32_0 = arith.constant 0 : i32
    %c0_i32_1 = arith.constant 0 : i32
    return %c0_i32, %c0_i32_0 : i32, i32
  }
  func.func @transform_18(%arg0: i32) -> (i32, i32) {
    %c0_i32 = arith.constant 0 : i32
    %c0_i32_0 = arith.constant 0 : i32
    %c0_i32_1 = arith.constant 0 : i32
    return %c0_i32, %c0_i32_0 : i32, i32
  }
  func.func @transform_19(%arg0: i32) -> (i32, i32, i32) {
    %c0_i32 = arith.constant 0 : i32
    %c0_i32_0 = arith.constant 0 : i32
    %c0_i32_1 = arith.constant 0 : i32
    return %arg0, %c0_i32, %c0_i32_0 : i32, i32, i32
  }
}

</mosaic_0001>

<llo_original>
// kernel: net_forward.1
$region0: #{net_forward.1}
  #allocation0 [shape = 'u32[]', space=smem, size = 0x4, offset = 0x4, fixed_abs, tag = 'smem constant byte address 0x4 - core index']
  #allocation1 [shape = 'u32[72,128]{1,0:T(1,128)}', space=vmem, size = 0x9000, scoped, tag = 'internal scratch']
  #allocation2 [shape = 'f32[160,224]{1,0:T(8,128)}', space=vmem, size = 0x28000, scoped, tag = 'scratch operand']
  #allocation3 [shape = 'f32[440,80]{1,0:T(8,128)}', space=vmem, size = 0x37000, scoped, tag = 'scratch operand']
  #allocation4 [shape = 'f32[400,8]{1,0:T(8,128)}', space=vmem, size = 0x32000, scoped, tag = 'scratch operand']
  %s0 = inlined_call_operand.vmem [shape: f32[2,32,256], index: 0, kind: input, shape index: {}]
  %s1 = inlined_call_operand.vmem [shape: bf16[88,160], index: 1, kind: input, shape index: {}]
  %s2 = inlined_call_operand.vmem [shape: bf16[88,160], index: 2, kind: input, shape index: {}]
  %s3 = inlined_call_operand.vmem [shape: f32[88,1], index: 3, kind: input, shape index: {}]
  %s4 = inlined_call_operand.vmem [shape: f32[88,1], index: 4, kind: input, shape index: {}]
  %s5 = inlined_call_operand.vmem [shape: bf16[224,112], index: 5, kind: input, shape index: {}]
  %s6 = inlined_call_operand.vmem [shape: bf16[224,112], index: 6, kind: input, shape index: {}]
  %s7 = inlined_call_operand.vmem [shape: bf16[80,440], index: 7, kind: input, shape index: {}]
  %s8 = inlined_call_operand.vmem [shape: bf16[80,440], index: 8, kind: input, shape index: {}]
  %s9 = inlined_call_operand.vmem [shape: f32[80,1], index: 9, kind: input, shape index: {}]
  %s10 = inlined_call_operand.vmem [shape: f32[80,1], index: 10, kind: input, shape index: {}]
  %s11 = inlined_call_operand.vmem [shape: bf16[80,40], index: 11, kind: input, shape index: {}]
  %s12 = inlined_call_operand.vmem [shape: bf16[80,40], index: 12, kind: input, shape index: {}]
  %s13 = inlined_call_operand.vmem [shape: bf16[120,400], index: 13, kind: input, shape index: {}]
  %s14 = inlined_call_operand.vmem [shape: f32[120,1], index: 14, kind: input, shape index: {}]
  %s15 = inlined_call_operand.vmem [shape: bf16[84,120], index: 15, kind: input, shape index: {}]
  %s16 = inlined_call_operand.vmem [shape: f32[84,1], index: 16, kind: input, shape index: {}]
  %s17 = inlined_call_operand.vmem [shape: bf16[10,84], index: 17, kind: input, shape index: {}]
  %s18 = inlined_call_operand.vmem [shape: f32[10,1], index: 18, kind: input, shape index: {}]
  %s19 = inlined_call_operand.vmem [shape: f32[2,10,8], index: 19, kind: output, shape index: {}]
  %s20 = sld [smem:[#allocation0]]
  $region109: #{net_forward.1} parent=0
    _
  %s22 = ssub.s32 1, %s20
  %s23 = scalar_select 0, %s22, %s20
  loop: start=0, step=1, limit=4
  $region2: #{net_forward.1} parent=0 // loop_pre_header
    _
  $region3: #{net_forward.1} parent=0 // loop_header
    %s25 = sphi 0, %s29
    %p26 = scmp.ge.s32.totalorder %s25, 4
    %s35 = sphi 0, %s37
    %s38 = sphi 0, %s35
    %s39 = sphi 0, %s38
    %s55 = sphi 0, %s39
    %s59 = sphi 0, %s59
    %s61 = sphi 0, %s59
    %s62 = sphi 0, %s61
    %s76 = sphi 0, %s62
    %s80 = sphi 0, %s80
    %s82 = sphi 0, %s80
    %s83 = sphi 0, %s82
    %s97 = sphi 0, %s83
    %s101 = sphi 0, %s101
    %s103 = sphi 0, %s101
    %s104 = sphi 0, %s103
    %s118 = sphi 0, %s104
    %s122 = sphi 0, %s122
    %s124 = sphi 0, %s122
    %s125 = sphi 0, %s124
    %s139 = sphi 0, %s125
    %s143 = sphi 0, %s143
    %s145 = sphi 0, %s143
    %s146 = sphi 0, %s145
    %s160 = sphi 0, %s146
    %s164 = sphi 0, %s164
    %s166 = sphi 0, %s164
    %s167 = sphi 0, %s166
    %s181 = sphi 0, %s167
    %s185 = sphi 0, %s185
    %s187 = sphi 0, %s185
    %s188 = sphi 0, %s187
    %s202 = sphi 0, %s188
    %s206 = sphi 0, %s206
    %s208 = sphi 0, %s206
    %s209 = sphi 0, %s208
    %s223 = sphi 0, %s209
    %s227 = sphi 0, %s227
    %s229 = sphi 0, %s227
    %s230 = sphi 0, %s229
    %s244 = sphi 0, %s230
    %s248 = sphi 0, %s248
    %s250 = sphi 0, %s248
    %s251 = sphi 0, %s250
    %s265 = sphi 0, %s251
    %s269 = sphi 0, %s269
    %s271 = sphi 0, %s269
    %s272 = sphi 0, %s271
    %s286 = sphi 0, %s272
    %s290 = sphi 0, %s290
    %s292 = sphi 0, %s290
    %s293 = sphi 0, %s292
    %s307 = sphi 0, %s293
    %s311 = sphi 0, %s311
    %s313 = sphi 0, %s311
    %s314 = sphi 0, %s313
    %s328 = sphi 0, %s314
    %s332 = sphi 0, %s332
    %s334 = sphi 0, %s332
    %s335 = sphi 0, %s334
    %s349 = sphi 0, %s335
    %s353 = sphi 0, %s353
    %s355 = sphi 0, %s353
    %s356 = sphi 0, %s355
    %s370 = sphi 0, %s356
    %s374 = sphi 0, %s374
    %s376 = sphi 0, %s374
    %s377 = sphi 0, %s376
    %s391 = sphi 0, %s377
    %s395 = sphi 0, %s395
    %s397 = sphi 0, %s395
    %s398 = sphi 0, %s397
    %s412 = sphi 0, %s398
    %s416 = sphi 0, %s416
    %s418 = sphi 0, %s416
    %s419 = sphi 0, %s418
    %s433 = sphi 0, %s419
    %s439 = sphi 0, %s441
    %s442 = sphi 0, %s439
    %s443 = sphi 0, %s442
    %s459 = sphi 0, %s443
  $region4: #{net_forward.1} parent=0 // loop_header_branch
    %28 = sbr.rel (%p26) target = $region8
  $region5: #{net_forward.1} parent=0 // loop_body
    %s30 = ssub.s32 %s25, 1
    %s31 = ssub.s32 %s25, 2
    %s32 = sadd.s32 %s25, 1
    %s33 = ssub.s32 %s25, %s32
    %p34 = scmp.eq.s32.totalorder %s33, 0
    %s36 = sadd.s32 %s35, 1
    %s37 = scalar_select %p34, %s35, %s36
    %p40 = pneg %p34
    %p41 = scmp.eq.s32.totalorder %s25, 1
    %p42 = por %p40, %p41
    %p43 = scmp.ne.s32.totalorder %s35, %s38
    %p44 = scmp.eq.s32.totalorder %s25, 0
    %p45 = por %p43, %p44
    %p46 = scmp.ne.s32.totalorder %s35, %s38
    %p47 = scmp.eq.s32.totalorder %s30, 1
    %p48 = por %p46, %p47
    %p49 = scmp.ne.s32.totalorder %s38, %s39
    %p50 = scmp.eq.s32.totalorder %s30, 0
    %p51 = por %p49, %p50
    %p52 = scmp.ne.s32.totalorder %s38, %s39
    %p53 = scmp.eq.s32.totalorder %s31, 1
    %p54 = por %p52, %p53
    %p56 = scmp.ne.s32.totalorder %s39, %s55
    %p57 = scmp.eq.s32.totalorder %s31, 0
    %p58 = por %p56, %p57
    %s60 = sadd.s32 %s59, 1
    %p63 = scmp.eq.s32.totalorder %s25, 1
    %p64 = scmp.ne.s32.totalorder %s59, %s61
    %p65 = scmp.eq.s32.totalorder %s25, 0
    %p66 = por %p64, %p65
    %p67 = scmp.ne.s32.totalorder %s59, %s61
    %p68 = scmp.eq.s32.totalorder %s30, 1
    %p69 = por %p67, %p68
    %p70 = scmp.ne.s32.totalorder %s61, %s62
    %p71 = scmp.eq.s32.totalorder %s30, 0
    %p72 = por %p70, %p71
    %p73 = scmp.ne.s32.totalorder %s61, %s62
    %p74 = scmp.eq.s32.totalorder %s31, 1
    %p75 = por %p73, %p74
    %p77 = scmp.ne.s32.totalorder %s62, %s76
    %p78 = scmp.eq.s32.totalorder %s31, 0
    %p79 = por %p77, %p78
    %s81 = sadd.s32 %s80, 1
    %p84 = scmp.eq.s32.totalorder %s25, 1
    %p85 = scmp.ne.s32.totalorder %s80, %s82
    %p86 = scmp.eq.s32.totalorder %s25, 0
    %p87 = por %p85, %p86
    %p88 = scmp.ne.s32.totalorder %s80, %s82
    %p89 = scmp.eq.s32.totalorder %s30, 1
    %p90 = por %p88, %p89
    %p91 = scmp.ne.s32.totalorder %s82, %s83
    %p92 = scmp.eq.s32.totalorder %s30, 0
    %p93 = por %p91, %p92
    %p94 = scmp.ne.s32.totalorder %s82, %s83
    %p95 = scmp.eq.s32.totalorder %s31, 1
    %p96 = por %p94, %p95
    %p98 = scmp.ne.s32.totalorder %s83, %s97
    %p99 = scmp.eq.s32.totalorder %s31, 0
    %p100 = por %p98, %p99
    %s102 = sadd.s32 %s101, 1
    %p105 = scmp.eq.s32.totalorder %s25, 1
    %p106 = scmp.ne.s32.totalorder %s101, %s103
    %p107 = scmp.eq.s32.totalorder %s25, 0
    %p108 = por %p106, %p107
    %p109 = scmp.ne.s32.totalorder %s101, %s103
    %p110 = scmp.eq.s32.totalorder %s30, 1
    %p111 = por %p109, %p110
    %p112 = scmp.ne.s32.totalorder %s103, %s104
    %p113 = scmp.eq.s32.totalorder %s30, 0
    %p114 = por %p112, %p113
    %p115 = scmp.ne.s32.totalorder %s103, %s104
    %p116 = scmp.eq.s32.totalorder %s31, 1
    %p117 = por %p115, %p116
    %p119 = scmp.ne.s32.totalorder %s104, %s118
    %p120 = scmp.eq.s32.totalorder %s31, 0
    %p121 = por %p119, %p120
    %s123 = sadd.s32 %s122, 1
    %p126 = scmp.eq.s32.totalorder %s25, 1
    %p127 = scmp.ne.s32.totalorder %s122, %s124
    %p128 = scmp.eq.s32.totalorder %s25, 0
    %p129 = por %p127, %p128
    %p130 = scmp.ne.s32.totalorder %s122, %s124
    %p131 = scmp.eq.s32.totalorder %s30, 1
    %p132 = por %p130, %p131
    %p133 = scmp.ne.s32.totalorder %s124, %s125
    %p134 = scmp.eq.s32.totalorder %s30, 0
    %p135 = por %p133, %p134
    %p136 = scmp.ne.s32.totalorder %s124, %s125
    %p137 = scmp.eq.s32.totalorder %s31, 1
    %p138 = por %p136, %p137
    %p140 = scmp.ne.s32.totalorder %s125, %s139
    %p141 = scmp.eq.s32.totalorder %s31, 0
    %p142 = por %p140, %p141
    %s144 = sadd.s32 %s143, 1
    %p147 = scmp.eq.s32.totalorder %s25, 1
    %p148 = scmp.ne.s32.totalorder %s143, %s145
    %p149 = scmp.eq.s32.totalorder %s25, 0
    %p150 = por %p148, %p149
    %p151 = scmp.ne.s32.totalorder %s143, %s145
    %p152 = scmp.eq.s32.totalorder %s30, 1
    %p153 = por %p151, %p152
    %p154 = scmp.ne.s32.totalorder %s145, %s146
    %p155 = scmp.eq.s32.totalorder %s30, 0
    %p156 = por %p154, %p155
    %p157 = scmp.ne.s32.totalorder %s145, %s146
    %p158 = scmp.eq.s32.totalorder %s31, 1
    %p159 = por %p157, %p158
    %p161 = scmp.ne.s32.totalorder %s146, %s160
    %p162 = scmp.eq.s32.totalorder %s31, 0
    %p163 = por %p161, %p162
    %s165 = sadd.s32 %s164, 1
    %p168 = scmp.eq.s32.totalorder %s25, 1
    %p169 = scmp.ne.s32.totalorder %s164, %s166
    %p170 = scmp.eq.s32.totalorder %s25, 0
    %p171 = por %p169, %p170
    %p172 = scmp.ne.s32.totalorder %s164, %s166
    %p173 = scmp.eq.s32.totalorder %s30, 1
    %p174 = por %p172, %p173
    %p175 = scmp.ne.s32.totalorder %s166, %s167
    %p176 = scmp.eq.s32.totalorder %s30, 0
    %p177 = por %p175, %p176
    %p178 = scmp.ne.s32.totalorder %s166, %s167
    %p179 = scmp.eq.s32.totalorder %s31, 1
    %p180 = por %p178, %p179
    %p182 = scmp.ne.s32.totalorder %s167, %s181
    %p183 = scmp.eq.s32.totalorder %s31, 0
    %p184 = por %p182, %p183
    %s186 = sadd.s32 %s185, 1
    %p189 = scmp.eq.s32.totalorder %s25, 1
    %p190 = scmp.ne.s32.totalorder %s185, %s187
    %p191 = scmp.eq.s32.totalorder %s25, 0
    %p192 = por %p190, %p191
    %p193 = scmp.ne.s32.totalorder %s185, %s187
    %p194 = scmp.eq.s32.totalorder %s30, 1
    %p195 = por %p193, %p194
    %p196 = scmp.ne.s32.totalorder %s187, %s188
    %p197 = scmp.eq.s32.totalorder %s30, 0
    %p198 = por %p196, %p197
    %p199 = scmp.ne.s32.totalorder %s187, %s188
    %p200 = scmp.eq.s32.totalorder %s31, 1
    %p201 = por %p199, %p200
    %p203 = scmp.ne.s32.totalorder %s188, %s202
    %p204 = scmp.eq.s32.totalorder %s31, 0
    %p205 = por %p203, %p204
    %s207 = sadd.s32 %s206, 1
    %p210 = scmp.eq.s32.totalorder %s25, 1
    %p211 = scmp.ne.s32.totalorder %s206, %s208
    %p212 = scmp.eq.s32.totalorder %s25, 0
    %p213 = por %p211, %p212
    %p214 = scmp.ne.s32.totalorder %s206, %s208
    %p215 = scmp.eq.s32.totalorder %s30, 1
    %p216 = por %p214, %p215
    %p217 = scmp.ne.s32.totalorder %s208, %s209
    %p218 = scmp.eq.s32.totalorder %s30, 0
    %p219 = por %p217, %p218
    %p220 = scmp.ne.s32.totalorder %s208, %s209
    %p221 = scmp.eq.s32.totalorder %s31, 1
    %p222 = por %p220, %p221
    %p224 = scmp.ne.s32.totalorder %s209, %s223
    %p225 = scmp.eq.s32.totalorder %s31, 0
    %p226 = por %p224, %p225
    %s228 = sadd.s32 %s227, 1
    %p231 = scmp.eq.s32.totalorder %s25, 1
    %p232 = scmp.ne.s32.totalorder %s227, %s229
    %p233 = scmp.eq.s32.totalorder %s25, 0
    %p234 = por %p232, %p233
    %p235 = scmp.ne.s32.totalorder %s227, %s229
    %p236 = scmp.eq.s32.totalorder %s30, 1
    %p237 = por %p235, %p236
    %p238 = scmp.ne.s32.totalorder %s229, %s230
    %p239 = scmp.eq.s32.totalorder %s30, 0
    %p240 = por %p238, %p239
    %p241 = scmp.ne.s32.totalorder %s229, %s230
    %p242 = scmp.eq.s32.totalorder %s31, 1
    %p243 = por %p241, %p242
    %p245 = scmp.ne.s32.totalorder %s230, %s244
    %p246 = scmp.eq.s32.totalorder %s31, 0
    %p247 = por %p245, %p246
    %s249 = sadd.s32 %s248, 1
    %p252 = scmp.eq.s32.totalorder %s25, 1
    %p253 = scmp.ne.s32.totalorder %s248, %s250
    %p254 = scmp.eq.s32.totalorder %s25, 0
    %p255 = por %p253, %p254
    %p256 = scmp.ne.s32.totalorder %s248, %s250
    %p257 = scmp.eq.s32.totalorder %s30, 1
    %p258 = por %p256, %p257
    %p259 = scmp.ne.s32.totalorder %s250, %s251
    %p260 = scmp.eq.s32.totalorder %s30, 0
    %p261 = por %p259, %p260
    %p262 = scmp.ne.s32.totalorder %s250, %s251
    %p263 = scmp.eq.s32.totalorder %s31, 1
    %p264 = por %p262, %p263
    %p266 = scmp.ne.s32.totalorder %s251, %s265
    %p267 = scmp.eq.s32.totalorder %s31, 0
    %p268 = por %p266, %p267
    %s270 = sadd.s32 %s269, 1
    %p273 = scmp.eq.s32.totalorder %s25, 1
    %p274 = scmp.ne.s32.totalorder %s269, %s271
    %p275 = scmp.eq.s32.totalorder %s25, 0
    %p276 = por %p274, %p275
    %p277 = scmp.ne.s32.totalorder %s269, %s271
    %p278 = scmp.eq.s32.totalorder %s30, 1
    %p279 = por %p277, %p278
    %p280 = scmp.ne.s32.totalorder %s271, %s272
    %p281 = scmp.eq.s32.totalorder %s30, 0
    %p282 = por %p280, %p281
    %p283 = scmp.ne.s32.totalorder %s271, %s272
    %p284 = scmp.eq.s32.totalorder %s31, 1
    %p285 = por %p283, %p284
    %p287 = scmp.ne.s32.totalorder %s272, %s286
    %p288 = scmp.eq.s32.totalorder %s31, 0
    %p289 = por %p287, %p288
    %s291 = sadd.s32 %s290, 1
    %p294 = scmp.eq.s32.totalorder %s25, 1
    %p295 = scmp.ne.s32.totalorder %s290, %s292
    %p296 = scmp.eq.s32.totalorder %s25, 0
    %p297 = por %p295, %p296
    %p298 = scmp.ne.s32.totalorder %s290, %s292
    %p299 = scmp.eq.s32.totalorder %s30, 1
    %p300 = por %p298, %p299
    %p301 = scmp.ne.s32.totalorder %s292, %s293
    %p302 = scmp.eq.s32.totalorder %s30, 0
    %p303 = por %p301, %p302
    %p304 = scmp.ne.s32.totalorder %s292, %s293
    %p305 = scmp.eq.s32.totalorder %s31, 1
    %p306 = por %p304, %p305
    %p308 = scmp.ne.s32.totalorder %s293, %s307
    %p309 = scmp.eq.s32.totalorder %s31, 0
    %p310 = por %p308, %p309
    %s312 = sadd.s32 %s311, 1
    %p315 = scmp.eq.s32.totalorder %s25, 1
    %p316 = scmp.ne.s32.totalorder %s311, %s313
    %p317 = scmp.eq.s32.totalorder %s25, 0
    %p318 = por %p316, %p317
    %p319 = scmp.ne.s32.totalorder %s311, %s313
    %p320 = scmp.eq.s32.totalorder %s30, 1
    %p321 = por %p319, %p320
    %p322 = scmp.ne.s32.totalorder %s313, %s314
    %p323 = scmp.eq.s32.totalorder %s30, 0
    %p324 = por %p322, %p323
    %p325 = scmp.ne.s32.totalorder %s313, %s314
    %p326 = scmp.eq.s32.totalorder %s31, 1
    %p327 = por %p325, %p326
    %p329 = scmp.ne.s32.totalorder %s314, %s328
    %p330 = scmp.eq.s32.totalorder %s31, 0
    %p331 = por %p329, %p330
    %s333 = sadd.s32 %s332, 1
    %p336 = scmp.eq.s32.totalorder %s25, 1
    %p337 = scmp.ne.s32.totalorder %s332, %s334
    %p338 = scmp.eq.s32.totalorder %s25, 0
    %p339 = por %p337, %p338
    %p340 = scmp.ne.s32.totalorder %s332, %s334
    %p341 = scmp.eq.s32.totalorder %s30, 1
    %p342 = por %p340, %p341
    %p343 = scmp.ne.s32.totalorder %s334, %s335
    %p344 = scmp.eq.s32.totalorder %s30, 0
    %p345 = por %p343, %p344
    %p346 = scmp.ne.s32.totalorder %s334, %s335
    %p347 = scmp.eq.s32.totalorder %s31, 1
    %p348 = por %p346, %p347
    %p350 = scmp.ne.s32.totalorder %s335, %s349
    %p351 = scmp.eq.s32.totalorder %s31, 0
    %p352 = por %p350, %p351
    %s354 = sadd.s32 %s353, 1
    %p357 = scmp.eq.s32.totalorder %s25, 1
    %p358 = scmp.ne.s32.totalorder %s353, %s355
    %p359 = scmp.eq.s32.totalorder %s25, 0
    %p360 = por %p358, %p359
    %p361 = scmp.ne.s32.totalorder %s353, %s355
    %p362 = scmp.eq.s32.totalorder %s30, 1
    %p363 = por %p361, %p362
    %p364 = scmp.ne.s32.totalorder %s355, %s356
    %p365 = scmp.eq.s32.totalorder %s30, 0
    %p366 = por %p364, %p365
    %p367 = scmp.ne.s32.totalorder %s355, %s356
    %p368 = scmp.eq.s32.totalorder %s31, 1
    %p369 = por %p367, %p368
    %p371 = scmp.ne.s32.totalorder %s356, %s370
    %p372 = scmp.eq.s32.totalorder %s31, 0
    %p373 = por %p371, %p372
    %s375 = sadd.s32 %s374, 1
    %p378 = scmp.eq.s32.totalorder %s25, 1
    %p379 = scmp.ne.s32.totalorder %s374, %s376
    %p380 = scmp.eq.s32.totalorder %s25, 0
    %p381 = por %p379, %p380
    %p382 = scmp.ne.s32.totalorder %s374, %s376
    %p383 = scmp.eq.s32.totalorder %s30, 1
    %p384 = por %p382, %p383
    %p385 = scmp.ne.s32.totalorder %s376, %s377
    %p386 = scmp.eq.s32.totalorder %s30, 0
    %p387 = por %p385, %p386
    %p388 = scmp.ne.s32.totalorder %s376, %s377
    %p389 = scmp.eq.s32.totalorder %s31, 1
    %p390 = por %p388, %p389
    %p392 = scmp.ne.s32.totalorder %s377, %s391
    %p393 = scmp.eq.s32.totalorder %s31, 0
    %p394 = por %p392, %p393
    %s396 = sadd.s32 %s395, 1
    %p399 = scmp.eq.s32.totalorder %s25, 1
    %p400 = scmp.ne.s32.totalorder %s395, %s397
    %p401 = scmp.eq.s32.totalorder %s25, 0
    %p402 = por %p400, %p401
    %p403 = scmp.ne.s32.totalorder %s395, %s397
    %p404 = scmp.eq.s32.totalorder %s30, 1
    %p405 = por %p403, %p404
    %p406 = scmp.ne.s32.totalorder %s397, %s398
    %p407 = scmp.eq.s32.totalorder %s30, 0
    %p408 = por %p406, %p407
    %p409 = scmp.ne.s32.totalorder %s397, %s398
    %p410 = scmp.eq.s32.totalorder %s31, 1
    %p411 = por %p409, %p410
    %p413 = scmp.ne.s32.totalorder %s398, %s412
    %p414 = scmp.eq.s32.totalorder %s31, 0
    %p415 = por %p413, %p414
    %s417 = sadd.s32 %s416, 1
    %p420 = scmp.eq.s32.totalorder %s25, 1
    %p421 = scmp.ne.s32.totalorder %s416, %s418
    %p422 = scmp.eq.s32.totalorder %s25, 0
    %p423 = por %p421, %p422
    %p424 = scmp.ne.s32.totalorder %s416, %s418
    %p425 = scmp.eq.s32.totalorder %s30, 1
    %p426 = por %p424, %p425
    %p427 = scmp.ne.s32.totalorder %s418, %s419
    %p428 = scmp.eq.s32.totalorder %s30, 0
    %p429 = por %p427, %p428
    %p430 = scmp.ne.s32.totalorder %s418, %s419
    %p431 = scmp.eq.s32.totalorder %s31, 1
    %p432 = por %p430, %p431
    %p434 = scmp.ne.s32.totalorder %s419, %s433
    %p435 = scmp.eq.s32.totalorder %s31, 0
    %p436 = por %p434, %p435
    %s437 = ssub.s32 %s25, %s32
    %p438 = scmp.eq.s32.totalorder %s437, 0
    %s440 = sadd.s32 %s439, 1
    %s441 = scalar_select %p438, %s439, %s440
    %p444 = pneg %p438
    %p445 = scmp.eq.s32.totalorder %s25, 1
    %p446 = por %p444, %p445
    %p447 = scmp.ne.s32.totalorder %s439, %s442
    %p448 = scmp.eq.s32.totalorder %s25, 0
    %p449 = por %p447, %p448
    %p450 = scmp.ne.s32.totalorder %s439, %s442
    %p451 = scmp.eq.s32.totalorder %s30, 1
    %p452 = por %p450, %p451
    %p453 = scmp.ne.s32.totalorder %s442, %s443
    %p454 = scmp.eq.s32.totalorder %s30, 0
    %p455 = por %p453, %p454
    %p456 = scmp.ne.s32.totalorder %s442, %s443
    %p457 = scmp.eq.s32.totalorder %s31, 1
    %p458 = por %p456, %p457
    %p460 = scmp.ne.s32.totalorder %s443, %s459
    %p461 = scmp.eq.s32.totalorder %s31, 0
    %p462 = por %p460, %p461
    %p463 = scmp.le.s32.totalorder 1, %s25
    %p464 = scmp.lt.s32.totalorder %s25, 3
    %p465 = pnand %p463, %p464
    %p466 = pneg %p465
    // Predicated region
    $region9: #{net_forward.1} parent=5 // pred_check
      _
    $region10: #{net_forward.1} parent=5 // pred_check_branch
      %468 = sbr.rel (%p465) target = $region12
    $region11: #{net_forward.1} parent=5 // pred_region
      %s469 = ssub.s32 %s25, 1
      // Predicated region
      $region13: #{net_forward.1} parent=11 // pred_check
        %p470 = pneg %p72
      $region14: #{net_forward.1} parent=11 // pred_check_branch
        %472 = sbr.rel (%p470) target = $region16
      $region15: #{net_forward.1} parent=11 // pred_region
        _
      $region16: #{net_forward.1} parent=11 // pred_fallthru
        _
      // Predicated region
      $region17: #{net_forward.1} parent=11 // pred_check
        %p473 = pneg %p93
      $region18: #{net_forward.1} parent=11 // pred_check_branch
        %475 = sbr.rel (%p473) target = $region20
      $region19: #{net_forward.1} parent=11 // pred_region
        _
      $region20: #{net_forward.1} parent=11 // pred_fallthru
        _
      // Predicated region
      $region21: #{net_forward.1} parent=11 // pred_check
        %p476 = pneg %p114
      $region22: #{net_forward.1} parent=11 // pred_check_branch
        %478 = sbr.rel (%p476) target = $region24
      $region23: #{net_forward.1} parent=11 // pred_region
        _
      $region24: #{net_forward.1} parent=11 // pred_fallthru
        _
      // Predicated region
      $region25: #{net_forward.1} parent=11 // pred_check
        %p479 = pneg %p135
      $region26: #{net_forward.1} parent=11 // pred_check_branch
        %481 = sbr.rel (%p479) target = $region28
      $region27: #{net_forward.1} parent=11 // pred_region
        _
      $region28: #{net_forward.1} parent=11 // pred_fallthru
        _
      // Predicated region
      $region29: #{net_forward.1} parent=11 // pred_check
        %p482 = pneg %p156
      $region30: #{net_forward.1} parent=11 // pred_check_branch
        %484 = sbr.rel (%p482) target = $region32
      $region31: #{net_forward.1} parent=11 // pred_region
        _
      $region32: #{net_forward.1} parent=11 // pred_fallthru
        _
      // Predicated region
      $region33: #{net_forward.1} parent=11 // pred_check
        %p485 = pneg %p177
      $region34: #{net_forward.1} parent=11 // pred_check_branch
        %487 = sbr.rel (%p485) target = $region36
      $region35: #{net_forward.1} parent=11 // pred_region
        _
      $region36: #{net_forward.1} parent=11 // pred_fallthru
        _
      // Predicated region
      $region37: #{net_forward.1} parent=11 // pred_check
        %p488 = pneg %p198
      $region38: #{net_forward.1} parent=11 // pred_check_branch
        %490 = sbr.rel (%p488) target = $region40
      $region39: #{net_forward.1} parent=11 // pred_region
        _
      $region40: #{net_forward.1} parent=11 // pred_fallthru
        _
      // Predicated region
      $region41: #{net_forward.1} parent=11 // pred_check
        %p491 = pneg %p219
      $region42: #{net_forward.1} parent=11 // pred_check_branch
        %493 = sbr.rel (%p491) target = $region44
      $region43: #{net_forward.1} parent=11 // pred_region
        _
      $region44: #{net_forward.1} parent=11 // pred_fallthru
        _
      // Predicated region
      $region45: #{net_forward.1} parent=11 // pred_check
        %p494 = pneg %p240
      $region46: #{net_forward.1} parent=11 // pred_check_branch
        %496 = sbr.rel (%p494) target = $region48
      $region47: #{net_forward.1} parent=11 // pred_region
        _
      $region48: #{net_forward.1} parent=11 // pred_fallthru
        _
      // Predicated region
      $region49: #{net_forward.1} parent=11 // pred_check
        %p497 = pneg %p261
      $region50: #{net_forward.1} parent=11 // pred_check_branch
        %499 = sbr.rel (%p497) target = $region52
      $region51: #{net_forward.1} parent=11 // pred_region
        _
      $region52: #{net_forward.1} parent=11 // pred_fallthru
        _
      // Predicated region
      $region53: #{net_forward.1} parent=11 // pred_check
        %p500 = pneg %p282
      $region54: #{net_forward.1} parent=11 // pred_check_branch
        %502 = sbr.rel (%p500) target = $region56
      $region55: #{net_forward.1} parent=11 // pred_region
        _
      $region56: #{net_forward.1} parent=11 // pred_fallthru
        _
      // Predicated region
      $region57: #{net_forward.1} parent=11 // pred_check
        %p503 = pneg %p303
      $region58: #{net_forward.1} parent=11 // pred_check_branch
        %505 = sbr.rel (%p503) target = $region60
      $region59: #{net_forward.1} parent=11 // pred_region
        _
      $region60: #{net_forward.1} parent=11 // pred_fallthru
        _
      // Predicated region
      $region61: #{net_forward.1} parent=11 // pred_check
        %p506 = pneg %p324
      $region62: #{net_forward.1} parent=11 // pred_check_branch
        %508 = sbr.rel (%p506) target = $region64
      $region63: #{net_forward.1} parent=11 // pred_region
        _
      $region64: #{net_forward.1} parent=11 // pred_fallthru
        _
      // Predicated region
      $region65: #{net_forward.1} parent=11 // pred_check
        %p509 = pneg %p345
      $region66: #{net_forward.1} parent=11 // pred_check_branch
        %511 = sbr.rel (%p509) target = $region68
      $region67: #{net_forward.1} parent=11 // pred_region
        _
      $region68: #{net_forward.1} parent=11 // pred_fallthru
        _
      // Predicated region
      $region69: #{net_forward.1} parent=11 // pred_check
        %p512 = pneg %p366
      $region70: #{net_forward.1} parent=11 // pred_check_branch
        %514 = sbr.rel (%p512) target = $region72
      $region71: #{net_forward.1} parent=11 // pred_region
        _
      $region72: #{net_forward.1} parent=11 // pred_fallthru
        _
      // Predicated region
      $region73: #{net_forward.1} parent=11 // pred_check
        %p515 = pneg %p387
      $region74: #{net_forward.1} parent=11 // pred_check_branch
        %517 = sbr.rel (%p515) target = $region76
      $region75: #{net_forward.1} parent=11 // pred_region
        _
      $region76: #{net_forward.1} parent=11 // pred_fallthru
        _
      // Predicated region
      $region77: #{net_forward.1} parent=11 // pred_check
        %p518 = pneg %p408
      $region78: #{net_forward.1} parent=11 // pred_check_branch
        %520 = sbr.rel (%p518) target = $region80
      $region79: #{net_forward.1} parent=11 // pred_region
        _
      $region80: #{net_forward.1} parent=11 // pred_fallthru
        _
      // Predicated region
      $region81: #{net_forward.1} parent=11 // pred_check
        %p521 = pneg %p429
      $region82: #{net_forward.1} parent=11 // pred_check_branch
        %523 = sbr.rel (%p521) target = $region84
      $region83: #{net_forward.1} parent=11 // pred_region
        _
      $region84: #{net_forward.1} parent=11 // pred_fallthru
        _
    $region12: #{net_forward.1} parent=5 // pred_fallthru
      _
    %p524 = scmp.lt.s32.totalorder %s25, 2
    // Predicated region
    $region85: #{net_forward.1} parent=5 // pred_check
      %p525 = pneg %p524
    $region86: #{net_forward.1} parent=5 // pred_check_branch
      %527 = sbr.rel (%p525) target = $region88
    $region87: #{net_forward.1} parent=5 // pred_region
      // Predicated region
      $region89: #{net_forward.1} parent=87 // pred_check
        %p528 = pneg %p45
      $region90: #{net_forward.1} parent=87 // pred_check_branch
        %530 = sbr.rel (%p528) target = $region92
      $region91: #{net_forward.1} parent=87 // pred_region
        %p531 = scmp.lt.s32.totalorder %s25, 1
        %s532 = scalar_select %p531, %s25, 1
        %s533 = smul.addr %s532, 8
        %s534 = smul.addr %s533, 8
        %s535 = scalar_lea.vmem %s0, %s534
      $region92: #{net_forward.1} parent=87 // pred_fallthru
        _
    $region88: #{net_forward.1} parent=5 // pred_fallthru
      _
    %p536 = scmp.le.s32.totalorder 1, %s25
    %p537 = scmp.lt.s32.totalorder %s25, 3
    %p538 = pnand %p536, %p537
    %p539 = pneg %p538
    // Predicated region
    $region93: #{net_forward.1} parent=5 // pred_check
      _
    $region94: #{net_forward.1} parent=5 // pred_check_branch
      %541 = sbr.rel (%p538) target = $region96
    $region95: #{net_forward.1} parent=5 // pred_region
      %s542 = ssub.s32 %s25, 1
      %p543 = scmp.lt.s32.totalorder %s30, 1
      %s544 = scalar_select %p543, %s30, 1
      %s545 = smul.addr %s544, 8
      %s546 = smul.addr %s545, 8
      %s547 = scalar_lea.vmem %s0, %s546
      %p548 = pneg %p51
      %p549 = pneg %p48
      %p550 = pneg %p72
      %p551 = pneg %p69
      %p552 = pneg %p93
      %p553 = pneg %p90
      %p554 = pneg %p114
      %p555 = pneg %p111
      %p556 = pneg %p135
      %p557 = pneg %p132
      %p558 = pneg %p156
      %p559 = pneg %p153
      %p560 = pneg %p177
      %p561 = pneg %p174
      %p562 = pneg %p198
      %p563 = pneg %p195
      %p564 = pneg %p219
      %p565 = pneg %p216
      %p566 = pneg %p240
      %p567 = pneg %p237
      %p568 = pneg %p261
      %p569 = pneg %p258
      %p570 = pneg %p282
      %p571 = pneg %p279
      %p572 = pneg %p303
      %p573 = pneg %p300
      %p574 = pneg %p324
      %p575 = pneg %p321
      %p576 = pneg %p345
      %p577 = pneg %p342
      %p578 = pneg %p366
      %p579 = pneg %p363
      %p580 = pneg %p387
      %p581 = pneg %p384
      %p582 = pneg %p408
      %p583 = pneg %p405
      %p584 = pneg %p429
      %p585 = pneg %p426
      %p586 = pneg %p455
      %p587 = pneg %p452
      %p588 = scmp.lt.s32.totalorder %s30, 1
      %s589 = scalar_select %p588, %s30, 1
      %s590 = smul.addr %s589, 2
      %s591 = smul.addr %s590, 8
      %s592 = scalar_lea.vmem %s19, %s591
      %p593 = scmp.lt.s32.totalorder %s30, 1
      %s594 = scalar_select %p593, %s30, 1
      %s595 = smul.addr %s594, 8
      %s596 = smul.addr %s595, 8
      %s597 = scalar_lea.vmem %s0, %s596
      %p598 = scmp.lt.s32.totalorder %s30, 1
      %s599 = scalar_select %p598, %s30, 1
      %s600 = smul.addr %s599, 2
      %s601 = smul.addr %s600, 8
      %s602 = scalar_lea.vmem %s19, %s601
      %v604 = vld [vmem:[%s597] sm:$0xff]
      %v605 = vld [vmem:[%s597 + $0x8] sm:$0xff]
      %v606 = vld [vmem:[%s597 + $0x10] sm:$0xff]
      %v607 = vld [vmem:[%s597 + $0x18] sm:$0xff]
      %v608 = vld [vmem:[%s597 + $0x20] sm:$0xff]
      %v609 = vld [vmem:[%s597 + $0x28] sm:$0xff]
      %v610 = vld [vmem:[%s597 + $0x30] sm:$0xff]
      %v611 = vld [vmem:[%s597 + $0x38] sm:$0xff]
      %612 = vst [vmem:[#allocation2] sm:$0xff] %v604
      %vm613 = vcmask 785408
      %614 = vst.msk [vmem:[#allocation2 + $0x8] sm:$0xff] %vm613, %v605
      %615 = vst [vmem:[#allocation2 + $0x10] sm:$0xff] %v606
      %616 = vst.msk [vmem:[#allocation2 + $0x18] sm:$0xff] %vm613, %v607
      %617 = vst [vmem:[#allocation2 + $0x20] sm:$0xff] %v608
      %618 = vst.msk [vmem:[#allocation2 + $0x28] sm:$0xff] %vm613, %v609
      %619 = vst [vmem:[#allocation2 + $0x30] sm:$0xff] %v610
      %620 = vst.msk [vmem:[#allocation2 + $0x38] sm:$0xff] %vm613, %v611
      %629 = vrot.lane.b32.xlu0 %v604, 120
      %v630 = vpop.permute.xlu0 %629
      %631 = vrot.lane.b32.xlu0 %v605, 120
      %v632 = vpop.permute.xlu0 %631
      %633 = vrot.lane.b32.xlu0 %v606, 120
      %v634 = vpop.permute.xlu0 %633
      %635 = vrot.lane.b32.xlu0 %v607, 120
      %v636 = vpop.permute.xlu0 %635
      %637 = vrot.lane.b32.xlu0 %v608, 120
      %v638 = vpop.permute.xlu0 %637
      %639 = vrot.lane.b32.xlu0 %v609, 120
      %v640 = vpop.permute.xlu0 %639
      %641 = vrot.lane.b32.xlu0 %v610, 120
      %v642 = vpop.permute.xlu0 %641
      %643 = vrot.lane.b32.xlu0 %v611, 120
      %v644 = vpop.permute.xlu0 %643
      %vm645 = vcmask 982016
      %v646 = vsel %vm645, %v630, %v632
      %v647 = vsel %vm645, %v634, %v636
      %v648 = vsel %vm645, %v638, %v640
      %v649 = vsel %vm645, %v642, %v644
      %658 = vst [vmem:[#allocation2 + $0x40] sm:$0xff] %v646
      %659 = vst.msk [vmem:[#allocation2 + $0x48] sm:$0xff] %vm613, %v632
      %660 = vst [vmem:[#allocation2 + $0x50] sm:$0xff] %v647
      %661 = vst.msk [vmem:[#allocation2 + $0x58] sm:$0xff] %vm613, %v636
      %662 = vst [vmem:[#allocation2 + $0x60] sm:$0xff] %v648
      %663 = vst.msk [vmem:[#allocation2 + $0x68] sm:$0xff] %vm613, %v640
      %664 = vst [vmem:[#allocation2 + $0x70] sm:$0xff] %v649
      %665 = vst.msk [vmem:[#allocation2 + $0x78] sm:$0xff] %vm613, %v644
      %666 = vrot.lane.b32.xlu0 %v604, 112
      %v667 = vpop.permute.xlu0 %666
      %668 = vrot.lane.b32.xlu0 %v605, 112
      %v669 = vpop.permute.xlu0 %668
      %670 = vrot.lane.b32.xlu0 %v606, 112
      %v671 = vpop.permute.xlu0 %670
      %672 = vrot.lane.b32.xlu0 %v607, 112
      %v673 = vpop.permute.xlu0 %672
      %674 = vrot.lane.b32.xlu0 %v608, 112
      %v675 = vpop.permute.xlu0 %674
      %676 = vrot.lane.b32.xlu0 %v609, 112
      %v677 = vpop.permute.xlu0 %676
      %678 = vrot.lane.b32.xlu0 %v610, 112
      %v679 = vpop.permute.xlu0 %678
      %680 = vrot.lane.b32.xlu0 %v611, 112
      %v681 = vpop.permute.xlu0 %680
      %vm682 = vcmask 916480
      %v683 = vsel %vm682, %v667, %v669
      %v684 = vsel %vm682, %v671, %v673
      %v685 = vsel %vm682, %v675, %v677
      %v686 = vsel %vm682, %v679, %v681
      %695 = vst [vmem:[#allocation2 + $0x80] sm:$0xff] %v683
      %696 = vst.msk [vmem:[#allocation2 + $0x88] sm:$0xff] %vm613, %v669
      %697 = vst [vmem:[#allocation2 + $0x90] sm:$0xff] %v684
      %698 = vst.msk [vmem:[#allocation2 + $0x98] sm:$0xff] %vm613, %v673
      %699 = vst [vmem:[#allocation2 + $0xa0] sm:$0xff] %v685
      %700 = vst.msk [vmem:[#allocation2 + $0xa8] sm:$0xff] %vm613, %v677
      %701 = vst [vmem:[#allocation2 + $0xb0] sm:$0xff] %v686
      %702 = vst.msk [vmem:[#allocation2 + $0xb8] sm:$0xff] %vm613, %v681
      %703 = vrot.lane.b32.xlu0 %v604, 104
      %v704 = vpop.permute.xlu0 %703
      %705 = vrot.lane.b32.xlu0 %v605, 104
      %v706 = vpop.permute.xlu0 %705
      %707 = vrot.lane.b32.xlu0 %v606, 104
      %v708 = vpop.permute.xlu0 %707
      %709 = vrot.lane.b32.xlu0 %v607, 104
      %v710 = vpop.permute.xlu0 %709
      %711 = vrot.lane.b32.xlu0 %v608, 104
      %v712 = vpop.permute.xlu0 %711
      %713 = vrot.lane.b32.xlu0 %v609, 104
      %v714 = vpop.permute.xlu0 %713
      %715 = vrot.lane.b32.xlu0 %v610, 104
      %v716 = vpop.permute.xlu0 %715
      %717 = vrot.lane.b32.xlu0 %v611, 104
      %v718 = vpop.permute.xlu0 %717
      %vm719 = vcmask 850944
      %v720 = vsel %vm719, %v704, %v706
      %v721 = vsel %vm719, %v708, %v710
      %v722 = vsel %vm719, %v712, %v714
      %v723 = vsel %vm719, %v716, %v718
      %732 = vst [vmem:[#allocation2 + $0xc0] sm:$0xff] %v720
      %733 = vst.msk [vmem:[#allocation2 + $0xc8] sm:$0xff] %vm613, %v706
      %734 = vst [vmem:[#allocation2 + $0xd0] sm:$0xff] %v721
      %735 = vst.msk [vmem:[#allocation2 + $0xd8] sm:$0xff] %vm613, %v710
      %736 = vst [vmem:[#allocation2 + $0xe0] sm:$0xff] %v722
      %737 = vst.msk [vmem:[#allocation2 + $0xe8] sm:$0xff] %vm613, %v714
      %738 = vst [vmem:[#allocation2 + $0xf0] sm:$0xff] %v723
      %739 = vst.msk [vmem:[#allocation2 + $0xf8] sm:$0xff] %vm613, %v718
      %740 = vrot.lane.b32.xlu0 %v604, 96
      %v741 = vpop.permute.xlu0 %740
      %742 = vrot.lane.b32.xlu0 %v605, 96
      %v743 = vpop.permute.xlu0 %742
      %744 = vrot.lane.b32.xlu0 %v606, 96
      %v745 = vpop.permute.xlu0 %744
      %746 = vrot.lane.b32.xlu0 %v607, 96
      %v747 = vpop.permute.xlu0 %746
      %748 = vrot.lane.b32.xlu0 %v608, 96
      %v749 = vpop.permute.xlu0 %748
      %750 = vrot.lane.b32.xlu0 %v609, 96
      %v751 = vpop.permute.xlu0 %750
      %752 = vrot.lane.b32.xlu0 %v610, 96
      %v753 = vpop.permute.xlu0 %752
      %754 = vrot.lane.b32.xlu0 %v611, 96
      %v755 = vpop.permute.xlu0 %754
      %v756 = vsel %vm613, %v741, %v743
      %v757 = vsel %vm613, %v745, %v747
      %v758 = vsel %vm613, %v749, %v751
      %v759 = vsel %vm613, %v753, %v755
      %768 = vst [vmem:[#allocation2 + $0x100] sm:$0xff] %v756
      %769 = vst.msk [vmem:[#allocation2 + $0x108] sm:$0xff] %vm613, %v743
      %770 = vst [vmem:[#allocation2 + $0x110] sm:$0xff] %v757
      %771 = vst.msk [vmem:[#allocation2 + $0x118] sm:$0xff] %vm613, %v747
      %772 = vst [vmem:[#allocation2 + $0x120] sm:$0xff] %v758
      %773 = vst.msk [vmem:[#allocation2 + $0x128] sm:$0xff] %vm613, %v751
      %774 = vst [vmem:[#allocation2 + $0x130] sm:$0xff] %v759
      %775 = vst.msk [vmem:[#allocation2 + $0x138] sm:$0xff] %vm613, %v755
      %v776 = vld [vmem:[#allocation2] sm:$0xff]
      %v777 = vld [vmem:[#allocation2 + $0x8] sm:$0xff]
      %v778 = vld [vmem:[#allocation2 + $0x10] sm:$0xff]
      %v779 = vld [vmem:[#allocation2 + $0x18] sm:$0xff]
      %v780 = vld [vmem:[#allocation2 + $0x20] sm:$0xff]
      %v781 = vld [vmem:[#allocation2 + $0x28] sm:$0xff]
      %v782 = vld [vmem:[#allocation2 + $0x30] sm:$0xff]
      %v783 = vld [vmem:[#allocation2 + $0x38] sm:$0xff]
      %v784 = vld [vmem:[#allocation2 + $0x40] sm:$0xff]
      %v785 = vld [vmem:[#allocation2 + $0x48] sm:$0xff]
      %v786 = vld [vmem:[#allocation2 + $0x50] sm:$0xff]
      %v787 = vld [vmem:[#allocation2 + $0x58] sm:$0xff]
      %v788 = vld [vmem:[#allocation2 + $0x60] sm:$0xff]
      %v789 = vld [vmem:[#allocation2 + $0x68] sm:$0xff]
      %v790 = vld [vmem:[#allocation2 + $0x70] sm:$0xff]
      %v791 = vld [vmem:[#allocation2 + $0x78] sm:$0xff]
      %v792 = vld [vmem:[#allocation2 + $0x80] sm:$0xff]
      %v793 = vld [vmem:[#allocation2 + $0x88] sm:$0xff]
      %v794 = vld [vmem:[#allocation2 + $0x90] sm:$0xff]
      %v795 = vld [vmem:[#allocation2 + $0x98] sm:$0xff]
      %v796 = vld [vmem:[#allocation2 + $0xa0] sm:$0xff]
      %v797 = vld [vmem:[#allocation2 + $0xa8] sm:$0xff]
      %v798 = vld [vmem:[#allocation2 + $0xb0] sm:$0xff]
      %v799 = vld [vmem:[#allocation2 + $0xb8] sm:$0xff]
      %v800 = vld [vmem:[#allocation2 + $0xc0] sm:$0xff]
      %v801 = vld [vmem:[#allocation2 + $0xc8] sm:$0xff]
      %v802 = vld [vmem:[#allocation2 + $0xd0] sm:$0xff]
      %v803 = vld [vmem:[#allocation2 + $0xd8] sm:$0xff]
      %v804 = vld [vmem:[#allocation2 + $0xe0] sm:$0xff]
      %v805 = vld [vmem:[#allocation2 + $0xe8] sm:$0xff]
      %v806 = vld [vmem:[#allocation2 + $0xf0] sm:$0xff]
      %v807 = vld [vmem:[#allocation2 + $0xf8] sm:$0xff]
      %v808 = vld [vmem:[#allocation2 + $0x100] sm:$0xff]
      %v809 = vld [vmem:[#allocation2 + $0x108] sm:$0xff]
      %v810 = vld [vmem:[#allocation2 + $0x110] sm:$0xff]
      %v811 = vld [vmem:[#allocation2 + $0x118] sm:$0xff]
      %v812 = vld [vmem:[#allocation2 + $0x120] sm:$0xff]
      %v813 = vld [vmem:[#allocation2 + $0x128] sm:$0xff]
      %v814 = vld [vmem:[#allocation2 + $0x130] sm:$0xff]
      %v815 = vld [vmem:[#allocation2 + $0x138] sm:$0xff]
      %v816 = vld [vmem:[%s1] sm:$0xff]
      %v817 = vld [vmem:[%s1 + $0x8] sm:$0xff]
      %v818 = vld [vmem:[%s1 + $0x10] sm:$0xff]
      %v819 = vld [vmem:[%s1 + $0x18] sm:$0xff]
      %v820 = vld [vmem:[%s1 + $0x20] sm:$0xff]
      %v821 = vld [vmem:[%s1 + $0x28] sm:$0xff]
      %v822 = vld [vmem:[%s1 + $0x30] sm:$0xff]
      %v823 = vld [vmem:[%s1 + $0x38] sm:$0xff]
      %v824 = vld [vmem:[%s1 + $0x40] sm:$0xff]
      %v825 = vld [vmem:[%s1 + $0x48] sm:$0xff]
      %v826 = vld [vmem:[%s1 + $0x50] sm:$0xff]
      %v827 = vld [vmem:[%s3] sm:$0xff]
      %v828 = vld [vmem:[%s3 + $0x8] sm:$0xff]
      %v829 = vld [vmem:[%s3 + $0x10] sm:$0xff]
      %v830 = vld [vmem:[%s3 + $0x18] sm:$0xff]
      %v831 = vld [vmem:[%s3 + $0x20] sm:$0xff]
      %v832 = vld [vmem:[%s3 + $0x28] sm:$0xff]
      %v833 = vld [vmem:[%s3 + $0x30] sm:$0xff]
      %v834 = vld [vmem:[%s3 + $0x38] sm:$0xff]
      %v835 = vld [vmem:[%s3 + $0x40] sm:$0xff]
      %v836 = vld [vmem:[%s3 + $0x48] sm:$0xff]
      %v837 = vld [vmem:[%s3 + $0x50] sm:$0xff]
      %839 = vset.pattern.permute.xlu0 0
      %840 = vperm.xlu0 %839, %v827
      %v841 = vpop.permute.xlu0 %840
      %844 = vset.pattern.permute.xlu0 0
      %845 = vperm.xlu0 %844, %v828
      %v846 = vpop.permute.xlu0 %845
      %849 = vset.pattern.permute.xlu0 0
      %850 = vperm.xlu0 %849, %v829
      %v851 = vpop.permute.xlu0 %850
      %854 = vset.pattern.permute.xlu0 0
      %855 = vperm.xlu0 %854, %v830
      %v856 = vpop.permute.xlu0 %855
      %859 = vset.pattern.permute.xlu0 0
      %860 = vperm.xlu0 %859, %v831
      %v861 = vpop.permute.xlu0 %860
      %864 = vset.pattern.permute.xlu0 0
      %865 = vperm.xlu0 %864, %v832
      %v866 = vpop.permute.xlu0 %865
      %869 = vset.pattern.permute.xlu0 0
      %870 = vperm.xlu0 %869, %v833
      %v871 = vpop.permute.xlu0 %870
      %874 = vset.pattern.permute.xlu0 0
      %875 = vperm.xlu0 %874, %v834
      %v876 = vpop.permute.xlu0 %875
      %879 = vset.pattern.permute.xlu0 0
      %880 = vperm.xlu0 %879, %v835
      %v881 = vpop.permute.xlu0 %880
      %884 = vset.pattern.permute.xlu0 0
      %885 = vperm.xlu0 %884, %v836
      %v886 = vpop.permute.xlu0 %885
      %889 = vset.pattern.permute.xlu0 0
      %890 = vperm.xlu0 %889, %v837
      %v891 = vpop.permute.xlu0 %890
      %v904 = vunpack.c.l.b16 %v816
      %v905 = vunpack.c.h.b16 %v816
      %v906 = vunpack.c.l.b16 %v817
      %v907 = vunpack.c.h.b16 %v817
      %v908 = vunpack.c.l.b16 %v818
      %v909 = vunpack.c.h.b16 %v818
      %v910 = vunpack.c.l.b16 %v819
      %v911 = vunpack.c.h.b16 %v819
      %v912 = vunpack.c.l.b16 %v820
      %v913 = vunpack.c.h.b16 %v820
      %v914 = vunpack.c.l.b16 %v821
      %v915 = vunpack.c.h.b16 %v821
      %v916 = vunpack.c.l.b16 %v822
      %v917 = vunpack.c.h.b16 %v822
      %v918 = vunpack.c.l.b16 %v823
      %v919 = vunpack.c.h.b16 %v823
      %v920 = vunpack.c.l.b16 %v824
      %v921 = vunpack.c.h.b16 %v824
      %v922 = vunpack.c.l.b16 %v825
      %v923 = vunpack.c.h.b16 %v825
      %v924 = vunpack.c.l.b16 %v826
      %v925 = vunpack.c.h.b16 %v826
      %v926 = vpack.c.b16 %v906, %v904
      %v927 = vpack.c.b16 %v907, %v905
      %v928 = vpack.c.b16 %v910, %v908
      %v929 = vpack.c.b16 %v911, %v909
      %v930 = vpack.c.b16 %v914, %v912
      %v931 = vpack.c.b16 %v915, %v913
      %v932 = vpack.c.b16 %v918, %v916
      %v933 = vpack.c.b16 %v919, %v917
      %v934 = vpack.c.b16 %v922, %v920
      %v935 = vpack.c.b16 %v923, %v921
      %v936 = vpack.c.b16 %v924, %v924
      %v937 = vpack.c.b16 %v925, %v925
      %vm944 = vcmask 261120
      %v946 = vsel %vm944, %v927, 0
      %v949 = vsel %vm944, %v929, 0
      %v952 = vsel %vm944, %v931, 0
      %v955 = vsel %vm944, %v933, 0
      %v958 = vsel %vm944, %v935, 0
      %v961 = vsel %vm944, %v937, 0
      %963 = vmatpush.msra.mxu0 %v806
      %964 = vmatpush.msra.mxu0 %v804
      %965 = vmatpush.msra.mxu0 %v802
      %966 = vmatpush.msra.mxu0 %v800
      %967 = vmatpush.msra.mxu0 %v798
      %968 = vmatpush.msra.mxu0 %v796
      %969 = vmatpush.msra.mxu0 %v794
      %970 = vmatpush.msra.mxu0 %v792
      %971 = vmatpush.msra.mxu0 %v790
      %972 = vmatpush.msra.mxu0 %v788
      %973 = vmatpush.msra.mxu0 %v786
      %974 = vmatpush.msra.mxu0 %v784
      %975 = vmatpush.msra.mxu0 %v782
      %976 = vmatpush.msra.mxu0 %v780
      %977 = vmatpush.msra.mxu0 %v778
      %978 = vmatpush.msra.mxu0 %v776
      %979 = vmatmul.bf16.gmra.mxu0 %v926
      %v980 = vpop.f32.mrf.mxu0
      %v981 = vadd.f32 %v841, %v980
      %v982 = vpop.f32.mrf.mxu0
      %v983 = vadd.f32 %v846, %v982
      %984 = vmatmul.bf16.gmra.mxu0 %v928
      %v985 = vpop.f32.mrf.mxu0
      %v986 = vadd.f32 %v851, %v985
      %v987 = vpop.f32.mrf.mxu0
      %v988 = vadd.f32 %v856, %v987
      %989 = vmatmul.bf16.gmra.mxu0 %v930
      %v990 = vpop.f32.mrf.mxu0
      %v991 = vadd.f32 %v861, %v990
      %v992 = vpop.f32.mrf.mxu0
      %v993 = vadd.f32 %v866, %v992
      %994 = vmatmul.bf16.gmra.mxu0 %v932
      %v995 = vpop.f32.mrf.mxu0
      %v996 = vadd.f32 %v871, %v995
      %v997 = vpop.f32.mrf.mxu0
      %v998 = vadd.f32 %v876, %v997
      %999 = vmatmul.bf16.gmra.mxu0 %v934
      %v1000 = vpop.f32.mrf.mxu0
      %v1001 = vadd.f32 %v881, %v1000
      %v1002 = vpop.f32.mrf.mxu0
      %v1003 = vadd.f32 %v886, %v1002
      %1004 = vmatmul.bf16.gmra.mxu0 %v936
      %v1005 = vpop.f32.mrf.mxu0
      %v1006 = vadd.f32 %v891, %v1005
      %v1007 = vpop.f32.mrf.mxu0
      %1008 = vdwg.mxu0
      %1009 = vmatpush.msra.mxu0 0.0
      %1010 = vmatpush.msra.mxu0 0.0
      %1011 = vmatpush.msra.mxu0 0.0
      %1012 = vmatpush.msra.mxu0 0.0
      %1013 = vmatpush.msra.mxu0 0.0
      %1014 = vmatpush.msra.mxu0 0.0
      %1015 = vmatpush.msra.mxu0 0.0
      %1016 = vmatpush.msra.mxu0 0.0
      %1017 = vmatpush.msra.mxu0 0.0
      %1018 = vmatpush.msra.mxu0 0.0
      %1019 = vmatpush.msra.mxu0 0.0
      %1020 = vmatpush.msra.mxu0 0.0
      %1021 = vmatpush.msra.mxu0 %v814
      %1022 = vmatpush.msra.mxu0 %v812
      %1023 = vmatpush.msra.mxu0 %v810
      %1024 = vmatpush.msra.mxu0 %v808
      %1025 = vmatmul.bf16.gmra.mxu0 %v946
      %v1026 = vpop.f32.mrf.mxu0
      %v1027 = vadd.f32 %v981, %v1026
      %v1028 = vpop.f32.mrf.mxu0
      %v1029 = vadd.f32 %v983, %v1028
      %1030 = vmatmul.bf16.gmra.mxu0 %v949
      %v1031 = vpop.f32.mrf.mxu0
      %v1032 = vadd.f32 %v986, %v1031
      %v1033 = vpop.f32.mrf.mxu0
      %v1034 = vadd.f32 %v988, %v1033
      %1035 = vmatmul.bf16.gmra.mxu0 %v952
      %v1036 = vpop.f32.mrf.mxu0
      %v1037 = vadd.f32 %v991, %v1036
      %v1038 = vpop.f32.mrf.mxu0
      %v1039 = vadd.f32 %v993, %v1038
      %1040 = vmatmul.bf16.gmra.mxu0 %v955
      %v1041 = vpop.f32.mrf.mxu0
      %v1042 = vadd.f32 %v996, %v1041
      %v1043 = vpop.f32.mrf.mxu0
      %v1044 = vadd.f32 %v998, %v1043
      %1045 = vmatmul.bf16.gmra.mxu0 %v958
      %v1046 = vpop.f32.mrf.mxu0
      %v1047 = vadd.f32 %v1001, %v1046
      %v1048 = vpop.f32.mrf.mxu0
      %v1049 = vadd.f32 %v1003, %v1048
      %1050 = vmatmul.bf16.gmra.mxu0 %v961
      %v1051 = vpop.f32.mrf.mxu0
      %v1052 = vadd.f32 %v1006, %v1051
      %v1053 = vpop.f32.mrf.mxu0
      %1054 = vdwg.mxu0
      %1055 = vmatpush.msra.mxu0 %v807
      %1056 = vmatpush.msra.mxu0 %v805
      %1057 = vmatpush.msra.mxu0 %v803
      %1058 = vmatpush.msra.mxu0 %v801
      %1059 = vmatpush.msra.mxu0 %v799
      %1060 = vmatpush.msra.mxu0 %v797
      %1061 = vmatpush.msra.mxu0 %v795
      %1062 = vmatpush.msra.mxu0 %v793
      %1063 = vmatpush.msra.mxu0 %v791
      %1064 = vmatpush.msra.mxu0 %v789
      %1065 = vmatpush.msra.mxu0 %v787
      %1066 = vmatpush.msra.mxu0 %v785
      %1067 = vmatpush.msra.mxu0 %v783
      %1068 = vmatpush.msra.mxu0 %v781
      %1069 = vmatpush.msra.mxu0 %v779
      %1070 = vmatpush.msra.mxu0 %v777
      %1071 = vmatmul.bf16.gmra.mxu0 %v926
      %v1072 = vpop.f32.mrf.mxu0
      %v1073 = vadd.f32 %v841, %v1072
      %v1074 = vpop.f32.mrf.mxu0
      %v1075 = vadd.f32 %v846, %v1074
      %1076 = vmatmul.bf16.gmra.mxu0 %v928
      %v1077 = vpop.f32.mrf.mxu0
      %v1078 = vadd.f32 %v851, %v1077
      %v1079 = vpop.f32.mrf.mxu0
      %v1080 = vadd.f32 %v856, %v1079
      %1081 = vmatmul.bf16.gmra.mxu0 %v930
      %v1082 = vpop.f32.mrf.mxu0
      %v1083 = vadd.f32 %v861, %v1082
      %v1084 = vpop.f32.mrf.mxu0
      %v1085 = vadd.f32 %v866, %v1084
      %1086 = vmatmul.bf16.gmra.mxu0 %v932
      %v1087 = vpop.f32.mrf.mxu0
      %v1088 = vadd.f32 %v871, %v1087
      %v1089 = vpop.f32.mrf.mxu0
      %v1090 = vadd.f32 %v876, %v1089
      %1091 = vmatmul.bf16.gmra.mxu0 %v934
      %v1092 = vpop.f32.mrf.mxu0
      %v1093 = vadd.f32 %v881, %v1092
      %v1094 = vpop.f32.mrf.mxu0
      %v1095 = vadd.f32 %v886, %v1094
      %1096 = vmatmul.bf16.gmra.mxu0 %v936
      %v1097 = vpop.f32.mrf.mxu0
      %v1098 = vadd.f32 %v891, %v1097
      %v1099 = vpop.f32.mrf.mxu0
      %1100 = vdwg.mxu0
      %1101 = vmatpush.msra.mxu0 0.0
      %1102 = vmatpush.msra.mxu0 0.0
      %1103 = vmatpush.msra.mxu0 0.0
      %1104 = vmatpush.msra.mxu0 0.0
      %1105 = vmatpush.msra.mxu0 0.0
      %1106 = vmatpush.msra.mxu0 0.0
      %1107 = vmatpush.msra.mxu0 0.0
      %1108 = vmatpush.msra.mxu0 0.0
      %1109 = vmatpush.msra.mxu0 0.0
      %1110 = vmatpush.msra.mxu0 0.0
      %1111 = vmatpush.msra.mxu0 0.0
      %1112 = vmatpush.msra.mxu0 0.0
      %1113 = vmatpush.msra.mxu0 %v815
      %1114 = vmatpush.msra.mxu0 %v813
      %1115 = vmatpush.msra.mxu0 %v811
      %1116 = vmatpush.msra.mxu0 %v809
      %1117 = vmatmul.bf16.gmra.mxu0 %v946
      %v1118 = vpop.f32.mrf.mxu0
      %v1119 = vadd.f32 %v1073, %v1118
      %v1120 = vpop.f32.mrf.mxu0
      %v1121 = vadd.f32 %v1075, %v1120
      %1122 = vmatmul.bf16.gmra.mxu0 %v949
      %v1123 = vpop.f32.mrf.mxu0
      %v1124 = vadd.f32 %v1078, %v1123
      %v1125 = vpop.f32.mrf.mxu0
      %v1126 = vadd.f32 %v1080, %v1125
      %1127 = vmatmul.bf16.gmra.mxu0 %v952
      %v1128 = vpop.f32.mrf.mxu0
      %v1129 = vadd.f32 %v1083, %v1128
      %v1130 = vpop.f32.mrf.mxu0
      %v1131 = vadd.f32 %v1085, %v1130
      %1132 = vmatmul.bf16.gmra.mxu0 %v955
      %v1133 = vpop.f32.mrf.mxu0
      %v1134 = vadd.f32 %v1088, %v1133
      %v1135 = vpop.f32.mrf.mxu0
      %v1136 = vadd.f32 %v1090, %v1135
      %1137 = vmatmul.bf16.gmra.mxu0 %v958
      %v1138 = vpop.f32.mrf.mxu0
      %v1139 = vadd.f32 %v1093, %v1138
      %v1140 = vpop.f32.mrf.mxu0
      %v1141 = vadd.f32 %v1095, %v1140
      %1142 = vmatmul.bf16.gmra.mxu0 %v961
      %v1143 = vpop.f32.mrf.mxu0
      %v1144 = vadd.f32 %v1098, %v1143
      %v1145 = vpop.f32.mrf.mxu0
      %1146 = vdwg.mxu0
      %v1147 = vmax.f32 %v1027, 0.0
      %v1148 = vmax.f32 %v1119, 0.0
      %v1149 = vmax.f32 %v1029, 0.0
      %v1150 = vmax.f32 %v1121, 0.0
      %v1151 = vmax.f32 %v1032, 0.0
      %v1152 = vmax.f32 %v1124, 0.0
      %v1153 = vmax.f32 %v1034, 0.0
      %v1154 = vmax.f32 %v1126, 0.0
      %v1155 = vmax.f32 %v1037, 0.0
      %v1156 = vmax.f32 %v1129, 0.0
      %v1157 = vmax.f32 %v1039, 0.0
      %v1158 = vmax.f32 %v1131, 0.0
      %v1159 = vmax.f32 %v1042, 0.0
      %v1160 = vmax.f32 %v1134, 0.0
      %v1161 = vmax.f32 %v1044, 0.0
      %v1162 = vmax.f32 %v1136, 0.0
      %v1163 = vmax.f32 %v1047, 0.0
      %v1164 = vmax.f32 %v1139, 0.0
      %v1165 = vmax.f32 %v1049, 0.0
      %v1166 = vmax.f32 %v1141, 0.0
      %v1167 = vmax.f32 %v1052, 0.0
      %v1168 = vmax.f32 %v1144, 0.0
      %v1169 = vld [vmem:[%s2] sm:$0xff]
      %v1170 = vld [vmem:[%s2 + $0x8] sm:$0xff]
      %v1171 = vld [vmem:[%s2 + $0x10] sm:$0xff]
      %v1172 = vld [vmem:[%s2 + $0x18] sm:$0xff]
      %v1173 = vld [vmem:[%s2 + $0x20] sm:$0xff]
      %v1174 = vld [vmem:[%s2 + $0x28] sm:$0xff]
      %v1175 = vld [vmem:[%s2 + $0x30] sm:$0xff]
      %v1176 = vld [vmem:[%s2 + $0x38] sm:$0xff]
      %v1177 = vld [vmem:[%s2 + $0x40] sm:$0xff]
      %v1178 = vld [vmem:[%s2 + $0x48] sm:$0xff]
      %v1179 = vld [vmem:[%s2 + $0x50] sm:$0xff]
      %v1180 = vld [vmem:[%s4] sm:$0xff]
      %v1181 = vld [vmem:[%s4 + $0x8] sm:$0xff]
      %v1182 = vld [vmem:[%s4 + $0x10] sm:$0xff]
      %v1183 = vld [vmem:[%s4 + $0x18] sm:$0xff]
      %v1184 = vld [vmem:[%s4 + $0x20] sm:$0xff]
      %v1185 = vld [vmem:[%s4 + $0x28] sm:$0xff]
      %v1186 = vld [vmem:[%s4 + $0x30] sm:$0xff]
      %v1187 = vld [vmem:[%s4 + $0x38] sm:$0xff]
      %v1188 = vld [vmem:[%s4 + $0x40] sm:$0xff]
      %v1189 = vld [vmem:[%s4 + $0x48] sm:$0xff]
      %v1190 = vld [vmem:[%s4 + $0x50] sm:$0xff]
      %1192 = vset.pattern.permute.xlu0 0
      %1193 = vperm.xlu0 %1192, %v1180
      %v1194 = vpop.permute.xlu0 %1193
      %1197 = vset.pattern.permute.xlu0 0
      %1198 = vperm.xlu0 %1197, %v1181
      %v1199 = vpop.permute.xlu0 %1198
      %1202 = vset.pattern.permute.xlu0 0
      %1203 = vperm.xlu0 %1202, %v1182
      %v1204 = vpop.permute.xlu0 %1203
      %1207 = vset.pattern.permute.xlu0 0
      %1208 = vperm.xlu0 %1207, %v1183
      %v1209 = vpop.permute.xlu0 %1208
      %1212 = vset.pattern.permute.xlu0 0
      %1213 = vperm.xlu0 %1212, %v1184
      %v1214 = vpop.permute.xlu0 %1213
      %1217 = vset.pattern.permute.xlu0 0
      %1218 = vperm.xlu0 %1217, %v1185
      %v1219 = vpop.permute.xlu0 %1218
      %1222 = vset.pattern.permute.xlu0 0
      %1223 = vperm.xlu0 %1222, %v1186
      %v1224 = vpop.permute.xlu0 %1223
      %1227 = vset.pattern.permute.xlu0 0
      %1228 = vperm.xlu0 %1227, %v1187
      %v1229 = vpop.permute.xlu0 %1228
      %1232 = vset.pattern.permute.xlu0 0
      %1233 = vperm.xlu0 %1232, %v1188
      %v1234 = vpop.permute.xlu0 %1233
      %1237 = vset.pattern.permute.xlu0 0
      %1238 = vperm.xlu0 %1237, %v1189
      %v1239 = vpop.permute.xlu0 %1238
      %1242 = vset.pattern.permute.xlu0 0
      %1243 = vperm.xlu0 %1242, %v1190
      %v1244 = vpop.permute.xlu0 %1243
      %v1257 = vunpack.c.l.b16 %v1169
      %v1258 = vunpack.c.h.b16 %v1169
      %v1259 = vunpack.c.l.b16 %v1170
      %v1260 = vunpack.c.h.b16 %v1170
      %v1261 = vunpack.c.l.b16 %v1171
      %v1262 = vunpack.c.h.b16 %v1171
      %v1263 = vunpack.c.l.b16 %v1172
      %v1264 = vunpack.c.h.b16 %v1172
      %v1265 = vunpack.c.l.b16 %v1173
      %v1266 = vunpack.c.h.b16 %v1173
      %v1267 = vunpack.c.l.b16 %v1174
      %v1268 = vunpack.c.h.b16 %v1174
      %v1269 = vunpack.c.l.b16 %v1175
      %v1270 = vunpack.c.h.b16 %v1175
      %v1271 = vunpack.c.l.b16 %v1176
      %v1272 = vunpack.c.h.b16 %v1176
      %v1273 = vunpack.c.l.b16 %v1177
      %v1274 = vunpack.c.h.b16 %v1177
      %v1275 = vunpack.c.l.b16 %v1178
      %v1276 = vunpack.c.h.b16 %v1178
      %v1277 = vunpack.c.l.b16 %v1179
      %v1278 = vunpack.c.h.b16 %v1179
      %v1279 = vpack.c.b16 %v1259, %v1257
      %v1280 = vpack.c.b16 %v1260, %v1258
      %v1281 = vpack.c.b16 %v1263, %v1261
      %v1282 = vpack.c.b16 %v1264, %v1262
      %v1283 = vpack.c.b16 %v1267, %v1265
      %v1284 = vpack.c.b16 %v1268, %v1266
      %v1285 = vpack.c.b16 %v1271, %v1269
      %v1286 = vpack.c.b16 %v1272, %v1270
      %v1287 = vpack.c.b16 %v1275, %v1273
      %v1288 = vpack.c.b16 %v1276, %v1274
      %v1289 = vpack.c.b16 %v1277, %v1277
      %v1290 = vpack.c.b16 %v1278, %v1278
      %v1298 = vsel %vm944, %v1280, 0
      %v1301 = vsel %vm944, %v1282, 0
      %v1304 = vsel %vm944, %v1284, 0
      %v1307 = vsel %vm944, %v1286, 0
      %v1310 = vsel %vm944, %v1288, 0
      %v1313 = vsel %vm944, %v1290, 0
      %1315 = vmatpush.msra.mxu0 %v806
      %1316 = vmatpush.msra.mxu0 %v804
      %1317 = vmatpush.msra.mxu0 %v802
      %1318 = vmatpush.msra.mxu0 %v800
      %1319 = vmatpush.msra.mxu0 %v798
      %1320 = vmatpush.msra.mxu0 %v796
      %1321 = vmatpush.msra.mxu0 %v794
      %1322 = vmatpush.msra.mxu0 %v792
      %1323 = vmatpush.msra.mxu0 %v790
      %1324 = vmatpush.msra.mxu0 %v788
      %1325 = vmatpush.msra.mxu0 %v786
      %1326 = vmatpush.msra.mxu0 %v784
      %1327 = vmatpush.msra.mxu0 %v782
      %1328 = vmatpush.msra.mxu0 %v780
      %1329 = vmatpush.msra.mxu0 %v778
      %1330 = vmatpush.msra.mxu0 %v776
      %1331 = vmatmul.bf16.gmra.mxu0 %v1279
      %v1332 = vpop.f32.mrf.mxu0
      %v1333 = vadd.f32 %v1194, %v1332
      %v1334 = vpop.f32.mrf.mxu0
      %v1335 = vadd.f32 %v1199, %v1334
      %1336 = vmatmul.bf16.gmra.mxu0 %v1281
      %v1337 = vpop.f32.mrf.mxu0
      %v1338 = vadd.f32 %v1204, %v1337
      %v1339 = vpop.f32.mrf.mxu0
      %v1340 = vadd.f32 %v1209, %v1339
      %1341 = vmatmul.bf16.gmra.mxu0 %v1283
      %v1342 = vpop.f32.mrf.mxu0
      %v1343 = vadd.f32 %v1214, %v1342
      %v1344 = vpop.f32.mrf.mxu0
      %v1345 = vadd.f32 %v1219, %v1344
      %1346 = vmatmul.bf16.gmra.mxu0 %v1285
      %v1347 = vpop.f32.mrf.mxu0
      %v1348 = vadd.f32 %v1224, %v1347
      %v1349 = vpop.f32.mrf.mxu0
      %v1350 = vadd.f32 %v1229, %v1349
      %1351 = vmatmul.bf16.gmra.mxu0 %v1287
      %v1352 = vpop.f32.mrf.mxu0
      %v1353 = vadd.f32 %v1234, %v1352
      %v1354 = vpop.f32.mrf.mxu0
      %v1355 = vadd.f32 %v1239, %v1354
      %1356 = vmatmul.bf16.gmra.mxu0 %v1289
      %v1357 = vpop.f32.mrf.mxu0
      %v1358 = vadd.f32 %v1244, %v1357
      %v1359 = vpop.f32.mrf.mxu0
      %1360 = vdwg.mxu0
      %1361 = vmatpush.msra.mxu0 0.0
      %1362 = vmatpush.msra.mxu0 0.0
      %1363 = vmatpush.msra.mxu0 0.0
      %1364 = vmatpush.msra.mxu0 0.0
      %1365 = vmatpush.msra.mxu0 0.0
      %1366 = vmatpush.msra.mxu0 0.0
      %1367 = vmatpush.msra.mxu0 0.0
      %1368 = vmatpush.msra.mxu0 0.0
      %1369 = vmatpush.msra.mxu0 0.0
      %1370 = vmatpush.msra.mxu0 0.0
      %1371 = vmatpush.msra.mxu0 0.0
      %1372 = vmatpush.msra.mxu0 0.0
      %1373 = vmatpush.msra.mxu0 %v814
      %1374 = vmatpush.msra.mxu0 %v812
      %1375 = vmatpush.msra.mxu0 %v810
      %1376 = vmatpush.msra.mxu0 %v808
      %1377 = vmatmul.bf16.gmra.mxu0 %v1298
      %v1378 = vpop.f32.mrf.mxu0
      %v1379 = vadd.f32 %v1333, %v1378
      %v1380 = vpop.f32.mrf.mxu0
      %v1381 = vadd.f32 %v1335, %v1380
      %1382 = vmatmul.bf16.gmra.mxu0 %v1301
      %v1383 = vpop.f32.mrf.mxu0
      %v1384 = vadd.f32 %v1338, %v1383
      %v1385 = vpop.f32.mrf.mxu0
      %v1386 = vadd.f32 %v1340, %v1385
      %1387 = vmatmul.bf16.gmra.mxu0 %v1304
      %v1388 = vpop.f32.mrf.mxu0
      %v1389 = vadd.f32 %v1343, %v1388
      %v1390 = vpop.f32.mrf.mxu0
      %v1391 = vadd.f32 %v1345, %v1390
      %1392 = vmatmul.bf16.gmra.mxu0 %v1307
      %v1393 = vpop.f32.mrf.mxu0
      %v1394 = vadd.f32 %v1348, %v1393
      %v1395 = vpop.f32.mrf.mxu0
      %v1396 = vadd.f32 %v1350, %v1395
      %1397 = vmatmul.bf16.gmra.mxu0 %v1310
      %v1398 = vpop.f32.mrf.mxu0
      %v1399 = vadd.f32 %v1353, %v1398
      %v1400 = vpop.f32.mrf.mxu0
      %v1401 = vadd.f32 %v1355, %v1400
      %1402 = vmatmul.bf16.gmra.mxu0 %v1313
      %v1403 = vpop.f32.mrf.mxu0
      %v1404 = vadd.f32 %v1358, %v1403
      %v1405 = vpop.f32.mrf.mxu0
      %1406 = vdwg.mxu0
      %1407 = vmatpush.msra.mxu0 %v807
      %1408 = vmatpush.msra.mxu0 %v805
      %1409 = vmatpush.msra.mxu0 %v803
      %1410 = vmatpush.msra.mxu0 %v801
      %1411 = vmatpush.msra.mxu0 %v799
      %1412 = vmatpush.msra.mxu0 %v797
      %1413 = vmatpush.msra.mxu0 %v795
      %1414 = vmatpush.msra.mxu0 %v793
      %1415 = vmatpush.msra.mxu0 %v791
      %1416 = vmatpush.msra.mxu0 %v789
      %1417 = vmatpush.msra.mxu0 %v787
      %1418 = vmatpush.msra.mxu0 %v785
      %1419 = vmatpush.msra.mxu0 %v783
      %1420 = vmatpush.msra.mxu0 %v781
      %1421 = vmatpush.msra.mxu0 %v779
      %1422 = vmatpush.msra.mxu0 %v777
      %1423 = vmatmul.bf16.gmra.mxu0 %v1279
      %v1424 = vpop.f32.mrf.mxu0
      %v1425 = vadd.f32 %v1194, %v1424
      %v1426 = vpop.f32.mrf.mxu0
      %v1427 = vadd.f32 %v1199, %v1426
      %1428 = vmatmul.bf16.gmra.mxu0 %v1281
      %v1429 = vpop.f32.mrf.mxu0
      %v1430 = vadd.f32 %v1204, %v1429
      %v1431 = vpop.f32.mrf.mxu0
      %v1432 = vadd.f32 %v1209, %v1431
      %1433 = vmatmul.bf16.gmra.mxu0 %v1283
      %v1434 = vpop.f32.mrf.mxu0
      %v1435 = vadd.f32 %v1214, %v1434
      %v1436 = vpop.f32.mrf.mxu0
      %v1437 = vadd.f32 %v1219, %v1436
      %1438 = vmatmul.bf16.gmra.mxu0 %v1285
      %v1439 = vpop.f32.mrf.mxu0
      %v1440 = vadd.f32 %v1224, %v1439
      %v1441 = vpop.f32.mrf.mxu0
      %v1442 = vadd.f32 %v1229, %v1441
      %1443 = vmatmul.bf16.gmra.mxu0 %v1287
      %v1444 = vpop.f32.mrf.mxu0
      %v1445 = vadd.f32 %v1234, %v1444
      %v1446 = vpop.f32.mrf.mxu0
      %v1447 = vadd.f32 %v1239, %v1446
      %1448 = vmatmul.bf16.gmra.mxu0 %v1289
      %v1449 = vpop.f32.mrf.mxu0
      %v1450 = vadd.f32 %v1244, %v1449
      %v1451 = vpop.f32.mrf.mxu0
      %1452 = vdwg.mxu0
      %1453 = vmatpush.msra.mxu0 0.0
      %1454 = vmatpush.msra.mxu0 0.0
      %1455 = vmatpush.msra.mxu0 0.0
      %1456 = vmatpush.msra.mxu0 0.0
      %1457 = vmatpush.msra.mxu0 0.0
      %1458 = vmatpush.msra.mxu0 0.0
      %1459 = vmatpush.msra.mxu0 0.0
      %1460 = vmatpush.msra.mxu0 0.0
      %1461 = vmatpush.msra.mxu0 0.0
      %1462 = vmatpush.msra.mxu0 0.0
      %1463 = vmatpush.msra.mxu0 0.0
      %1464 = vmatpush.msra.mxu0 0.0
      %1465 = vmatpush.msra.mxu0 %v815
      %1466 = vmatpush.msra.mxu0 %v813
      %1467 = vmatpush.msra.mxu0 %v811
      %1468 = vmatpush.msra.mxu0 %v809
      %1469 = vmatmul.bf16.gmra.mxu0 %v1298
      %v1470 = vpop.f32.mrf.mxu0
      %v1471 = vadd.f32 %v1425, %v1470
      %v1472 = vpop.f32.mrf.mxu0
      %v1473 = vadd.f32 %v1427, %v1472
      %1474 = vmatmul.bf16.gmra.mxu0 %v1301
      %v1475 = vpop.f32.mrf.mxu0
      %v1476 = vadd.f32 %v1430, %v1475
      %v1477 = vpop.f32.mrf.mxu0
      %v1478 = vadd.f32 %v1432, %v1477
      %1479 = vmatmul.bf16.gmra.mxu0 %v1304
      %v1480 = vpop.f32.mrf.mxu0
      %v1481 = vadd.f32 %v1435, %v1480
      %v1482 = vpop.f32.mrf.mxu0
      %v1483 = vadd.f32 %v1437, %v1482
      %1484 = vmatmul.bf16.gmra.mxu0 %v1307
      %v1485 = vpop.f32.mrf.mxu0
      %v1486 = vadd.f32 %v1440, %v1485
      %v1487 = vpop.f32.mrf.mxu0
      %v1488 = vadd.f32 %v1442, %v1487
      %1489 = vmatmul.bf16.gmra.mxu0 %v1310
      %v1490 = vpop.f32.mrf.mxu0
      %v1491 = vadd.f32 %v1445, %v1490
      %v1492 = vpop.f32.mrf.mxu0
      %v1493 = vadd.f32 %v1447, %v1492
      %1494 = vmatmul.bf16.gmra.mxu0 %v1313
      %v1495 = vpop.f32.mrf.mxu0
      %v1496 = vadd.f32 %v1450, %v1495
      %v1497 = vpop.f32.mrf.mxu0
      %1498 = vdwg.mxu0
      %v1499 = vmax.f32 %v1379, 0.0
      %v1500 = vmax.f32 %v1471, 0.0
      %v1501 = vmax.f32 %v1381, 0.0
      %v1502 = vmax.f32 %v1473, 0.0
      %v1503 = vmax.f32 %v1384, 0.0
      %v1504 = vmax.f32 %v1476, 0.0
      %v1505 = vmax.f32 %v1386, 0.0
      %v1506 = vmax.f32 %v1478, 0.0
      %v1507 = vmax.f32 %v1389, 0.0
      %v1508 = vmax.f32 %v1481, 0.0
      %v1509 = vmax.f32 %v1391, 0.0
      %v1510 = vmax.f32 %v1483, 0.0
      %v1511 = vmax.f32 %v1394, 0.0
      %v1512 = vmax.f32 %v1486, 0.0
      %v1513 = vmax.f32 %v1396, 0.0
      %v1514 = vmax.f32 %v1488, 0.0
      %v1515 = vmax.f32 %v1399, 0.0
      %v1516 = vmax.f32 %v1491, 0.0
      %v1517 = vmax.f32 %v1401, 0.0
      %v1518 = vmax.f32 %v1493, 0.0
      %v1519 = vmax.f32 %v1404, 0.0
      %v1520 = vmax.f32 %v1496, 0.0
      %v1521 = vmax.f32 %v1147, %v1499
      %v1522 = vmax.f32 %v1148, %v1500
      %v1523 = vmax.f32 %v1149, %v1501
      %v1524 = vmax.f32 %v1150, %v1502
      %v1525 = vmax.f32 %v1151, %v1503
      %v1526 = vmax.f32 %v1152, %v1504
      %v1527 = vmax.f32 %v1153, %v1505
      %v1528 = vmax.f32 %v1154, %v1506
      %v1529 = vmax.f32 %v1155, %v1507
      %v1530 = vmax.f32 %v1156, %v1508
      %v1531 = vmax.f32 %v1157, %v1509
      %v1532 = vmax.f32 %v1158, %v1510
      %v1533 = vmax.f32 %v1159, %v1511
      %v1534 = vmax.f32 %v1160, %v1512
      %v1535 = vmax.f32 %v1161, %v1513
      %v1536 = vmax.f32 %v1162, %v1514
      %v1537 = vmax.f32 %v1163, %v1515
      %v1538 = vmax.f32 %v1164, %v1516
      %v1539 = vmax.f32 %v1165, %v1517
      %v1540 = vmax.f32 %v1166, %v1518
      %v1541 = vmax.f32 %v1167, %v1519
      %v1542 = vmax.f32 %v1168, %v1520
      %v1543 = vld [vmem:[%s5] sm:$0xf]
      %v1544 = vld [vmem:[%s5 + $0x4] sm:$0xf]
      %v1545 = vld [vmem:[%s5 + $0x8] sm:$0xf]
      %v1546 = vld [vmem:[%s5 + $0xc] sm:$0xf]
      %v1547 = vld [vmem:[%s5 + $0x10] sm:$0xf]
      %v1548 = vld [vmem:[%s5 + $0x14] sm:$0xf]
      %v1549 = vld [vmem:[%s5 + $0x18] sm:$0xf]
      %v1550 = vld [vmem:[%s5 + $0x1c] sm:$0xf]
      %v1551 = vld [vmem:[%s5 + $0x20] sm:$0xf]
      %v1552 = vld [vmem:[%s5 + $0x24] sm:$0xf]
      %v1553 = vld [vmem:[%s5 + $0x28] sm:$0xf]
      %v1554 = vld [vmem:[%s5 + $0x2c] sm:$0xf]
      %v1555 = vld [vmem:[%s5 + $0x30] sm:$0xf]
      %v1556 = vld [vmem:[%s5 + $0x34] sm:$0xf]
      %v1557 = vld [vmem:[%s5 + $0x38] sm:$0xf]
      %v1558 = vld [vmem:[%s5 + $0x3c] sm:$0xf]
      %v1559 = vld [vmem:[%s5 + $0x40] sm:$0xf]
      %v1560 = vld [vmem:[%s5 + $0x44] sm:$0xf]
      %v1561 = vld [vmem:[%s5 + $0x48] sm:$0xf]
      %v1562 = vld [vmem:[%s5 + $0x4c] sm:$0xf]
      %v1563 = vld [vmem:[%s5 + $0x50] sm:$0xf]
      %v1564 = vld [vmem:[%s5 + $0x54] sm:$0xf]
      %v1565 = vld [vmem:[%s5 + $0x58] sm:$0xf]
      %v1566 = vld [vmem:[%s5 + $0x5c] sm:$0xf]
      %v1567 = vld [vmem:[%s5 + $0x60] sm:$0xf]
      %v1568 = vld [vmem:[%s5 + $0x64] sm:$0xf]
      %v1569 = vld [vmem:[%s5 + $0x68] sm:$0xf]
      %v1570 = vld [vmem:[%s5 + $0x6c] sm:$0xf]
      %v1599 = vunpack.c.l.b16 %v1543
      %v1600 = vunpack.c.l.b16 %v1544
      %v1601 = vunpack.c.l.b16 %v1545
      %v1602 = vunpack.c.l.b16 %v1546
      %v1603 = vunpack.c.l.b16 %v1547
      %v1604 = vunpack.c.l.b16 %v1548
      %v1605 = vunpack.c.l.b16 %v1549
      %v1606 = vunpack.c.l.b16 %v1550
      %v1607 = vunpack.c.l.b16 %v1551
      %v1608 = vunpack.c.l.b16 %v1552
      %v1609 = vunpack.c.l.b16 %v1553
      %v1610 = vunpack.c.l.b16 %v1554
      %v1611 = vunpack.c.l.b16 %v1555
      %v1612 = vunpack.c.l.b16 %v1556
      %v1613 = vunpack.c.l.b16 %v1557
      %v1614 = vunpack.c.l.b16 %v1558
      %v1615 = vunpack.c.l.b16 %v1559
      %v1616 = vunpack.c.l.b16 %v1560
      %v1617 = vunpack.c.l.b16 %v1561
      %v1618 = vunpack.c.l.b16 %v1562
      %v1619 = vunpack.c.l.b16 %v1563
      %v1620 = vunpack.c.l.b16 %v1564
      %v1621 = vunpack.c.l.b16 %v1565
      %v1622 = vunpack.c.l.b16 %v1566
      %v1623 = vunpack.c.l.b16 %v1567
      %v1624 = vunpack.c.l.b16 %v1568
      %v1625 = vunpack.c.l.b16 %v1569
      %v1626 = vunpack.c.l.b16 %v1570
      %v1627 = vpack.c.b16 %v1600, %v1599
      %v1628 = vpack.c.b16 %v1602, %v1601
      %v1629 = vpack.c.b16 %v1604, %v1603
      %v1630 = vpack.c.b16 %v1606, %v1605
      %v1631 = vpack.c.b16 %v1608, %v1607
      %v1632 = vpack.c.b16 %v1610, %v1609
      %v1633 = vpack.c.b16 %v1612, %v1611
      %v1634 = vpack.c.b16 %v1614, %v1613
      %v1635 = vpack.c.b16 %v1616, %v1615
      %v1636 = vpack.c.b16 %v1618, %v1617
      %v1637 = vpack.c.b16 %v1620, %v1619
      %v1638 = vpack.c.b16 %v1622, %v1621
      %v1639 = vpack.c.b16 %v1624, %v1623
      %v1640 = vpack.c.b16 %v1626, %v1625
      %v1656 = vsel %vm613, %v1522, 0
      %v1659 = vsel %vm613, %v1524, 0
      %v1662 = vsel %vm613, %v1526, 0
      %v1665 = vsel %vm613, %v1528, 0
      %v1668 = vsel %vm613, %v1530, 0
      %v1671 = vsel %vm613, %v1532, 0
      %v1674 = vsel %vm613, %v1534, 0
      %v1677 = vsel %vm613, %v1536, 0
      %v1680 = vsel %vm613, %v1538, 0
      %v1683 = vsel %vm613, %v1540, 0
      %v1686 = vsel %vm613, %v1542, 0
      %1688 = vmatpush.bf16.msra.mxu0 %v1634
      %1689 = vmatpush.bf16.msra.mxu0 %v1633
      %1690 = vmatpush.bf16.msra.mxu0 %v1632
      %1691 = vmatpush.bf16.msra.mxu0 %v1631
      %1692 = vmatpush.bf16.msra.mxu0 %v1630
      %1693 = vmatpush.bf16.msra.mxu0 %v1629
      %1694 = vmatpush.bf16.msra.mxu0 %v1628
      %1695 = vmatpush.bf16.msra.mxu0 %v1627
      %1696 = vmatmul.f32.gmra.mxu0 %v1521
      %v1697 = vpop.f32.mrf.mxu0
      %v1698 = vadd.f32 0.0, %v1697
      %1699 = vmatmul.f32.gmra.mxu0 %v1523
      %v1700 = vpop.f32.mrf.mxu0
      %v1701 = vadd.f32 0.0, %v1700
      %1702 = vmatmul.f32.gmra.mxu0 %v1525
      %v1703 = vpop.f32.mrf.mxu0
      %v1704 = vadd.f32 0.0, %v1703
      %1705 = vmatmul.f32.gmra.mxu0 %v1527
      %v1706 = vpop.f32.mrf.mxu0
      %v1707 = vadd.f32 0.0, %v1706
      %1708 = vmatmul.f32.gmra.mxu0 %v1529
      %v1709 = vpop.f32.mrf.mxu0
      %v1710 = vadd.f32 0.0, %v1709
      %1711 = vmatmul.f32.gmra.mxu0 %v1531
      %v1712 = vpop.f32.mrf.mxu0
      %v1713 = vadd.f32 0.0, %v1712
      %1714 = vmatmul.f32.gmra.mxu0 %v1533
      %v1715 = vpop.f32.mrf.mxu0
      %v1716 = vadd.f32 0.0, %v1715
      %1717 = vmatmul.f32.gmra.mxu0 %v1535
      %v1718 = vpop.f32.mrf.mxu0
      %v1719 = vadd.f32 0.0, %v1718
      %1720 = vmatmul.f32.gmra.mxu0 %v1537
      %v1721 = vpop.f32.mrf.mxu0
      %v1722 = vadd.f32 0.0, %v1721
      %1723 = vmatmul.f32.gmra.mxu0 %v1539
      %v1724 = vpop.f32.mrf.mxu0
      %v1725 = vadd.f32 0.0, %v1724
      %1726 = vmatmul.f32.gmra.mxu0 %v1541
      %v1727 = vpop.f32.mrf.mxu0
      %v1728 = vadd.f32 0.0, %v1727
      %1729 = vdwg.mxu0
      %1730 = vmatpush.bf16.msra.mxu0 0
      %1731 = vmatpush.bf16.msra.mxu0 0
      %1732 = vmatpush.bf16.msra.mxu0 %v1640
      %1733 = vmatpush.bf16.msra.mxu0 %v1639
      %1734 = vmatpush.bf16.msra.mxu0 %v1638
      %1735 = vmatpush.bf16.msra.mxu0 %v1637
      %1736 = vmatpush.bf16.msra.mxu0 %v1636
      %1737 = vmatpush.bf16.msra.mxu0 %v1635
      %1738 = vmatmul.f32.gmra.mxu0 %v1656
      %v1739 = vpop.f32.mrf.mxu0
      %v1740 = vadd.f32 %v1698, %v1739
      %1741 = vmatmul.f32.gmra.mxu0 %v1659
      %v1742 = vpop.f32.mrf.mxu0
      %v1743 = vadd.f32 %v1701, %v1742
      %1744 = vmatmul.f32.gmra.mxu0 %v1662
      %v1745 = vpop.f32.mrf.mxu0
      %v1746 = vadd.f32 %v1704, %v1745
      %1747 = vmatmul.f32.gmra.mxu0 %v1665
      %v1748 = vpop.f32.mrf.mxu0
      %v1749 = vadd.f32 %v1707, %v1748
      %1750 = vmatmul.f32.gmra.mxu0 %v1668
      %v1751 = vpop.f32.mrf.mxu0
      %v1752 = vadd.f32 %v1710, %v1751
      %1753 = vmatmul.f32.gmra.mxu0 %v1671
      %v1754 = vpop.f32.mrf.mxu0
      %v1755 = vadd.f32 %v1713, %v1754
      %1756 = vmatmul.f32.gmra.mxu0 %v1674
      %v1757 = vpop.f32.mrf.mxu0
      %v1758 = vadd.f32 %v1716, %v1757
      %1759 = vmatmul.f32.gmra.mxu0 %v1677
      %v1760 = vpop.f32.mrf.mxu0
      %v1761 = vadd.f32 %v1719, %v1760
      %1762 = vmatmul.f32.gmra.mxu0 %v1680
      %v1763 = vpop.f32.mrf.mxu0
      %v1764 = vadd.f32 %v1722, %v1763
      %1765 = vmatmul.f32.gmra.mxu0 %v1683
      %v1766 = vpop.f32.mrf.mxu0
      %v1767 = vadd.f32 %v1725, %v1766
      %1768 = vmatmul.f32.gmra.mxu0 %v1686
      %v1769 = vpop.f32.mrf.mxu0
      %v1770 = vadd.f32 %v1728, %v1769
      %1771 = vdwg.mxu0
      %v1772 = vld [vmem:[%s6] sm:$0xf]
      %v1773 = vld [vmem:[%s6 + $0x4] sm:$0xf]
      %v1774 = vld [vmem:[%s6 + $0x8] sm:$0xf]
      %v1775 = vld [vmem:[%s6 + $0xc] sm:$0xf]
      %v1776 = vld [vmem:[%s6 + $0x10] sm:$0xf]
      %v1777 = vld [vmem:[%s6 + $0x14] sm:$0xf]
      %v1778 = vld [vmem:[%s6 + $0x18] sm:$0xf]
      %v1779 = vld [vmem:[%s6 + $0x1c] sm:$0xf]
      %v1780 = vld [vmem:[%s6 + $0x20] sm:$0xf]
      %v1781 = vld [vmem:[%s6 + $0x24] sm:$0xf]
      %v1782 = vld [vmem:[%s6 + $0x28] sm:$0xf]
      %v1783 = vld [vmem:[%s6 + $0x2c] sm:$0xf]
      %v1784 = vld [vmem:[%s6 + $0x30] sm:$0xf]
      %v1785 = vld [vmem:[%s6 + $0x34] sm:$0xf]
      %v1786 = vld [vmem:[%s6 + $0x38] sm:$0xf]
      %v1787 = vld [vmem:[%s6 + $0x3c] sm:$0xf]
      %v1788 = vld [vmem:[%s6 + $0x40] sm:$0xf]
      %v1789 = vld [vmem:[%s6 + $0x44] sm:$0xf]
      %v1790 = vld [vmem:[%s6 + $0x48] sm:$0xf]
      %v1791 = vld [vmem:[%s6 + $0x4c] sm:$0xf]
      %v1792 = vld [vmem:[%s6 + $0x50] sm:$0xf]
      %v1793 = vld [vmem:[%s6 + $0x54] sm:$0xf]
      %v1794 = vld [vmem:[%s6 + $0x58] sm:$0xf]
      %v1795 = vld [vmem:[%s6 + $0x5c] sm:$0xf]
      %v1796 = vld [vmem:[%s6 + $0x60] sm:$0xf]
      %v1797 = vld [vmem:[%s6 + $0x64] sm:$0xf]
      %v1798 = vld [vmem:[%s6 + $0x68] sm:$0xf]
      %v1799 = vld [vmem:[%s6 + $0x6c] sm:$0xf]
      %v1828 = vunpack.c.l.b16 %v1772
      %v1829 = vunpack.c.l.b16 %v1773
      %v1830 = vunpack.c.l.b16 %v1774
      %v1831 = vunpack.c.l.b16 %v1775
      %v1832 = vunpack.c.l.b16 %v1776
      %v1833 = vunpack.c.l.b16 %v1777
      %v1834 = vunpack.c.l.b16 %v1778
      %v1835 = vunpack.c.l.b16 %v1779
      %v1836 = vunpack.c.l.b16 %v1780
      %v1837 = vunpack.c.l.b16 %v1781
      %v1838 = vunpack.c.l.b16 %v1782
      %v1839 = vunpack.c.l.b16 %v1783
      %v1840 = vunpack.c.l.b16 %v1784
      %v1841 = vunpack.c.l.b16 %v1785
      %v1842 = vunpack.c.l.b16 %v1786
      %v1843 = vunpack.c.l.b16 %v1787
      %v1844 = vunpack.c.l.b16 %v1788
      %v1845 = vunpack.c.l.b16 %v1789
      %v1846 = vunpack.c.l.b16 %v1790
      %v1847 = vunpack.c.l.b16 %v1791
      %v1848 = vunpack.c.l.b16 %v1792
      %v1849 = vunpack.c.l.b16 %v1793
      %v1850 = vunpack.c.l.b16 %v1794
      %v1851 = vunpack.c.l.b16 %v1795
      %v1852 = vunpack.c.l.b16 %v1796
      %v1853 = vunpack.c.l.b16 %v1797
      %v1854 = vunpack.c.l.b16 %v1798
      %v1855 = vunpack.c.l.b16 %v1799
      %v1856 = vpack.c.b16 %v1829, %v1828
      %v1857 = vpack.c.b16 %v1831, %v1830
      %v1858 = vpack.c.b16 %v1833, %v1832
      %v1859 = vpack.c.b16 %v1835, %v1834
      %v1860 = vpack.c.b16 %v1837, %v1836
      %v1861 = vpack.c.b16 %v1839, %v1838
      %v1862 = vpack.c.b16 %v1841, %v1840
      %v1863 = vpack.c.b16 %v1843, %v1842
      %v1864 = vpack.c.b16 %v1845, %v1844
      %v1865 = vpack.c.b16 %v1847, %v1846
      %v1866 = vpack.c.b16 %v1849, %v1848
      %v1867 = vpack.c.b16 %v1851, %v1850
      %v1868 = vpack.c.b16 %v1853, %v1852
      %v1869 = vpack.c.b16 %v1855, %v1854
      %1884 = vmatpush.bf16.msra.mxu0 %v1863
      %1885 = vmatpush.bf16.msra.mxu0 %v1862
      %1886 = vmatpush.bf16.msra.mxu0 %v1861
      %1887 = vmatpush.bf16.msra.mxu0 %v1860
      %1888 = vmatpush.bf16.msra.mxu0 %v1859
      %1889 = vmatpush.bf16.msra.mxu0 %v1858
      %1890 = vmatpush.bf16.msra.mxu0 %v1857
      %1891 = vmatpush.bf16.msra.mxu0 %v1856
      %1892 = vmatmul.f32.gmra.mxu0 %v1521
      %v1893 = vpop.f32.mrf.mxu0
      %v1894 = vadd.f32 0.0, %v1893
      %1895 = vmatmul.f32.gmra.mxu0 %v1523
      %v1896 = vpop.f32.mrf.mxu0
      %v1897 = vadd.f32 0.0, %v1896
      %1898 = vmatmul.f32.gmra.mxu0 %v1525
      %v1899 = vpop.f32.mrf.mxu0
      %v1900 = vadd.f32 0.0, %v1899
      %1901 = vmatmul.f32.gmra.mxu0 %v1527
      %v1902 = vpop.f32.mrf.mxu0
      %v1903 = vadd.f32 0.0, %v1902
      %1904 = vmatmul.f32.gmra.mxu0 %v1529
      %v1905 = vpop.f32.mrf.mxu0
      %v1906 = vadd.f32 0.0, %v1905
      %1907 = vmatmul.f32.gmra.mxu0 %v1531
      %v1908 = vpop.f32.mrf.mxu0
      %v1909 = vadd.f32 0.0, %v1908
      %1910 = vmatmul.f32.gmra.mxu0 %v1533
      %v1911 = vpop.f32.mrf.mxu0
      %v1912 = vadd.f32 0.0, %v1911
      %1913 = vmatmul.f32.gmra.mxu0 %v1535
      %v1914 = vpop.f32.mrf.mxu0
      %v1915 = vadd.f32 0.0, %v1914
      %1916 = vmatmul.f32.gmra.mxu0 %v1537
      %v1917 = vpop.f32.mrf.mxu0
      %v1918 = vadd.f32 0.0, %v1917
      %1919 = vmatmul.f32.gmra.mxu0 %v1539
      %v1920 = vpop.f32.mrf.mxu0
      %v1921 = vadd.f32 0.0, %v1920
      %1922 = vmatmul.f32.gmra.mxu0 %v1541
      %v1923 = vpop.f32.mrf.mxu0
      %v1924 = vadd.f32 0.0, %v1923
      %1925 = vdwg.mxu0
      %1926 = vmatpush.bf16.msra.mxu0 0
      %1927 = vmatpush.bf16.msra.mxu0 0
      %1928 = vmatpush.bf16.msra.mxu0 %v1869
      %1929 = vmatpush.bf16.msra.mxu0 %v1868
      %1930 = vmatpush.bf16.msra.mxu0 %v1867
      %1931 = vmatpush.bf16.msra.mxu0 %v1866
      %1932 = vmatpush.bf16.msra.mxu0 %v1865
      %1933 = vmatpush.bf16.msra.mxu0 %v1864
      %1934 = vmatmul.f32.gmra.mxu0 %v1656
      %v1935 = vpop.f32.mrf.mxu0
      %v1936 = vadd.f32 %v1894, %v1935
      %1937 = vmatmul.f32.gmra.mxu0 %v1659
      %v1938 = vpop.f32.mrf.mxu0
      %v1939 = vadd.f32 %v1897, %v1938
      %1940 = vmatmul.f32.gmra.mxu0 %v1662
      %v1941 = vpop.f32.mrf.mxu0
      %v1942 = vadd.f32 %v1900, %v1941
      %1943 = vmatmul.f32.gmra.mxu0 %v1665
      %v1944 = vpop.f32.mrf.mxu0
      %v1945 = vadd.f32 %v1903, %v1944
      %1946 = vmatmul.f32.gmra.mxu0 %v1668
      %v1947 = vpop.f32.mrf.mxu0
      %v1948 = vadd.f32 %v1906, %v1947
      %1949 = vmatmul.f32.gmra.mxu0 %v1671
      %v1950 = vpop.f32.mrf.mxu0
      %v1951 = vadd.f32 %v1909, %v1950
      %1952 = vmatmul.f32.gmra.mxu0 %v1674
      %v1953 = vpop.f32.mrf.mxu0
      %v1954 = vadd.f32 %v1912, %v1953
      %1955 = vmatmul.f32.gmra.mxu0 %v1677
      %v1956 = vpop.f32.mrf.mxu0
      %v1957 = vadd.f32 %v1915, %v1956
      %1958 = vmatmul.f32.gmra.mxu0 %v1680
      %v1959 = vpop.f32.mrf.mxu0
      %v1960 = vadd.f32 %v1918, %v1959
      %1961 = vmatmul.f32.gmra.mxu0 %v1683
      %v1962 = vpop.f32.mrf.mxu0
      %v1963 = vadd.f32 %v1921, %v1962
      %1964 = vmatmul.f32.gmra.mxu0 %v1686
      %v1965 = vpop.f32.mrf.mxu0
      %v1966 = vadd.f32 %v1924, %v1965
      %1967 = vdwg.mxu0
      %v1968 = vmax.f32 %v1740, %v1936
      %v1969 = vmax.f32 %v1743, %v1939
      %v1970 = vmax.f32 %v1746, %v1942
      %v1971 = vmax.f32 %v1749, %v1945
      %v1972 = vmax.f32 %v1752, %v1948
      %v1973 = vmax.f32 %v1755, %v1951
      %v1974 = vmax.f32 %v1758, %v1954
      %v1975 = vmax.f32 %v1761, %v1957
      %v1976 = vmax.f32 %v1764, %v1960
      %v1977 = vmax.f32 %v1767, %v1963
      %v1978 = vmax.f32 %v1770, %v1966
      %vm1979 = vcmask 654336
      %1980 = vst.msk [vmem:[#allocation3] sm:$0xff] %vm1979, %v1968
      %1981 = vst.msk [vmem:[#allocation3 + $0x8] sm:$0xff] %vm1979, %v1969
      %1982 = vst.msk [vmem:[#allocation3 + $0x10] sm:$0xff] %vm1979, %v1970
      %1983 = vst.msk [vmem:[#allocation3 + $0x18] sm:$0xff] %vm1979, %v1971
      %1984 = vst.msk [vmem:[#allocation3 + $0x20] sm:$0xff] %vm1979, %v1972
      %1985 = vst.msk [vmem:[#allocation3 + $0x28] sm:$0xff] %vm1979, %v1973
      %1986 = vst.msk [vmem:[#allocation3 + $0x30] sm:$0xff] %vm1979, %v1974
      %1987 = vst.msk [vmem:[#allocation3 + $0x38] sm:$0xff] %vm1979, %v1975
      %1988 = vst.msk [vmem:[#allocation3 + $0x40] sm:$0xff] %vm1979, %v1976
      %1989 = vst.msk [vmem:[#allocation3 + $0x48] sm:$0xff] %vm1979, %v1977
      %1990 = vst.msk [vmem:[#allocation3 + $0x50] sm:$0xff] %vm1979, %v1978
      %2002 = vrot.lane.b32.xlu0 %v1968, 120
      %v2003 = vpop.permute.xlu0 %2002
      %2004 = vrot.lane.b32.xlu0 %v1969, 120
      %v2005 = vpop.permute.xlu0 %2004
      %2006 = vrot.lane.b32.xlu0 %v1970, 120
      %v2007 = vpop.permute.xlu0 %2006
      %2008 = vrot.lane.b32.xlu0 %v1971, 120
      %v2009 = vpop.permute.xlu0 %2008
      %2010 = vrot.lane.b32.xlu0 %v1972, 120
      %v2011 = vpop.permute.xlu0 %2010
      %2012 = vrot.lane.b32.xlu0 %v1973, 120
      %v2013 = vpop.permute.xlu0 %2012
      %2014 = vrot.lane.b32.xlu0 %v1974, 120
      %v2015 = vpop.permute.xlu0 %2014
      %2016 = vrot.lane.b32.xlu0 %v1975, 120
      %v2017 = vpop.permute.xlu0 %2016
      %2018 = vrot.lane.b32.xlu0 %v1976, 120
      %v2019 = vpop.permute.xlu0 %2018
      %2020 = vrot.lane.b32.xlu0 %v1977, 120
      %v2021 = vpop.permute.xlu0 %2020
      %2022 = vrot.lane.b32.xlu0 %v1978, 120
      %v2023 = vpop.permute.xlu0 %2022
      %2035 = vst.msk [vmem:[#allocation3 + $0x58] sm:$0xff] %vm1979, %v2003
      %2036 = vst.msk [vmem:[#allocation3 + $0x60] sm:$0xff] %vm1979, %v2005
      %2037 = vst.msk [vmem:[#allocation3 + $0x68] sm:$0xff] %vm1979, %v2007
      %2038 = vst.msk [vmem:[#allocation3 + $0x70] sm:$0xff] %vm1979, %v2009
      %2039 = vst.msk [vmem:[#allocation3 + $0x78] sm:$0xff] %vm1979, %v2011
      %2040 = vst.msk [vmem:[#allocation3 + $0x80] sm:$0xff] %vm1979, %v2013
      %2041 = vst.msk [vmem:[#allocation3 + $0x88] sm:$0xff] %vm1979, %v2015
      %2042 = vst.msk [vmem:[#allocation3 + $0x90] sm:$0xff] %vm1979, %v2017
      %2043 = vst.msk [vmem:[#allocation3 + $0x98] sm:$0xff] %vm1979, %v2019
      %2044 = vst.msk [vmem:[#allocation3 + $0xa0] sm:$0xff] %vm1979, %v2021
      %2045 = vst.msk [vmem:[#allocation3 + $0xa8] sm:$0xff] %vm1979, %v2023
      %2046 = vrot.lane.b32.xlu0 %v1968, 112
      %v2047 = vpop.permute.xlu0 %2046
      %2048 = vrot.lane.b32.xlu0 %v1969, 112
      %v2049 = vpop.permute.xlu0 %2048
      %2050 = vrot.lane.b32.xlu0 %v1970, 112
      %v2051 = vpop.permute.xlu0 %2050
      %2052 = vrot.lane.b32.xlu0 %v1971, 112
      %v2053 = vpop.permute.xlu0 %2052
      %2054 = vrot.lane.b32.xlu0 %v1972, 112
      %v2055 = vpop.permute.xlu0 %2054
      %2056 = vrot.lane.b32.xlu0 %v1973, 112
      %v2057 = vpop.permute.xlu0 %2056
      %2058 = vrot.lane.b32.xlu0 %v1974, 112
      %v2059 = vpop.permute.xlu0 %2058
      %2060 = vrot.lane.b32.xlu0 %v1975, 112
      %v2061 = vpop.permute.xlu0 %2060
      %2062 = vrot.lane.b32.xlu0 %v1976, 112
      %v2063 = vpop.permute.xlu0 %2062
      %2064 = vrot.lane.b32.xlu0 %v1977, 112
      %v2065 = vpop.permute.xlu0 %2064
      %2066 = vrot.lane.b32.xlu0 %v1978, 112
      %v2067 = vpop.permute.xlu0 %2066
      %2079 = vst.msk [vmem:[#allocation3 + $0xb0] sm:$0xff] %vm1979, %v2047
      %2080 = vst.msk [vmem:[#allocation3 + $0xb8] sm:$0xff] %vm1979, %v2049
      %2081 = vst.msk [vmem:[#allocation3 + $0xc0] sm:$0xff] %vm1979, %v2051
      %2082 = vst.msk [vmem:[#allocation3 + $0xc8] sm:$0xff] %vm1979, %v2053
      %2083 = vst.msk [vmem:[#allocation3 + $0xd0] sm:$0xff] %vm1979, %v2055
      %2084 = vst.msk [vmem:[#allocation3 + $0xd8] sm:$0xff] %vm1979, %v2057
      %2085 = vst.msk [vmem:[#allocation3 + $0xe0] sm:$0xff] %vm1979, %v2059
      %2086 = vst.msk [vmem:[#allocation3 + $0xe8] sm:$0xff] %vm1979, %v2061
      %2087 = vst.msk [vmem:[#allocation3 + $0xf0] sm:$0xff] %vm1979, %v2063
      %2088 = vst.msk [vmem:[#allocation3 + $0xf8] sm:$0xff] %vm1979, %v2065
      %2089 = vst.msk [vmem:[#allocation3 + $0x100] sm:$0xff] %vm1979, %v2067
      %2090 = vrot.lane.b32.xlu0 %v1968, 104
      %v2091 = vpop.permute.xlu0 %2090
      %2092 = vrot.lane.b32.xlu0 %v1969, 104
      %v2093 = vpop.permute.xlu0 %2092
      %2094 = vrot.lane.b32.xlu0 %v1970, 104
      %v2095 = vpop.permute.xlu0 %2094
      %2096 = vrot.lane.b32.xlu0 %v1971, 104
      %v2097 = vpop.permute.xlu0 %2096
      %2098 = vrot.lane.b32.xlu0 %v1972, 104
      %v2099 = vpop.permute.xlu0 %2098
      %2100 = vrot.lane.b32.xlu0 %v1973, 104
      %v2101 = vpop.permute.xlu0 %2100
      %2102 = vrot.lane.b32.xlu0 %v1974, 104
      %v2103 = vpop.permute.xlu0 %2102
      %2104 = vrot.lane.b32.xlu0 %v1975, 104
      %v2105 = vpop.permute.xlu0 %2104
      %2106 = vrot.lane.b32.xlu0 %v1976, 104
      %v2107 = vpop.permute.xlu0 %2106
      %2108 = vrot.lane.b32.xlu0 %v1977, 104
      %v2109 = vpop.permute.xlu0 %2108
      %2110 = vrot.lane.b32.xlu0 %v1978, 104
      %v2111 = vpop.permute.xlu0 %2110
      %2123 = vst.msk [vmem:[#allocation3 + $0x108] sm:$0xff] %vm1979, %v2091
      %2124 = vst.msk [vmem:[#allocation3 + $0x110] sm:$0xff] %vm1979, %v2093
      %2125 = vst.msk [vmem:[#allocation3 + $0x118] sm:$0xff] %vm1979, %v2095
      %2126 = vst.msk [vmem:[#allocation3 + $0x120] sm:$0xff] %vm1979, %v2097
      %2127 = vst.msk [vmem:[#allocation3 + $0x128] sm:$0xff] %vm1979, %v2099
      %2128 = vst.msk [vmem:[#allocation3 + $0x130] sm:$0xff] %vm1979, %v2101
      %2129 = vst.msk [vmem:[#allocation3 + $0x138] sm:$0xff] %vm1979, %v2103
      %2130 = vst.msk [vmem:[#allocation3 + $0x140] sm:$0xff] %vm1979, %v2105
      %2131 = vst.msk [vmem:[#allocation3 + $0x148] sm:$0xff] %vm1979, %v2107
      %2132 = vst.msk [vmem:[#allocation3 + $0x150] sm:$0xff] %vm1979, %v2109
      %2133 = vst.msk [vmem:[#allocation3 + $0x158] sm:$0xff] %vm1979, %v2111
      %2134 = vrot.lane.b32.xlu0 %v1968, 96
      %v2135 = vpop.permute.xlu0 %2134
      %2136 = vrot.lane.b32.xlu0 %v1969, 96
      %v2137 = vpop.permute.xlu0 %2136
      %2138 = vrot.lane.b32.xlu0 %v1970, 96
      %v2139 = vpop.permute.xlu0 %2138
      %2140 = vrot.lane.b32.xlu0 %v1971, 96
      %v2141 = vpop.permute.xlu0 %2140
      %2142 = vrot.lane.b32.xlu0 %v1972, 96
      %v2143 = vpop.permute.xlu0 %2142
      %2144 = vrot.lane.b32.xlu0 %v1973, 96
      %v2145 = vpop.permute.xlu0 %2144
      %2146 = vrot.lane.b32.xlu0 %v1974, 96
      %v2147 = vpop.permute.xlu0 %2146
      %2148 = vrot.lane.b32.xlu0 %v1975, 96
      %v2149 = vpop.permute.xlu0 %2148
      %2150 = vrot.lane.b32.xlu0 %v1976, 96
      %v2151 = vpop.permute.xlu0 %2150
      %2152 = vrot.lane.b32.xlu0 %v1977, 96
      %v2153 = vpop.permute.xlu0 %2152
      %2154 = vrot.lane.b32.xlu0 %v1978, 96
      %v2155 = vpop.permute.xlu0 %2154
      %2167 = vst.msk [vmem:[#allocation3 + $0x160] sm:$0xff] %vm1979, %v2135
      %2168 = vst.msk [vmem:[#allocation3 + $0x168] sm:$0xff] %vm1979, %v2137
      %2169 = vst.msk [vmem:[#allocation3 + $0x170] sm:$0xff] %vm1979, %v2139
      %2170 = vst.msk [vmem:[#allocation3 + $0x178] sm:$0xff] %vm1979, %v2141
      %2171 = vst.msk [vmem:[#allocation3 + $0x180] sm:$0xff] %vm1979, %v2143
      %2172 = vst.msk [vmem:[#allocation3 + $0x188] sm:$0xff] %vm1979, %v2145
      %2173 = vst.msk [vmem:[#allocation3 + $0x190] sm:$0xff] %vm1979, %v2147
      %2174 = vst.msk [vmem:[#allocation3 + $0x198] sm:$0xff] %vm1979, %v2149
      %2175 = vst.msk [vmem:[#allocation3 + $0x1a0] sm:$0xff] %vm1979, %v2151
      %2176 = vst.msk [vmem:[#allocation3 + $0x1a8] sm:$0xff] %vm1979, %v2153
      %2177 = vst.msk [vmem:[#allocation3 + $0x1b0] sm:$0xff] %vm1979, %v2155
      %v2178 = vld [vmem:[#allocation3] sm:$0xff]
      %v2179 = vld [vmem:[#allocation3 + $0x8] sm:$0xff]
      %v2180 = vld [vmem:[#allocation3 + $0x10] sm:$0xff]
      %v2181 = vld [vmem:[#allocation3 + $0x18] sm:$0xff]
      %v2182 = vld [vmem:[#allocation3 + $0x20] sm:$0xff]
      %v2183 = vld [vmem:[#allocation3 + $0x28] sm:$0xff]
      %v2184 = vld [vmem:[#allocation3 + $0x30] sm:$0xff]
      %v2185 = vld [vmem:[#allocation3 + $0x38] sm:$0xff]
      %v2186 = vld [vmem:[#allocation3 + $0x40] sm:$0xff]
      %v2187 = vld [vmem:[#allocation3 + $0x48] sm:$0xff]
      %v2188 = vld [vmem:[#allocation3 + $0x50] sm:$0xff]
      %v2189 = vld [vmem:[#allocation3 + $0x58] sm:$0xff]
      %v2190 = vld [vmem:[#allocation3 + $0x60] sm:$0xff]
      %v2191 = vld [vmem:[#allocation3 + $0x68] sm:$0xff]
      %v2192 = vld [vmem:[#allocation3 + $0x70] sm:$0xff]
      %v2193 = vld [vmem:[#allocation3 + $0x78] sm:$0xff]
      %v2194 = vld [vmem:[#allocation3 + $0x80] sm:$0xff]
      %v2195 = vld [vmem:[#allocation3 + $0x88] sm:$0xff]
      %v2196 = vld [vmem:[#allocation3 + $0x90] sm:$0xff]
      %v2197 = vld [vmem:[#allocation3 + $0x98] sm:$0xff]
      %v2198 = vld [vmem:[#allocation3 + $0xa0] sm:$0xff]
      %v2199 = vld [vmem:[#allocation3 + $0xa8] sm:$0xff]
      %v2200 = vld [vmem:[#allocation3 + $0xb0] sm:$0xff]
      %v2201 = vld [vmem:[#allocation3 + $0xb8] sm:$0xff]
      %v2202 = vld [vmem:[#allocation3 + $0xc0] sm:$0xff]
      %v2203 = vld [vmem:[#allocation3 + $0xc8] sm:$0xff]
      %v2204 = vld [vmem:[#allocation3 + $0xd0] sm:$0xff]
      %v2205 = vld [vmem:[#allocation3 + $0xd8] sm:$0xff]
      %v2206 = vld [vmem:[#allocation3 + $0xe0] sm:$0xff]
      %v2207 = vld [vmem:[#allocation3 + $0xe8] sm:$0xff]
      %v2208 = vld [vmem:[#allocation3 + $0xf0] sm:$0xff]
      %v2209 = vld [vmem:[#allocation3 + $0xf8] sm:$0xff]
      %v2210 = vld [vmem:[#allocation3 + $0x100] sm:$0xff]
      %v2211 = vld [vmem:[#allocation3 + $0x108] sm:$0xff]
      %v2212 = vld [vmem:[#allocation3 + $0x110] sm:$0xff]
      %v2213 = vld [vmem:[#allocation3 + $0x118] sm:$0xff]
      %v2214 = vld [vmem:[#allocation3 + $0x120] sm:$0xff]
      %v2215 = vld [vmem:[#allocation3 + $0x128] sm:$0xff]
      %v2216 = vld [vmem:[#allocation3 + $0x130] sm:$0xff]
      %v2217 = vld [vmem:[#allocation3 + $0x138] sm:$0xff]
      %v2218 = vld [vmem:[#allocation3 + $0x140] sm:$0xff]
      %v2219 = vld [vmem:[#allocation3 + $0x148] sm:$0xff]
      %v2220 = vld [vmem:[#allocation3 + $0x150] sm:$0xff]
      %v2221 = vld [vmem:[#allocation3 + $0x158] sm:$0xff]
      %v2222 = vld [vmem:[#allocation3 + $0x160] sm:$0xff]
      %v2223 = vld [vmem:[#allocation3 + $0x168] sm:$0xff]
      %v2224 = vld [vmem:[#allocation3 + $0x170] sm:$0xff]
      %v2225 = vld [vmem:[#allocation3 + $0x178] sm:$0xff]
      %v2226 = vld [vmem:[#allocation3 + $0x180] sm:$0xff]
      %v2227 = vld [vmem:[#allocation3 + $0x188] sm:$0xff]
      %v2228 = vld [vmem:[#allocation3 + $0x190] sm:$0xff]
      %v2229 = vld [vmem:[#allocation3 + $0x198] sm:$0xff]
      %v2230 = vld [vmem:[#allocation3 + $0x1a0] sm:$0xff]
      %v2231 = vld [vmem:[#allocation3 + $0x1a8] sm:$0xff]
      %v2232 = vld [vmem:[#allocation3 + $0x1b0] sm:$0xff]
      %v2233 = vld [vmem:[%s7] sm:$0xff]
      %v2234 = vld [vmem:[%s7 + $0x8] sm:$0xff]
      %v2235 = vld [vmem:[%s7 + $0x10] sm:$0xff]
      %v2236 = vld [vmem:[%s7 + $0x18] sm:$0xff]
      %v2237 = vld [vmem:[%s7 + $0x20] sm:$0xff]
      %v2238 = vld [vmem:[%s7 + $0x28] sm:$0xff]
      %v2239 = vld [vmem:[%s7 + $0x30] sm:$0xff]
      %v2240 = vld [vmem:[%s7 + $0x38] sm:$0xff]
      %v2241 = vld [vmem:[%s7 + $0x40] sm:$0xff]
      %v2242 = vld [vmem:[%s7 + $0x48] sm:$0xff]
      %v2243 = vld [vmem:[%s7 + $0x50] sm:$0xff]
      %v2244 = vld [vmem:[%s7 + $0x58] sm:$0xff]
      %v2245 = vld [vmem:[%s7 + $0x60] sm:$0xff]
      %v2246 = vld [vmem:[%s7 + $0x68] sm:$0xff]
      %v2247 = vld [vmem:[%s7 + $0x70] sm:$0xff]
      %v2248 = vld [vmem:[%s7 + $0x78] sm:$0xff]
      %v2249 = vld [vmem:[%s7 + $0x80] sm:$0xff]
      %v2250 = vld [vmem:[%s7 + $0x88] sm:$0xff]
      %v2251 = vld [vmem:[%s7 + $0x90] sm:$0xff]
      %v2252 = vld [vmem:[%s7 + $0x98] sm:$0xff]
      %v2253 = vld [vmem:[%s9] sm:$0xff]
      %v2254 = vld [vmem:[%s9 + $0x8] sm:$0xff]
      %v2255 = vld [vmem:[%s9 + $0x10] sm:$0xff]
      %v2256 = vld [vmem:[%s9 + $0x18] sm:$0xff]
      %v2257 = vld [vmem:[%s9 + $0x20] sm:$0xff]
      %v2258 = vld [vmem:[%s9 + $0x28] sm:$0xff]
      %v2259 = vld [vmem:[%s9 + $0x30] sm:$0xff]
      %v2260 = vld [vmem:[%s9 + $0x38] sm:$0xff]
      %v2261 = vld [vmem:[%s9 + $0x40] sm:$0xff]
      %v2262 = vld [vmem:[%s9 + $0x48] sm:$0xff]
      %2264 = vset.pattern.permute.xlu0 0
      %2265 = vperm.xlu0 %2264, %v2253
      %v2266 = vpop.permute.xlu0 %2265
      %2269 = vset.pattern.permute.xlu0 0
      %2270 = vperm.xlu0 %2269, %v2254
      %v2271 = vpop.permute.xlu0 %2270
      %2274 = vset.pattern.permute.xlu0 0
      %2275 = vperm.xlu0 %2274, %v2255
      %v2276 = vpop.permute.xlu0 %2275
      %2279 = vset.pattern.permute.xlu0 0
      %2280 = vperm.xlu0 %2279, %v2256
      %v2281 = vpop.permute.xlu0 %2280
      %2284 = vset.pattern.permute.xlu0 0
      %2285 = vperm.xlu0 %2284, %v2257
      %v2286 = vpop.permute.xlu0 %2285
      %2289 = vset.pattern.permute.xlu0 0
      %2290 = vperm.xlu0 %2289, %v2258
      %v2291 = vpop.permute.xlu0 %2290
      %2294 = vset.pattern.permute.xlu0 0
      %2295 = vperm.xlu0 %2294, %v2259
      %v2296 = vpop.permute.xlu0 %2295
      %2299 = vset.pattern.permute.xlu0 0
      %2300 = vperm.xlu0 %2299, %v2260
      %v2301 = vpop.permute.xlu0 %2300
      %2304 = vset.pattern.permute.xlu0 0
      %2305 = vperm.xlu0 %2304, %v2261
      %v2306 = vpop.permute.xlu0 %2305
      %2309 = vset.pattern.permute.xlu0 0
      %2310 = vperm.xlu0 %2309, %v2262
      %v2311 = vpop.permute.xlu0 %2310
      %v2333 = vunpack.c.l.b16 %v2233
      %v2334 = vunpack.c.h.b16 %v2233
      %v2335 = vunpack.c.l.b16 %v2234
      %v2336 = vunpack.c.h.b16 %v2234
      %v2337 = vunpack.c.l.b16 %v2235
      %v2338 = vunpack.c.h.b16 %v2235
      %v2339 = vunpack.c.l.b16 %v2236
      %v2340 = vunpack.c.h.b16 %v2236
      %v2341 = vunpack.c.l.b16 %v2237
      %v2342 = vunpack.c.h.b16 %v2237
      %v2343 = vunpack.c.l.b16 %v2238
      %v2344 = vunpack.c.h.b16 %v2238
      %v2345 = vunpack.c.l.b16 %v2239
      %v2346 = vunpack.c.h.b16 %v2239
      %v2347 = vunpack.c.l.b16 %v2240
      %v2348 = vunpack.c.h.b16 %v2240
      %v2349 = vunpack.c.l.b16 %v2241
      %v2350 = vunpack.c.h.b16 %v2241
      %v2351 = vunpack.c.l.b16 %v2242
      %v2352 = vunpack.c.h.b16 %v2242
      %v2353 = vunpack.c.l.b16 %v2243
      %v2354 = vunpack.c.h.b16 %v2243
      %v2355 = vunpack.c.l.b16 %v2244
      %v2356 = vunpack.c.h.b16 %v2244
      %v2357 = vunpack.c.l.b16 %v2245
      %v2358 = vunpack.c.h.b16 %v2245
      %v2359 = vunpack.c.l.b16 %v2246
      %v2360 = vunpack.c.h.b16 %v2246
      %v2361 = vunpack.c.l.b16 %v2247
      %v2362 = vunpack.c.h.b16 %v2247
      %v2363 = vunpack.c.l.b16 %v2248
      %v2364 = vunpack.c.h.b16 %v2248
      %v2365 = vunpack.c.l.b16 %v2249
      %v2366 = vunpack.c.h.b16 %v2249
      %v2367 = vunpack.c.l.b16 %v2250
      %v2368 = vunpack.c.h.b16 %v2250
      %v2369 = vunpack.c.l.b16 %v2251
      %v2370 = vunpack.c.h.b16 %v2251
      %v2371 = vunpack.c.l.b16 %v2252
      %v2372 = vunpack.c.h.b16 %v2252
      %v2373 = vpack.c.b16 %v2337, %v2333
      %v2374 = vpack.c.b16 %v2338, %v2334
      %v2375 = vpack.c.b16 %v2339, %v2335
      %v2376 = vpack.c.b16 %v2340, %v2336
      %v2377 = vpack.c.b16 %v2345, %v2341
      %v2378 = vpack.c.b16 %v2346, %v2342
      %v2379 = vpack.c.b16 %v2347, %v2343
      %v2380 = vpack.c.b16 %v2348, %v2344
      %v2381 = vpack.c.b16 %v2353, %v2349
      %v2382 = vpack.c.b16 %v2354, %v2350
      %v2383 = vpack.c.b16 %v2355, %v2351
      %v2384 = vpack.c.b16 %v2356, %v2352
      %v2385 = vpack.c.b16 %v2361, %v2357
      %v2386 = vpack.c.b16 %v2362, %v2358
      %v2387 = vpack.c.b16 %v2363, %v2359
      %v2388 = vpack.c.b16 %v2364, %v2360
      %v2389 = vpack.c.b16 %v2369, %v2365
      %v2390 = vpack.c.b16 %v2370, %v2366
      %v2391 = vpack.c.b16 %v2371, %v2367
      %v2392 = vpack.c.b16 %v2372, %v2368
      %vm2408 = vcmask 457728
      %v2410 = vsel %vm2408, %v2376, 0
      %v2413 = vsel %vm2408, %v2380, 0
      %v2416 = vsel %vm2408, %v2384, 0
      %v2419 = vsel %vm2408, %v2388, 0
      %v2422 = vsel %vm2408, %v2392, 0
      %2424 = vmatpush.msra.mxu0 %v2193
      %2425 = vmatpush.msra.mxu0 %v2192
      %2426 = vmatpush.msra.mxu0 %v2191
      %2427 = vmatpush.msra.mxu0 %v2190
      %2428 = vmatpush.msra.mxu0 %v2189
      %2429 = vmatpush.msra.mxu0 %v2188
      %2430 = vmatpush.msra.mxu0 %v2187
      %2431 = vmatpush.msra.mxu0 %v2186
      %2432 = vmatpush.msra.mxu0 %v2185
      %2433 = vmatpush.msra.mxu0 %v2184
      %2434 = vmatpush.msra.mxu0 %v2183
      %2435 = vmatpush.msra.mxu0 %v2182
      %2436 = vmatpush.msra.mxu0 %v2181
      %2437 = vmatpush.msra.mxu0 %v2180
      %2438 = vmatpush.msra.mxu0 %v2179
      %2439 = vmatpush.msra.mxu0 %v2178
      %2440 = vmatmul.bf16.gmra.mxu0 %v2373
      %v2441 = vpop.f32.mrf.mxu0
      %v2442 = vadd.f32 %v2266, %v2441
      %v2443 = vpop.f32.mrf.mxu0
      %v2444 = vadd.f32 %v2271, %v2443
      %2445 = vmatmul.bf16.gmra.mxu0 %v2377
      %v2446 = vpop.f32.mrf.mxu0
      %v2447 = vadd.f32 %v2276, %v2446
      %v2448 = vpop.f32.mrf.mxu0
      %v2449 = vadd.f32 %v2281, %v2448
      %2450 = vmatmul.bf16.gmra.mxu0 %v2381
      %v2451 = vpop.f32.mrf.mxu0
      %v2452 = vadd.f32 %v2286, %v2451
      %v2453 = vpop.f32.mrf.mxu0
      %v2454 = vadd.f32 %v2291, %v2453
      %2455 = vmatmul.bf16.gmra.mxu0 %v2385
      %v2456 = vpop.f32.mrf.mxu0
      %v2457 = vadd.f32 %v2296, %v2456
      %v2458 = vpop.f32.mrf.mxu0
      %v2459 = vadd.f32 %v2301, %v2458
      %2460 = vmatmul.bf16.gmra.mxu0 %v2389
      %v2461 = vpop.f32.mrf.mxu0
      %v2462 = vadd.f32 %v2306, %v2461
      %v2463 = vpop.f32.mrf.mxu0
      %v2464 = vadd.f32 %v2311, %v2463
      %2465 = vdwg.mxu0
      %2466 = vmatpush.msra.mxu0 %v2209
      %2467 = vmatpush.msra.mxu0 %v2208
      %2468 = vmatpush.msra.mxu0 %v2207
      %2469 = vmatpush.msra.mxu0 %v2206
      %2470 = vmatpush.msra.mxu0 %v2205
      %2471 = vmatpush.msra.mxu0 %v2204
      %2472 = vmatpush.msra.mxu0 %v2203
      %2473 = vmatpush.msra.mxu0 %v2202
      %2474 = vmatpush.msra.mxu0 %v2201
      %2475 = vmatpush.msra.mxu0 %v2200
      %2476 = vmatpush.msra.mxu0 %v2199
      %2477 = vmatpush.msra.mxu0 %v2198
      %2478 = vmatpush.msra.mxu0 %v2197
      %2479 = vmatpush.msra.mxu0 %v2196
      %2480 = vmatpush.msra.mxu0 %v2195
      %2481 = vmatpush.msra.mxu0 %v2194
      %2482 = vmatmul.bf16.gmra.mxu0 %v2374
      %v2483 = vpop.f32.mrf.mxu0
      %v2484 = vadd.f32 %v2442, %v2483
      %v2485 = vpop.f32.mrf.mxu0
      %v2486 = vadd.f32 %v2444, %v2485
      %2487 = vmatmul.bf16.gmra.mxu0 %v2378
      %v2488 = vpop.f32.mrf.mxu0
      %v2489 = vadd.f32 %v2447, %v2488
      %v2490 = vpop.f32.mrf.mxu0
      %v2491 = vadd.f32 %v2449, %v2490
      %2492 = vmatmul.bf16.gmra.mxu0 %v2382
      %v2493 = vpop.f32.mrf.mxu0
      %v2494 = vadd.f32 %v2452, %v2493
      %v2495 = vpop.f32.mrf.mxu0
      %v2496 = vadd.f32 %v2454, %v2495
      %2497 = vmatmul.bf16.gmra.mxu0 %v2386
      %v2498 = vpop.f32.mrf.mxu0
      %v2499 = vadd.f32 %v2457, %v2498
      %v2500 = vpop.f32.mrf.mxu0
      %v2501 = vadd.f32 %v2459, %v2500
      %2502 = vmatmul.bf16.gmra.mxu0 %v2390
      %v2503 = vpop.f32.mrf.mxu0
      %v2504 = vadd.f32 %v2462, %v2503
      %v2505 = vpop.f32.mrf.mxu0
      %v2506 = vadd.f32 %v2464, %v2505
      %2507 = vdwg.mxu0
      %2508 = vmatpush.msra.mxu0 %v2225
      %2509 = vmatpush.msra.mxu0 %v2224
      %2510 = vmatpush.msra.mxu0 %v2223
      %2511 = vmatpush.msra.mxu0 %v2222
      %2512 = vmatpush.msra.mxu0 %v2221
      %2513 = vmatpush.msra.mxu0 %v2220
      %2514 = vmatpush.msra.mxu0 %v2219
      %2515 = vmatpush.msra.mxu0 %v2218
      %2516 = vmatpush.msra.mxu0 %v2217
      %2517 = vmatpush.msra.mxu0 %v2216
      %2518 = vmatpush.msra.mxu0 %v2215
      %2519 = vmatpush.msra.mxu0 %v2214
      %2520 = vmatpush.msra.mxu0 %v2213
      %2521 = vmatpush.msra.mxu0 %v2212
      %2522 = vmatpush.msra.mxu0 %v2211
      %2523 = vmatpush.msra.mxu0 %v2210
      %2524 = vmatmul.bf16.gmra.mxu0 %v2375
      %v2525 = vpop.f32.mrf.mxu0
      %v2526 = vadd.f32 %v2484, %v2525
      %v2527 = vpop.f32.mrf.mxu0
      %v2528 = vadd.f32 %v2486, %v2527
      %2529 = vmatmul.bf16.gmra.mxu0 %v2379
      %v2530 = vpop.f32.mrf.mxu0
      %v2531 = vadd.f32 %v2489, %v2530
      %v2532 = vpop.f32.mrf.mxu0
      %v2533 = vadd.f32 %v2491, %v2532
      %2534 = vmatmul.bf16.gmra.mxu0 %v2383
      %v2535 = vpop.f32.mrf.mxu0
      %v2536 = vadd.f32 %v2494, %v2535
      %v2537 = vpop.f32.mrf.mxu0
      %v2538 = vadd.f32 %v2496, %v2537
      %2539 = vmatmul.bf16.gmra.mxu0 %v2387
      %v2540 = vpop.f32.mrf.mxu0
      %v2541 = vadd.f32 %v2499, %v2540
      %v2542 = vpop.f32.mrf.mxu0
      %v2543 = vadd.f32 %v2501, %v2542
      %2544 = vmatmul.bf16.gmra.mxu0 %v2391
      %v2545 = vpop.f32.mrf.mxu0
      %v2546 = vadd.f32 %v2504, %v2545
      %v2547 = vpop.f32.mrf.mxu0
      %v2548 = vadd.f32 %v2506, %v2547
      %2549 = vdwg.mxu0
      %2550 = vmatpush.msra.mxu0 0.0
      %2551 = vmatpush.msra.mxu0 0.0
      %2552 = vmatpush.msra.mxu0 0.0
      %2553 = vmatpush.msra.mxu0 0.0
      %2554 = vmatpush.msra.mxu0 0.0
      %2555 = vmatpush.msra.mxu0 0.0
      %2556 = vmatpush.msra.mxu0 0.0
      %2557 = vmatpush.msra.mxu0 0.0
      %2558 = vmatpush.msra.mxu0 0.0
      %2559 = vmatpush.msra.mxu0 %v2232
      %2560 = vmatpush.msra.mxu0 %v2231
      %2561 = vmatpush.msra.mxu0 %v2230
      %2562 = vmatpush.msra.mxu0 %v2229
      %2563 = vmatpush.msra.mxu0 %v2228
      %2564 = vmatpush.msra.mxu0 %v2227
      %2565 = vmatpush.msra.mxu0 %v2226
      %2566 = vmatmul.bf16.gmra.mxu0 %v2410
      %v2567 = vpop.f32.mrf.mxu0
      %v2568 = vadd.f32 %v2526, %v2567
      %v2569 = vpop.f32.mrf.mxu0
      %v2570 = vadd.f32 %v2528, %v2569
      %2571 = vmatmul.bf16.gmra.mxu0 %v2413
      %v2572 = vpop.f32.mrf.mxu0
      %v2573 = vadd.f32 %v2531, %v2572
      %v2574 = vpop.f32.mrf.mxu0
      %v2575 = vadd.f32 %v2533, %v2574
      %2576 = vmatmul.bf16.gmra.mxu0 %v2416
      %v2577 = vpop.f32.mrf.mxu0
      %v2578 = vadd.f32 %v2536, %v2577
      %v2579 = vpop.f32.mrf.mxu0
      %v2580 = vadd.f32 %v2538, %v2579
      %2581 = vmatmul.bf16.gmra.mxu0 %v2419
      %v2582 = vpop.f32.mrf.mxu0
      %v2583 = vadd.f32 %v2541, %v2582
      %v2584 = vpop.f32.mrf.mxu0
      %v2585 = vadd.f32 %v2543, %v2584
      %2586 = vmatmul.bf16.gmra.mxu0 %v2422
      %v2587 = vpop.f32.mrf.mxu0
      %v2588 = vadd.f32 %v2546, %v2587
      %v2589 = vpop.f32.mrf.mxu0
      %v2590 = vadd.f32 %v2548, %v2589
      %2591 = vdwg.mxu0
      %v2592 = vmax.f32 %v2568, 0.0
      %v2593 = vmax.f32 %v2570, 0.0
      %v2594 = vmax.f32 %v2573, 0.0
      %v2595 = vmax.f32 %v2575, 0.0
      %v2596 = vmax.f32 %v2578, 0.0
      %v2597 = vmax.f32 %v2580, 0.0
      %v2598 = vmax.f32 %v2583, 0.0
      %v2599 = vmax.f32 %v2585, 0.0
      %v2600 = vmax.f32 %v2588, 0.0
      %v2601 = vmax.f32 %v2590, 0.0
      %v2602 = vld [vmem:[%s8] sm:$0xff]
      %v2603 = vld [vmem:[%s8 + $0x8] sm:$0xff]
      %v2604 = vld [vmem:[%s8 + $0x10] sm:$0xff]
      %v2605 = vld [vmem:[%s8 + $0x18] sm:$0xff]
      %v2606 = vld [vmem:[%s8 + $0x20] sm:$0xff]
      %v2607 = vld [vmem:[%s8 + $0x28] sm:$0xff]
      %v2608 = vld [vmem:[%s8 + $0x30] sm:$0xff]
      %v2609 = vld [vmem:[%s8 + $0x38] sm:$0xff]
      %v2610 = vld [vmem:[%s8 + $0x40] sm:$0xff]
      %v2611 = vld [vmem:[%s8 + $0x48] sm:$0xff]
      %v2612 = vld [vmem:[%s8 + $0x50] sm:$0xff]
      %v2613 = vld [vmem:[%s8 + $0x58] sm:$0xff]
      %v2614 = vld [vmem:[%s8 + $0x60] sm:$0xff]
      %v2615 = vld [vmem:[%s8 + $0x68] sm:$0xff]
      %v2616 = vld [vmem:[%s8 + $0x70] sm:$0xff]
      %v2617 = vld [vmem:[%s8 + $0x78] sm:$0xff]
      %v2618 = vld [vmem:[%s8 + $0x80] sm:$0xff]
      %v2619 = vld [vmem:[%s8 + $0x88] sm:$0xff]
      %v2620 = vld [vmem:[%s8 + $0x90] sm:$0xff]
      %v2621 = vld [vmem:[%s8 + $0x98] sm:$0xff]
      %v2622 = vld [vmem:[%s10] sm:$0xff]
      %v2623 = vld [vmem:[%s10 + $0x8] sm:$0xff]
      %v2624 = vld [vmem:[%s10 + $0x10] sm:$0xff]
      %v2625 = vld [vmem:[%s10 + $0x18] sm:$0xff]
      %v2626 = vld [vmem:[%s10 + $0x20] sm:$0xff]
      %v2627 = vld [vmem:[%s10 + $0x28] sm:$0xff]
      %v2628 = vld [vmem:[%s10 + $0x30] sm:$0xff]
      %v2629 = vld [vmem:[%s10 + $0x38] sm:$0xff]
      %v2630 = vld [vmem:[%s10 + $0x40] sm:$0xff]
      %v2631 = vld [vmem:[%s10 + $0x48] sm:$0xff]
      %2633 = vset.pattern.permute.xlu0 0
      %2634 = vperm.xlu0 %2633, %v2622
      %v2635 = vpop.permute.xlu0 %2634
      %2638 = vset.pattern.permute.xlu0 0
      %2639 = vperm.xlu0 %2638, %v2623
      %v2640 = vpop.permute.xlu0 %2639
      %2643 = vset.pattern.permute.xlu0 0
      %2644 = vperm.xlu0 %2643, %v2624
      %v2645 = vpop.permute.xlu0 %2644
      %2648 = vset.pattern.permute.xlu0 0
      %2649 = vperm.xlu0 %2648, %v2625
      %v2650 = vpop.permute.xlu0 %2649
      %2653 = vset.pattern.permute.xlu0 0
      %2654 = vperm.xlu0 %2653, %v2626
      %v2655 = vpop.permute.xlu0 %2654
      %2658 = vset.pattern.permute.xlu0 0
      %2659 = vperm.xlu0 %2658, %v2627
      %v2660 = vpop.permute.xlu0 %2659
      %2663 = vset.pattern.permute.xlu0 0
      %2664 = vperm.xlu0 %2663, %v2628
      %v2665 = vpop.permute.xlu0 %2664
      %2668 = vset.pattern.permute.xlu0 0
      %2669 = vperm.xlu0 %2668, %v2629
      %v2670 = vpop.permute.xlu0 %2669
      %2673 = vset.pattern.permute.xlu0 0
      %2674 = vperm.xlu0 %2673, %v2630
      %v2675 = vpop.permute.xlu0 %2674
      %2678 = vset.pattern.permute.xlu0 0
      %2679 = vperm.xlu0 %2678, %v2631
      %v2680 = vpop.permute.xlu0 %2679
      %v2702 = vunpack.c.l.b16 %v2602
      %v2703 = vunpack.c.h.b16 %v2602
      %v2704 = vunpack.c.l.b16 %v2603
      %v2705 = vunpack.c.h.b16 %v2603
      %v2706 = vunpack.c.l.b16 %v2604
      %v2707 = vunpack.c.h.b16 %v2604
      %v2708 = vunpack.c.l.b16 %v2605
      %v2709 = vunpack.c.h.b16 %v2605
      %v2710 = vunpack.c.l.b16 %v2606
      %v2711 = vunpack.c.h.b16 %v2606
      %v2712 = vunpack.c.l.b16 %v2607
      %v2713 = vunpack.c.h.b16 %v2607
      %v2714 = vunpack.c.l.b16 %v2608
      %v2715 = vunpack.c.h.b16 %v2608
      %v2716 = vunpack.c.l.b16 %v2609
      %v2717 = vunpack.c.h.b16 %v2609
      %v2718 = vunpack.c.l.b16 %v2610
      %v2719 = vunpack.c.h.b16 %v2610
      %v2720 = vunpack.c.l.b16 %v2611
      %v2721 = vunpack.c.h.b16 %v2611
      %v2722 = vunpack.c.l.b16 %v2612
      %v2723 = vunpack.c.h.b16 %v2612
      %v2724 = vunpack.c.l.b16 %v2613
      %v2725 = vunpack.c.h.b16 %v2613
      %v2726 = vunpack.c.l.b16 %v2614
      %v2727 = vunpack.c.h.b16 %v2614
      %v2728 = vunpack.c.l.b16 %v2615
      %v2729 = vunpack.c.h.b16 %v2615
      %v2730 = vunpack.c.l.b16 %v2616
      %v2731 = vunpack.c.h.b16 %v2616
      %v2732 = vunpack.c.l.b16 %v2617
      %v2733 = vunpack.c.h.b16 %v2617
      %v2734 = vunpack.c.l.b16 %v2618
      %v2735 = vunpack.c.h.b16 %v2618
      %v2736 = vunpack.c.l.b16 %v2619
      %v2737 = vunpack.c.h.b16 %v2619
      %v2738 = vunpack.c.l.b16 %v2620
      %v2739 = vunpack.c.h.b16 %v2620
      %v2740 = vunpack.c.l.b16 %v2621
      %v2741 = vunpack.c.h.b16 %v2621
      %v2742 = vpack.c.b16 %v2706, %v2702
      %v2743 = vpack.c.b16 %v2707, %v2703
      %v2744 = vpack.c.b16 %v2708, %v2704
      %v2745 = vpack.c.b16 %v2709, %v2705
      %v2746 = vpack.c.b16 %v2714, %v2710
      %v2747 = vpack.c.b16 %v2715, %v2711
      %v2748 = vpack.c.b16 %v2716, %v2712
      %v2749 = vpack.c.b16 %v2717, %v2713
      %v2750 = vpack.c.b16 %v2722, %v2718
      %v2751 = vpack.c.b16 %v2723, %v2719
      %v2752 = vpack.c.b16 %v2724, %v2720
      %v2753 = vpack.c.b16 %v2725, %v2721
      %v2754 = vpack.c.b16 %v2730, %v2726
      %v2755 = vpack.c.b16 %v2731, %v2727
      %v2756 = vpack.c.b16 %v2732, %v2728
      %v2757 = vpack.c.b16 %v2733, %v2729
      %v2758 = vpack.c.b16 %v2738, %v2734
      %v2759 = vpack.c.b16 %v2739, %v2735
      %v2760 = vpack.c.b16 %v2740, %v2736
      %v2761 = vpack.c.b16 %v2741, %v2737
      %v2778 = vsel %vm2408, %v2745, 0
      %v2781 = vsel %vm2408, %v2749, 0
      %v2784 = vsel %vm2408, %v2753, 0
      %v2787 = vsel %vm2408, %v2757, 0
      %v2790 = vsel %vm2408, %v2761, 0
      %2792 = vmatpush.msra.mxu0 %v2193
      %2793 = vmatpush.msra.mxu0 %v2192
      %2794 = vmatpush.msra.mxu0 %v2191
      %2795 = vmatpush.msra.mxu0 %v2190
      %2796 = vmatpush.msra.mxu0 %v2189
      %2797 = vmatpush.msra.mxu0 %v2188
      %2798 = vmatpush.msra.mxu0 %v2187
      %2799 = vmatpush.msra.mxu0 %v2186
      %2800 = vmatpush.msra.mxu0 %v2185
      %2801 = vmatpush.msra.mxu0 %v2184
      %2802 = vmatpush.msra.mxu0 %v2183
      %2803 = vmatpush.msra.mxu0 %v2182
      %2804 = vmatpush.msra.mxu0 %v2181
      %2805 = vmatpush.msra.mxu0 %v2180
      %2806 = vmatpush.msra.mxu0 %v2179
      %2807 = vmatpush.msra.mxu0 %v2178
      %2808 = vmatmul.bf16.gmra.mxu0 %v2742
      %v2809 = vpop.f32.mrf.mxu0
      %v2810 = vadd.f32 %v2635, %v2809
      %v2811 = vpop.f32.mrf.mxu0
      %v2812 = vadd.f32 %v2640, %v2811
      %2813 = vmatmul.bf16.gmra.mxu0 %v2746
      %v2814 = vpop.f32.mrf.mxu0
      %v2815 = vadd.f32 %v2645, %v2814
      %v2816 = vpop.f32.mrf.mxu0
      %v2817 = vadd.f32 %v2650, %v2816
      %2818 = vmatmul.bf16.gmra.mxu0 %v2750
      %v2819 = vpop.f32.mrf.mxu0
      %v2820 = vadd.f32 %v2655, %v2819
      %v2821 = vpop.f32.mrf.mxu0
      %v2822 = vadd.f32 %v2660, %v2821
      %2823 = vmatmul.bf16.gmra.mxu0 %v2754
      %v2824 = vpop.f32.mrf.mxu0
      %v2825 = vadd.f32 %v2665, %v2824
      %v2826 = vpop.f32.mrf.mxu0
      %v2827 = vadd.f32 %v2670, %v2826
      %2828 = vmatmul.bf16.gmra.mxu0 %v2758
      %v2829 = vpop.f32.mrf.mxu0
      %v2830 = vadd.f32 %v2675, %v2829
      %v2831 = vpop.f32.mrf.mxu0
      %v2832 = vadd.f32 %v2680, %v2831
      %2833 = vdwg.mxu0
      %2834 = vmatpush.msra.mxu0 %v2209
      %2835 = vmatpush.msra.mxu0 %v2208
      %2836 = vmatpush.msra.mxu0 %v2207
      %2837 = vmatpush.msra.mxu0 %v2206
      %2838 = vmatpush.msra.mxu0 %v2205
      %2839 = vmatpush.msra.mxu0 %v2204
      %2840 = vmatpush.msra.mxu0 %v2203
      %2841 = vmatpush.msra.mxu0 %v2202
      %2842 = vmatpush.msra.mxu0 %v2201
      %2843 = vmatpush.msra.mxu0 %v2200
      %2844 = vmatpush.msra.mxu0 %v2199
      %2845 = vmatpush.msra.mxu0 %v2198
      %2846 = vmatpush.msra.mxu0 %v2197
      %2847 = vmatpush.msra.mxu0 %v2196
      %2848 = vmatpush.msra.mxu0 %v2195
      %2849 = vmatpush.msra.mxu0 %v2194
      %2850 = vmatmul.bf16.gmra.mxu0 %v2743
      %v2851 = vpop.f32.mrf.mxu0
      %v2852 = vadd.f32 %v2810, %v2851
      %v2853 = vpop.f32.mrf.mxu0
      %v2854 = vadd.f32 %v2812, %v2853
      %2855 = vmatmul.bf16.gmra.mxu0 %v2747
      %v2856 = vpop.f32.mrf.mxu0
      %v2857 = vadd.f32 %v2815, %v2856
      %v2858 = vpop.f32.mrf.mxu0
      %v2859 = vadd.f32 %v2817, %v2858
      %2860 = vmatmul.bf16.gmra.mxu0 %v2751
      %v2861 = vpop.f32.mrf.mxu0
      %v2862 = vadd.f32 %v2820, %v2861
      %v2863 = vpop.f32.mrf.mxu0
      %v2864 = vadd.f32 %v2822, %v2863
      %2865 = vmatmul.bf16.gmra.mxu0 %v2755
      %v2866 = vpop.f32.mrf.mxu0
      %v2867 = vadd.f32 %v2825, %v2866
      %v2868 = vpop.f32.mrf.mxu0
      %v2869 = vadd.f32 %v2827, %v2868
      %2870 = vmatmul.bf16.gmra.mxu0 %v2759
      %v2871 = vpop.f32.mrf.mxu0
      %v2872 = vadd.f32 %v2830, %v2871
      %v2873 = vpop.f32.mrf.mxu0
      %v2874 = vadd.f32 %v2832, %v2873
      %2875 = vdwg.mxu0
      %2876 = vmatpush.msra.mxu0 %v2225
      %2877 = vmatpush.msra.mxu0 %v2224
      %2878 = vmatpush.msra.mxu0 %v2223
      %2879 = vmatpush.msra.mxu0 %v2222
      %2880 = vmatpush.msra.mxu0 %v2221
      %2881 = vmatpush.msra.mxu0 %v2220
      %2882 = vmatpush.msra.mxu0 %v2219
      %2883 = vmatpush.msra.mxu0 %v2218
      %2884 = vmatpush.msra.mxu0 %v2217
      %2885 = vmatpush.msra.mxu0 %v2216
      %2886 = vmatpush.msra.mxu0 %v2215
      %2887 = vmatpush.msra.mxu0 %v2214
      %2888 = vmatpush.msra.mxu0 %v2213
      %2889 = vmatpush.msra.mxu0 %v2212
      %2890 = vmatpush.msra.mxu0 %v2211
      %2891 = vmatpush.msra.mxu0 %v2210
      %2892 = vmatmul.bf16.gmra.mxu0 %v2744
      %v2893 = vpop.f32.mrf.mxu0
      %v2894 = vadd.f32 %v2852, %v2893
      %v2895 = vpop.f32.mrf.mxu0
      %v2896 = vadd.f32 %v2854, %v2895
      %2897 = vmatmul.bf16.gmra.mxu0 %v2748
      %v2898 = vpop.f32.mrf.mxu0
      %v2899 = vadd.f32 %v2857, %v2898
      %v2900 = vpop.f32.mrf.mxu0
      %v2901 = vadd.f32 %v2859, %v2900
      %2902 = vmatmul.bf16.gmra.mxu0 %v2752
      %v2903 = vpop.f32.mrf.mxu0
      %v2904 = vadd.f32 %v2862, %v2903
      %v2905 = vpop.f32.mrf.mxu0
      %v2906 = vadd.f32 %v2864, %v2905
      %2907 = vmatmul.bf16.gmra.mxu0 %v2756
      %v2908 = vpop.f32.mrf.mxu0
      %v2909 = vadd.f32 %v2867, %v2908
      %v2910 = vpop.f32.mrf.mxu0
      %v2911 = vadd.f32 %v2869, %v2910
      %2912 = vmatmul.bf16.gmra.mxu0 %v2760
      %v2913 = vpop.f32.mrf.mxu0
      %v2914 = vadd.f32 %v2872, %v2913
      %v2915 = vpop.f32.mrf.mxu0
      %v2916 = vadd.f32 %v2874, %v2915
      %2917 = vdwg.mxu0
      %2918 = vmatpush.msra.mxu0 0.0
      %2919 = vmatpush.msra.mxu0 0.0
      %2920 = vmatpush.msra.mxu0 0.0
      %2921 = vmatpush.msra.mxu0 0.0
      %2922 = vmatpush.msra.mxu0 0.0
      %2923 = vmatpush.msra.mxu0 0.0
      %2924 = vmatpush.msra.mxu0 0.0
      %2925 = vmatpush.msra.mxu0 0.0
      %2926 = vmatpush.msra.mxu0 0.0
      %2927 = vmatpush.msra.mxu0 %v2232
      %2928 = vmatpush.msra.mxu0 %v2231
      %2929 = vmatpush.msra.mxu0 %v2230
      %2930 = vmatpush.msra.mxu0 %v2229
      %2931 = vmatpush.msra.mxu0 %v2228
      %2932 = vmatpush.msra.mxu0 %v2227
      %2933 = vmatpush.msra.mxu0 %v2226
      %2934 = vmatmul.bf16.gmra.mxu0 %v2778
      %v2935 = vpop.f32.mrf.mxu0
      %v2936 = vadd.f32 %v2894, %v2935
      %v2937 = vpop.f32.mrf.mxu0
      %v2938 = vadd.f32 %v2896, %v2937
      %2939 = vmatmul.bf16.gmra.mxu0 %v2781
      %v2940 = vpop.f32.mrf.mxu0
      %v2941 = vadd.f32 %v2899, %v2940
      %v2942 = vpop.f32.mrf.mxu0
      %v2943 = vadd.f32 %v2901, %v2942
      %2944 = vmatmul.bf16.gmra.mxu0 %v2784
      %v2945 = vpop.f32.mrf.mxu0
      %v2946 = vadd.f32 %v2904, %v2945
      %v2947 = vpop.f32.mrf.mxu0
      %v2948 = vadd.f32 %v2906, %v2947
      %2949 = vmatmul.bf16.gmra.mxu0 %v2787
      %v2950 = vpop.f32.mrf.mxu0
      %v2951 = vadd.f32 %v2909, %v2950
      %v2952 = vpop.f32.mrf.mxu0
      %v2953 = vadd.f32 %v2911, %v2952
      %2954 = vmatmul.bf16.gmra.mxu0 %v2790
      %v2955 = vpop.f32.mrf.mxu0
      %v2956 = vadd.f32 %v2914, %v2955
      %v2957 = vpop.f32.mrf.mxu0
      %v2958 = vadd.f32 %v2916, %v2957
      %2959 = vdwg.mxu0
      %v2960 = vmax.f32 %v2936, 0.0
      %v2961 = vmax.f32 %v2938, 0.0
      %v2962 = vmax.f32 %v2941, 0.0
      %v2963 = vmax.f32 %v2943, 0.0
      %v2964 = vmax.f32 %v2946, 0.0
      %v2965 = vmax.f32 %v2948, 0.0
      %v2966 = vmax.f32 %v2951, 0.0
      %v2967 = vmax.f32 %v2953, 0.0
      %v2968 = vmax.f32 %v2956, 0.0
      %v2969 = vmax.f32 %v2958, 0.0
      %v2970 = vmax.f32 %v2592, %v2960
      %v2971 = vmax.f32 %v2593, %v2961
      %v2972 = vmax.f32 %v2594, %v2962
      %v2973 = vmax.f32 %v2595, %v2963
      %v2974 = vmax.f32 %v2596, %v2964
      %v2975 = vmax.f32 %v2597, %v2965
      %v2976 = vmax.f32 %v2598, %v2966
      %v2977 = vmax.f32 %v2599, %v2967
      %v2978 = vmax.f32 %v2600, %v2968
      %v2979 = vmax.f32 %v2601, %v2969
      %v2980 = vld [vmem:[%s11] sm:$0xf]
      %v2981 = vld [vmem:[%s11 + $0x4] sm:$0xf]
      %v2982 = vld [vmem:[%s11 + $0x8] sm:$0xf]
      %v2983 = vld [vmem:[%s11 + $0xc] sm:$0xf]
      %v2984 = vld [vmem:[%s11 + $0x10] sm:$0xf]
      %v2985 = vld [vmem:[%s11 + $0x14] sm:$0xf]
      %v2986 = vld [vmem:[%s11 + $0x18] sm:$0xf]
      %v2987 = vld [vmem:[%s11 + $0x1c] sm:$0xf]
      %v2988 = vld [vmem:[%s11 + $0x20] sm:$0xf]
      %v2989 = vld [vmem:[%s11 + $0x24] sm:$0xf]
      %v3000 = vunpack.c.l.b16 %v2980
      %v3001 = vunpack.c.l.b16 %v2981
      %v3002 = vunpack.c.l.b16 %v2982
      %v3003 = vunpack.c.l.b16 %v2983
      %v3004 = vunpack.c.l.b16 %v2984
      %v3005 = vunpack.c.l.b16 %v2985
      %v3006 = vunpack.c.l.b16 %v2986
      %v3007 = vunpack.c.l.b16 %v2987
      %v3008 = vunpack.c.l.b16 %v2988
      %v3009 = vunpack.c.l.b16 %v2989
      %v3010 = vpack.c.b16 %v3001, %v3000
      %v3011 = vpack.c.b16 %v3003, %v3002
      %v3012 = vpack.c.b16 %v3005, %v3004
      %v3013 = vpack.c.b16 %v3007, %v3006
      %v3014 = vpack.c.b16 %v3009, %v3008
      %v3021 = vsel %vm1979, %v2970, 0
      %v3024 = vsel %vm1979, %v2971, 0
      %v3027 = vsel %vm1979, %v2972, 0
      %v3030 = vsel %vm1979, %v2973, 0
      %v3033 = vsel %vm1979, %v2974, 0
      %v3036 = vsel %vm1979, %v2975, 0
      %v3039 = vsel %vm1979, %v2976, 0
      %v3042 = vsel %vm1979, %v2977, 0
      %v3045 = vsel %vm1979, %v2978, 0
      %v3048 = vsel %vm1979, %v2979, 0
      %3050 = vmatpush.bf16.msra.mxu0 0
      %3051 = vmatpush.bf16.msra.mxu0 0
      %3052 = vmatpush.bf16.msra.mxu0 0
      %3053 = vmatpush.bf16.msra.mxu0 %v3014
      %3054 = vmatpush.bf16.msra.mxu0 %v3013
      %3055 = vmatpush.bf16.msra.mxu0 %v3012
      %3056 = vmatpush.bf16.msra.mxu0 %v3011
      %3057 = vmatpush.bf16.msra.mxu0 %v3010
      %3058 = vmatmul.f32.gmra.mxu0 %v3021
      %v3059 = vpop.f32.mrf.mxu0
      %v3060 = vadd.f32 0.0, %v3059
      %3061 = vmatmul.f32.gmra.mxu0 %v3024
      %v3062 = vpop.f32.mrf.mxu0
      %v3063 = vadd.f32 0.0, %v3062
      %3064 = vmatmul.f32.gmra.mxu0 %v3027
      %v3065 = vpop.f32.mrf.mxu0
      %v3066 = vadd.f32 0.0, %v3065
      %3067 = vmatmul.f32.gmra.mxu0 %v3030
      %v3068 = vpop.f32.mrf.mxu0
      %v3069 = vadd.f32 0.0, %v3068
      %3070 = vmatmul.f32.gmra.mxu0 %v3033
      %v3071 = vpop.f32.mrf.mxu0
      %v3072 = vadd.f32 0.0, %v3071
      %3073 = vmatmul.f32.gmra.mxu0 %v3036
      %v3074 = vpop.f32.mrf.mxu0
      %v3075 = vadd.f32 0.0, %v3074
      %3076 = vmatmul.f32.gmra.mxu0 %v3039
      %v3077 = vpop.f32.mrf.mxu0
      %v3078 = vadd.f32 0.0, %v3077
      %3079 = vmatmul.f32.gmra.mxu0 %v3042
      %v3080 = vpop.f32.mrf.mxu0
      %v3081 = vadd.f32 0.0, %v3080
      %3082 = vmatmul.f32.gmra.mxu0 %v3045
      %v3083 = vpop.f32.mrf.mxu0
      %v3084 = vadd.f32 0.0, %v3083
      %3085 = vmatmul.f32.gmra.mxu0 %v3048
      %v3086 = vpop.f32.mrf.mxu0
      %v3087 = vadd.f32 0.0, %v3086
      %3088 = vdwg.mxu0
      %v3089 = vld [vmem:[%s12] sm:$0xf]
      %v3090 = vld [vmem:[%s12 + $0x4] sm:$0xf]
      %v3091 = vld [vmem:[%s12 + $0x8] sm:$0xf]
      %v3092 = vld [vmem:[%s12 + $0xc] sm:$0xf]
      %v3093 = vld [vmem:[%s12 + $0x10] sm:$0xf]
      %v3094 = vld [vmem:[%s12 + $0x14] sm:$0xf]
      %v3095 = vld [vmem:[%s12 + $0x18] sm:$0xf]
      %v3096 = vld [vmem:[%s12 + $0x1c] sm:$0xf]
      %v3097 = vld [vmem:[%s12 + $0x20] sm:$0xf]
      %v3098 = vld [vmem:[%s12 + $0x24] sm:$0xf]
      %v3109 = vunpack.c.l.b16 %v3089
      %v3110 = vunpack.c.l.b16 %v3090
      %v3111 = vunpack.c.l.b16 %v3091
      %v3112 = vunpack.c.l.b16 %v3092
      %v3113 = vunpack.c.l.b16 %v3093
      %v3114 = vunpack.c.l.b16 %v3094
      %v3115 = vunpack.c.l.b16 %v3095
      %v3116 = vunpack.c.l.b16 %v3096
      %v3117 = vunpack.c.l.b16 %v3097
      %v3118 = vunpack.c.l.b16 %v3098
      %v3119 = vpack.c.b16 %v3110, %v3109
      %v3120 = vpack.c.b16 %v3112, %v3111
      %v3121 = vpack.c.b16 %v3114, %v3113
      %v3122 = vpack.c.b16 %v3116, %v3115
      %v3123 = vpack.c.b16 %v3118, %v3117
      %3129 = vmatpush.bf16.msra.mxu0 0
      %3130 = vmatpush.bf16.msra.mxu0 0
      %3131 = vmatpush.bf16.msra.mxu0 0
      %3132 = vmatpush.bf16.msra.mxu0 %v3123
      %3133 = vmatpush.bf16.msra.mxu0 %v3122
      %3134 = vmatpush.bf16.msra.mxu0 %v3121
      %3135 = vmatpush.bf16.msra.mxu0 %v3120
      %3136 = vmatpush.bf16.msra.mxu0 %v3119
      %3137 = vmatmul.f32.gmra.mxu0 %v3021
      %v3138 = vpop.f32.mrf.mxu0
      %v3139 = vadd.f32 0.0, %v3138
      %3140 = vmatmul.f32.gmra.mxu0 %v3024
      %v3141 = vpop.f32.mrf.mxu0
      %v3142 = vadd.f32 0.0, %v3141
      %3143 = vmatmul.f32.gmra.mxu0 %v3027
      %v3144 = vpop.f32.mrf.mxu0
      %v3145 = vadd.f32 0.0, %v3144
      %3146 = vmatmul.f32.gmra.mxu0 %v3030
      %v3147 = vpop.f32.mrf.mxu0
      %v3148 = vadd.f32 0.0, %v3147
      %3149 = vmatmul.f32.gmra.mxu0 %v3033
      %v3150 = vpop.f32.mrf.mxu0
      %v3151 = vadd.f32 0.0, %v3150
      %3152 = vmatmul.f32.gmra.mxu0 %v3036
      %v3153 = vpop.f32.mrf.mxu0
      %v3154 = vadd.f32 0.0, %v3153
      %3155 = vmatmul.f32.gmra.mxu0 %v3039
      %v3156 = vpop.f32.mrf.mxu0
      %v3157 = vadd.f32 0.0, %v3156
      %3158 = vmatmul.f32.gmra.mxu0 %v3042
      %v3159 = vpop.f32.mrf.mxu0
      %v3160 = vadd.f32 0.0, %v3159
      %3161 = vmatmul.f32.gmra.mxu0 %v3045
      %v3162 = vpop.f32.mrf.mxu0
      %v3163 = vadd.f32 0.0, %v3162
      %3164 = vmatmul.f32.gmra.mxu0 %v3048
      %v3165 = vpop.f32.mrf.mxu0
      %v3166 = vadd.f32 0.0, %v3165
      %3167 = vdwg.mxu0
      %v3168 = vmax.f32 %v3060, %v3139
      %v3169 = vmax.f32 %v3063, %v3142
      %v3170 = vmax.f32 %v3066, %v3145
      %v3171 = vmax.f32 %v3069, %v3148
      %v3172 = vmax.f32 %v3072, %v3151
      %v3173 = vmax.f32 %v3075, %v3154
      %v3174 = vmax.f32 %v3078, %v3157
      %v3175 = vmax.f32 %v3081, %v3160
      %v3176 = vmax.f32 %v3084, %v3163
      %v3177 = vmax.f32 %v3087, %v3166
      %vm3178 = vcmask 64512
      %3179 = vst.msk [vmem:[#allocation4] sm:$0xff] %vm3178, %v3168
      %3180 = vst.msk [vmem:[#allocation4 + $0x8] sm:$0xff] %vm3178, %v3169
      %3181 = vst.msk [vmem:[#allocation4 + $0x10] sm:$0xff] %vm3178, %v3170
      %3182 = vst.msk [vmem:[#allocation4 + $0x18] sm:$0xff] %vm3178, %v3171
      %3183 = vst.msk [vmem:[#allocation4 + $0x20] sm:$0xff] %vm3178, %v3172
      %3184 = vst.msk [vmem:[#allocation4 + $0x28] sm:$0xff] %vm3178, %v3173
      %3185 = vst.msk [vmem:[#allocation4 + $0x30] sm:$0xff] %vm3178, %v3174
      %3186 = vst.msk [vmem:[#allocation4 + $0x38] sm:$0xff] %vm3178, %v3175
      %3187 = vst.msk [vmem:[#allocation4 + $0x40] sm:$0xff] %vm3178, %v3176
      %3188 = vst.msk [vmem:[#allocation4 + $0x48] sm:$0xff] %vm3178, %v3177
      %3199 = vrot.lane.b32.xlu0 %v3168, 120
      %v3200 = vpop.permute.xlu0 %3199
      %3201 = vrot.lane.b32.xlu0 %v3169, 120
      %v3202 = vpop.permute.xlu0 %3201
      %3203 = vrot.lane.b32.xlu0 %v3170, 120
      %v3204 = vpop.permute.xlu0 %3203
      %3205 = vrot.lane.b32.xlu0 %v3171, 120
      %v3206 = vpop.permute.xlu0 %3205
      %3207 = vrot.lane.b32.xlu0 %v3172, 120
      %v3208 = vpop.permute.xlu0 %3207
      %3209 = vrot.lane.b32.xlu0 %v3173, 120
      %v3210 = vpop.permute.xlu0 %3209
      %3211 = vrot.lane.b32.xlu0 %v3174, 120
      %v3212 = vpop.permute.xlu0 %3211
      %3213 = vrot.lane.b32.xlu0 %v3175, 120
      %v3214 = vpop.permute.xlu0 %3213
      %3215 = vrot.lane.b32.xlu0 %v3176, 120
      %v3216 = vpop.permute.xlu0 %3215
      %3217 = vrot.lane.b32.xlu0 %v3177, 120
      %v3218 = vpop.permute.xlu0 %3217
      %3229 = vst.msk [vmem:[#allocation4 + $0x50] sm:$0xff] %vm3178, %v3200
      %3230 = vst.msk [vmem:[#allocation4 + $0x58] sm:$0xff] %vm3178, %v3202
      %3231 = vst.msk [vmem:[#allocation4 + $0x60] sm:$0xff] %vm3178, %v3204
      %3232 = vst.msk [vmem:[#allocation4 + $0x68] sm:$0xff] %vm3178, %v3206
      %3233 = vst.msk [vmem:[#allocation4 + $0x70] sm:$0xff] %vm3178, %v3208
      %3234 = vst.msk [vmem:[#allocation4 + $0x78] sm:$0xff] %vm3178, %v3210
      %3235 = vst.msk [vmem:[#allocation4 + $0x80] sm:$0xff] %vm3178, %v3212
      %3236 = vst.msk [vmem:[#allocation4 + $0x88] sm:$0xff] %vm3178, %v3214
      %3237 = vst.msk [vmem:[#allocation4 + $0x90] sm:$0xff] %vm3178, %v3216
      %3238 = vst.msk [vmem:[#allocation4 + $0x98] sm:$0xff] %vm3178, %v3218
      %3239 = vrot.lane.b32.xlu0 %v3168, 112
      %v3240 = vpop.permute.xlu0 %3239
      %3241 = vrot.lane.b32.xlu0 %v3169, 112
      %v3242 = vpop.permute.xlu0 %3241
      %3243 = vrot.lane.b32.xlu0 %v3170, 112
      %v3244 = vpop.permute.xlu0 %3243
      %3245 = vrot.lane.b32.xlu0 %v3171, 112
      %v3246 = vpop.permute.xlu0 %3245
      %3247 = vrot.lane.b32.xlu0 %v3172, 112
      %v3248 = vpop.permute.xlu0 %3247
      %3249 = vrot.lane.b32.xlu0 %v3173, 112
      %v3250 = vpop.permute.xlu0 %3249
      %3251 = vrot.lane.b32.xlu0 %v3174, 112
      %v3252 = vpop.permute.xlu0 %3251
      %3253 = vrot.lane.b32.xlu0 %v3175, 112
      %v3254 = vpop.permute.xlu0 %3253
      %3255 = vrot.lane.b32.xlu0 %v3176, 112
      %v3256 = vpop.permute.xlu0 %3255
      %3257 = vrot.lane.b32.xlu0 %v3177, 112
      %v3258 = vpop.permute.xlu0 %3257
      %3269 = vst.msk [vmem:[#allocation4 + $0xa0] sm:$0xff] %vm3178, %v3240
      %3270 = vst.msk [vmem:[#allocation4 + $0xa8] sm:$0xff] %vm3178, %v3242
      %3271 = vst.msk [vmem:[#allocation4 + $0xb0] sm:$0xff] %vm3178, %v3244
      %3272 = vst.msk [vmem:[#allocation4 + $0xb8] sm:$0xff] %vm3178, %v3246
      %3273 = vst.msk [vmem:[#allocation4 + $0xc0] sm:$0xff] %vm3178, %v3248
      %3274 = vst.msk [vmem:[#allocation4 + $0xc8] sm:$0xff] %vm3178, %v3250
      %3275 = vst.msk [vmem:[#allocation4 + $0xd0] sm:$0xff] %vm3178, %v3252
      %3276 = vst.msk [vmem:[#allocation4 + $0xd8] sm:$0xff] %vm3178, %v3254
      %3277 = vst.msk [vmem:[#allocation4 + $0xe0] sm:$0xff] %vm3178, %v3256
      %3278 = vst.msk [vmem:[#allocation4 + $0xe8] sm:$0xff] %vm3178, %v3258
      %3279 = vrot.lane.b32.xlu0 %v3168, 104
      %v3280 = vpop.permute.xlu0 %3279
      %3281 = vrot.lane.b32.xlu0 %v3169, 104
      %v3282 = vpop.permute.xlu0 %3281
      %3283 = vrot.lane.b32.xlu0 %v3170, 104
      %v3284 = vpop.permute.xlu0 %3283
      %3285 = vrot.lane.b32.xlu0 %v3171, 104
      %v3286 = vpop.permute.xlu0 %3285
      %3287 = vrot.lane.b32.xlu0 %v3172, 104
      %v3288 = vpop.permute.xlu0 %3287
      %3289 = vrot.lane.b32.xlu0 %v3173, 104
      %v3290 = vpop.permute.xlu0 %3289
      %3291 = vrot.lane.b32.xlu0 %v3174, 104
      %v3292 = vpop.permute.xlu0 %3291
      %3293 = vrot.lane.b32.xlu0 %v3175, 104
      %v3294 = vpop.permute.xlu0 %3293
      %3295 = vrot.lane.b32.xlu0 %v3176, 104
      %v3296 = vpop.permute.xlu0 %3295
      %3297 = vrot.lane.b32.xlu0 %v3177, 104
      %v3298 = vpop.permute.xlu0 %3297
      %3309 = vst.msk [vmem:[#allocation4 + $0xf0] sm:$0xff] %vm3178, %v3280
      %3310 = vst.msk [vmem:[#allocation4 + $0xf8] sm:$0xff] %vm3178, %v3282
      %3311 = vst.msk [vmem:[#allocation4 + $0x100] sm:$0xff] %vm3178, %v3284
      %3312 = vst.msk [vmem:[#allocation4 + $0x108] sm:$0xff] %vm3178, %v3286
      %3313 = vst.msk [vmem:[#allocation4 + $0x110] sm:$0xff] %vm3178, %v3288
      %3314 = vst.msk [vmem:[#allocation4 + $0x118] sm:$0xff] %vm3178, %v3290
      %3315 = vst.msk [vmem:[#allocation4 + $0x120] sm:$0xff] %vm3178, %v3292
      %3316 = vst.msk [vmem:[#allocation4 + $0x128] sm:$0xff] %vm3178, %v3294
      %3317 = vst.msk [vmem:[#allocation4 + $0x130] sm:$0xff] %vm3178, %v3296
      %3318 = vst.msk [vmem:[#allocation4 + $0x138] sm:$0xff] %vm3178, %v3298
      %3319 = vrot.lane.b32.xlu0 %v3168, 96
      %v3320 = vpop.permute.xlu0 %3319
      %3321 = vrot.lane.b32.xlu0 %v3169, 96
      %v3322 = vpop.permute.xlu0 %3321
      %3323 = vrot.lane.b32.xlu0 %v3170, 96
      %v3324 = vpop.permute.xlu0 %3323
      %3325 = vrot.lane.b32.xlu0 %v3171, 96
      %v3326 = vpop.permute.xlu0 %3325
      %3327 = vrot.lane.b32.xlu0 %v3172, 96
      %v3328 = vpop.permute.xlu0 %3327
      %3329 = vrot.lane.b32.xlu0 %v3173, 96
      %v3330 = vpop.permute.xlu0 %3329
      %3331 = vrot.lane.b32.xlu0 %v3174, 96
      %v3332 = vpop.permute.xlu0 %3331
      %3333 = vrot.lane.b32.xlu0 %v3175, 96
      %v3334 = vpop.permute.xlu0 %3333
      %3335 = vrot.lane.b32.xlu0 %v3176, 96
      %v3336 = vpop.permute.xlu0 %3335
      %3337 = vrot.lane.b32.xlu0 %v3177, 96
      %v3338 = vpop.permute.xlu0 %3337
      %3349 = vst.msk [vmem:[#allocation4 + $0x140] sm:$0xff] %vm3178, %v3320
      %3350 = vst.msk [vmem:[#allocation4 + $0x148] sm:$0xff] %vm3178, %v3322
      %3351 = vst.msk [vmem:[#allocation4 + $0x150] sm:$0xff] %vm3178, %v3324
      %3352 = vst.msk [vmem:[#allocation4 + $0x158] sm:$0xff] %vm3178, %v3326
      %3353 = vst.msk [vmem:[#allocation4 + $0x160] sm:$0xff] %vm3178, %v3328
      %3354 = vst.msk [vmem:[#allocation4 + $0x168] sm:$0xff] %vm3178, %v3330
      %3355 = vst.msk [vmem:[#allocation4 + $0x170] sm:$0xff] %vm3178, %v3332
      %3356 = vst.msk [vmem:[#allocation4 + $0x178] sm:$0xff] %vm3178, %v3334
      %3357 = vst.msk [vmem:[#allocation4 + $0x180] sm:$0xff] %vm3178, %v3336
      %3358 = vst.msk [vmem:[#allocation4 + $0x188] sm:$0xff] %vm3178, %v3338
      %v3359 = vld [vmem:[%s13] sm:$0xff]
      %v3360 = vld [vmem:[%s13 + $0x8] sm:$0xff]
      %v3361 = vld [vmem:[%s13 + $0x10] sm:$0xff]
      %v3362 = vld [vmem:[%s13 + $0x18] sm:$0xff]
      %v3363 = vld [vmem:[%s13 + $0x20] sm:$0xff]
      %v3364 = vld [vmem:[%s13 + $0x28] sm:$0xff]
      %v3365 = vld [vmem:[%s13 + $0x30] sm:$0xff]
      %v3366 = vld [vmem:[%s13 + $0x38] sm:$0xff]
      %v3367 = vld [vmem:[%s13 + $0x40] sm:$0xff]
      %v3368 = vld [vmem:[%s13 + $0x48] sm:$0xff]
      %v3369 = vld [vmem:[%s13 + $0x50] sm:$0xff]
      %v3370 = vld [vmem:[%s13 + $0x58] sm:$0xff]
      %v3371 = vld [vmem:[%s13 + $0x60] sm:$0xff]
      %v3372 = vld [vmem:[%s13 + $0x68] sm:$0xff]
      %v3373 = vld [vmem:[%s13 + $0x70] sm:$0xff]
      %v3374 = vld [vmem:[%s13 + $0x78] sm:$0xff]
      %v3375 = vld [vmem:[%s13 + $0x80] sm:$0xff]
      %v3376 = vld [vmem:[%s13 + $0x88] sm:$0xff]
      %v3377 = vld [vmem:[%s13 + $0x90] sm:$0xff]
      %v3378 = vld [vmem:[%s13 + $0x98] sm:$0xff]
      %v3379 = vld [vmem:[%s13 + $0xa0] sm:$0xff]
      %v3380 = vld [vmem:[%s13 + $0xa8] sm:$0xff]
      %v3381 = vld [vmem:[%s13 + $0xb0] sm:$0xff]
      %v3382 = vld [vmem:[%s13 + $0xb8] sm:$0xff]
      %v3383 = vld [vmem:[%s13 + $0xc0] sm:$0xff]
      %v3384 = vld [vmem:[%s13 + $0xc8] sm:$0xff]
      %v3385 = vld [vmem:[%s13 + $0xd0] sm:$0xff]
      %v3386 = vld [vmem:[%s13 + $0xd8] sm:$0xff]
      %v3387 = vld [vmem:[%s13 + $0xe0] sm:$0xff]
      %v3388 = vld [vmem:[%s13 + $0xe8] sm:$0xff]
      %v3389 = vld [vmem:[#allocation4] sm:$0xff]
      %v3390 = vld [vmem:[#allocation4 + $0x8] sm:$0xff]
      %v3391 = vld [vmem:[#allocation4 + $0x10] sm:$0xff]
      %v3392 = vld [vmem:[#allocation4 + $0x18] sm:$0xff]
      %v3393 = vld [vmem:[#allocation4 + $0x20] sm:$0xff]
      %v3394 = vld [vmem:[#allocation4 + $0x28] sm:$0xff]
      %v3395 = vld [vmem:[#allocation4 + $0x30] sm:$0xff]
      %v3396 = vld [vmem:[#allocation4 + $0x38] sm:$0xff]
      %v3397 = vld [vmem:[#allocation4 + $0x40] sm:$0xff]
      %v3398 = vld [vmem:[#allocation4 + $0x48] sm:$0xff]
      %v3399 = vld [vmem:[#allocation4 + $0x50] sm:$0xff]
      %v3400 = vld [vmem:[#allocation4 + $0x58] sm:$0xff]
      %v3401 = vld [vmem:[#allocation4 + $0x60] sm:$0xff]
      %v3402 = vld [vmem:[#allocation4 + $0x68] sm:$0xff]
      %v3403 = vld [vmem:[#allocation4 + $0x70] sm:$0xff]
      %v3404 = vld [vmem:[#allocation4 + $0x78] sm:$0xff]
      %v3405 = vld [vmem:[#allocation4 + $0x80] sm:$0xff]
      %v3406 = vld [vmem:[#allocation4 + $0x88] sm:$0xff]
      %v3407 = vld [vmem:[#allocation4 + $0x90] sm:$0xff]
      %v3408 = vld [vmem:[#allocation4 + $0x98] sm:$0xff]
      %v3409 = vld [vmem:[#allocation4 + $0xa0] sm:$0xff]
      %v3410 = vld [vmem:[#allocation4 + $0xa8] sm:$0xff]
      %v3411 = vld [vmem:[#allocation4 + $0xb0] sm:$0xff]
      %v3412 = vld [vmem:[#allocation4 + $0xb8] sm:$0xff]
      %v3413 = vld [vmem:[#allocation4 + $0xc0] sm:$0xff]
      %v3414 = vld [vmem:[#allocation4 + $0xc8] sm:$0xff]
      %v3415 = vld [vmem:[#allocation4 + $0xd0] sm:$0xff]
      %v3416 = vld [vmem:[#allocation4 + $0xd8] sm:$0xff]
      %v3417 = vld [vmem:[#allocation4 + $0xe0] sm:$0xff]
      %v3418 = vld [vmem:[#allocation4 + $0xe8] sm:$0xff]
      %v3419 = vld [vmem:[#allocation4 + $0xf0] sm:$0xff]
      %v3420 = vld [vmem:[#allocation4 + $0xf8] sm:$0xff]
      %v3421 = vld [vmem:[#allocation4 + $0x100] sm:$0xff]
      %v3422 = vld [vmem:[#allocation4 + $0x108] sm:$0xff]
      %v3423 = vld [vmem:[#allocation4 + $0x110] sm:$0xff]
      %v3424 = vld [vmem:[#allocation4 + $0x118] sm:$0xff]
      %v3425 = vld [vmem:[#allocation4 + $0x120] sm:$0xff]
      %v3426 = vld [vmem:[#allocation4 + $0x128] sm:$0xff]
      %v3427 = vld [vmem:[#allocation4 + $0x130] sm:$0xff]
      %v3428 = vld [vmem:[#allocation4 + $0x138] sm:$0xff]
      %v3429 = vld [vmem:[#allocation4 + $0x140] sm:$0xff]
      %v3430 = vld [vmem:[#allocation4 + $0x148] sm:$0xff]
      %v3431 = vld [vmem:[#allocation4 + $0x150] sm:$0xff]
      %v3432 = vld [vmem:[#allocation4 + $0x158] sm:$0xff]
      %v3433 = vld [vmem:[#allocation4 + $0x160] sm:$0xff]
      %v3434 = vld [vmem:[#allocation4 + $0x168] sm:$0xff]
      %v3435 = vld [vmem:[#allocation4 + $0x170] sm:$0xff]
      %v3436 = vld [vmem:[#allocation4 + $0x178] sm:$0xff]
      %v3437 = vld [vmem:[#allocation4 + $0x180] sm:$0xff]
      %v3438 = vld [vmem:[#allocation4 + $0x188] sm:$0xff]
      %v3439 = vld [vmem:[%s14] sm:$0xff]
      %v3440 = vld [vmem:[%s14 + $0x8] sm:$0xff]
      %v3441 = vld [vmem:[%s14 + $0x10] sm:$0xff]
      %v3442 = vld [vmem:[%s14 + $0x18] sm:$0xff]
      %v3443 = vld [vmem:[%s14 + $0x20] sm:$0xff]
      %v3444 = vld [vmem:[%s14 + $0x28] sm:$0xff]
      %v3445 = vld [vmem:[%s14 + $0x30] sm:$0xff]
      %v3446 = vld [vmem:[%s14 + $0x38] sm:$0xff]
      %v3447 = vld [vmem:[%s14 + $0x40] sm:$0xff]
      %v3448 = vld [vmem:[%s14 + $0x48] sm:$0xff]
      %v3449 = vld [vmem:[%s14 + $0x50] sm:$0xff]
      %v3450 = vld [vmem:[%s14 + $0x58] sm:$0xff]
      %v3451 = vld [vmem:[%s14 + $0x60] sm:$0xff]
      %v3452 = vld [vmem:[%s14 + $0x68] sm:$0xff]
      %v3453 = vld [vmem:[%s14 + $0x70] sm:$0xff]
      %3455 = vset.pattern.permute.xlu0 0
      %3456 = vperm.xlu0 %3455, %v3439
      %v3457 = vpop.permute.xlu0 %3456
      %3460 = vset.pattern.permute.xlu0 0
      %3461 = vperm.xlu0 %3460, %v3440
      %v3462 = vpop.permute.xlu0 %3461
      %3465 = vset.pattern.permute.xlu0 0
      %3466 = vperm.xlu0 %3465, %v3441
      %v3467 = vpop.permute.xlu0 %3466
      %3470 = vset.pattern.permute.xlu0 0
      %3471 = vperm.xlu0 %3470, %v3442
      %v3472 = vpop.permute.xlu0 %3471
      %3475 = vset.pattern.permute.xlu0 0
      %3476 = vperm.xlu0 %3475, %v3443
      %v3477 = vpop.permute.xlu0 %3476
      %3480 = vset.pattern.permute.xlu0 0
      %3481 = vperm.xlu0 %3480, %v3444
      %v3482 = vpop.permute.xlu0 %3481
      %3485 = vset.pattern.permute.xlu0 0
      %3486 = vperm.xlu0 %3485, %v3445
      %v3487 = vpop.permute.xlu0 %3486
      %3490 = vset.pattern.permute.xlu0 0
      %3491 = vperm.xlu0 %3490, %v3446
      %v3492 = vpop.permute.xlu0 %3491
      %3495 = vset.pattern.permute.xlu0 0
      %3496 = vperm.xlu0 %3495, %v3447
      %v3497 = vpop.permute.xlu0 %3496
      %3500 = vset.pattern.permute.xlu0 0
      %3501 = vperm.xlu0 %3500, %v3448
      %v3502 = vpop.permute.xlu0 %3501
      %3505 = vset.pattern.permute.xlu0 0
      %3506 = vperm.xlu0 %3505, %v3449
      %v3507 = vpop.permute.xlu0 %3506
      %3510 = vset.pattern.permute.xlu0 0
      %3511 = vperm.xlu0 %3510, %v3450
      %v3512 = vpop.permute.xlu0 %3511
      %3515 = vset.pattern.permute.xlu0 0
      %3516 = vperm.xlu0 %3515, %v3451
      %v3517 = vpop.permute.xlu0 %3516
      %3520 = vset.pattern.permute.xlu0 0
      %3521 = vperm.xlu0 %3520, %v3452
      %v3522 = vpop.permute.xlu0 %3521
      %3525 = vset.pattern.permute.xlu0 0
      %3526 = vperm.xlu0 %3525, %v3453
      %v3527 = vpop.permute.xlu0 %3526
      %v3559 = vunpack.c.l.b16 %v3359
      %v3560 = vunpack.c.h.b16 %v3359
      %v3561 = vunpack.c.l.b16 %v3360
      %v3562 = vunpack.c.h.b16 %v3360
      %v3563 = vunpack.c.l.b16 %v3361
      %v3564 = vunpack.c.h.b16 %v3361
      %v3565 = vunpack.c.l.b16 %v3362
      %v3566 = vunpack.c.h.b16 %v3362
      %v3567 = vunpack.c.l.b16 %v3363
      %v3568 = vunpack.c.h.b16 %v3363
      %v3569 = vunpack.c.l.b16 %v3364
      %v3570 = vunpack.c.h.b16 %v3364
      %v3571 = vunpack.c.l.b16 %v3365
      %v3572 = vunpack.c.h.b16 %v3365
      %v3573 = vunpack.c.l.b16 %v3366
      %v3574 = vunpack.c.h.b16 %v3366
      %v3575 = vunpack.c.l.b16 %v3367
      %v3576 = vunpack.c.h.b16 %v3367
      %v3577 = vunpack.c.l.b16 %v3368
      %v3578 = vunpack.c.h.b16 %v3368
      %v3579 = vunpack.c.l.b16 %v3369
      %v3580 = vunpack.c.h.b16 %v3369
      %v3581 = vunpack.c.l.b16 %v3370
      %v3582 = vunpack.c.h.b16 %v3370
      %v3583 = vunpack.c.l.b16 %v3371
      %v3584 = vunpack.c.h.b16 %v3371
      %v3585 = vunpack.c.l.b16 %v3372
      %v3586 = vunpack.c.h.b16 %v3372
      %v3587 = vunpack.c.l.b16 %v3373
      %v3588 = vunpack.c.h.b16 %v3373
      %v3589 = vunpack.c.l.b16 %v3374
      %v3590 = vunpack.c.h.b16 %v3374
      %v3591 = vunpack.c.l.b16 %v3375
      %v3592 = vunpack.c.h.b16 %v3375
      %v3593 = vunpack.c.l.b16 %v3376
      %v3594 = vunpack.c.h.b16 %v3376
      %v3595 = vunpack.c.l.b16 %v3377
      %v3596 = vunpack.c.h.b16 %v3377
      %v3597 = vunpack.c.l.b16 %v3378
      %v3598 = vunpack.c.h.b16 %v3378
      %v3599 = vunpack.c.l.b16 %v3379
      %v3600 = vunpack.c.h.b16 %v3379
      %v3601 = vunpack.c.l.b16 %v3380
      %v3602 = vunpack.c.h.b16 %v3380
      %v3603 = vunpack.c.l.b16 %v3381
      %v3604 = vunpack.c.h.b16 %v3381
      %v3605 = vunpack.c.l.b16 %v3382
      %v3606 = vunpack.c.h.b16 %v3382
      %v3607 = vunpack.c.l.b16 %v3383
      %v3608 = vunpack.c.h.b16 %v3383
      %v3609 = vunpack.c.l.b16 %v3384
      %v3610 = vunpack.c.h.b16 %v3384
      %v3611 = vunpack.c.l.b16 %v3385
      %v3612 = vunpack.c.h.b16 %v3385
      %v3613 = vunpack.c.l.b16 %v3386
      %v3614 = vunpack.c.h.b16 %v3386
      %v3615 = vunpack.c.l.b16 %v3387
      %v3616 = vunpack.c.h.b16 %v3387
      %v3617 = vunpack.c.l.b16 %v3388
      %v3618 = vunpack.c.h.b16 %v3388
      %v3619 = vpack.c.b16 %v3563, %v3559
      %v3620 = vpack.c.b16 %v3564, %v3560
      %v3621 = vpack.c.b16 %v3565, %v3561
      %v3622 = vpack.c.b16 %v3566, %v3562
      %v3623 = vpack.c.b16 %v3571, %v3567
      %v3624 = vpack.c.b16 %v3572, %v3568
      %v3625 = vpack.c.b16 %v3573, %v3569
      %v3626 = vpack.c.b16 %v3574, %v3570
      %v3627 = vpack.c.b16 %v3579, %v3575
      %v3628 = vpack.c.b16 %v3580, %v3576
      %v3629 = vpack.c.b16 %v3581, %v3577
      %v3630 = vpack.c.b16 %v3582, %v3578
      %v3631 = vpack.c.b16 %v3587, %v3583
      %v3632 = vpack.c.b16 %v3588, %v3584
      %v3633 = vpack.c.b16 %v3589, %v3585
      %v3634 = vpack.c.b16 %v3590, %v3586
      %v3635 = vpack.c.b16 %v3595, %v3591
      %v3636 = vpack.c.b16 %v3596, %v3592
      %v3637 = vpack.c.b16 %v3597, %v3593
      %v3638 = vpack.c.b16 %v3598, %v3594
      %v3639 = vpack.c.b16 %v3603, %v3599
      %v3640 = vpack.c.b16 %v3604, %v3600
      %v3641 = vpack.c.b16 %v3605, %v3601
      %v3642 = vpack.c.b16 %v3606, %v3602
      %v3643 = vpack.c.b16 %v3611, %v3607
      %v3644 = vpack.c.b16 %v3612, %v3608
      %v3645 = vpack.c.b16 %v3613, %v3609
      %v3646 = vpack.c.b16 %v3614, %v3610
      %v3647 = vpack.c.b16 %v3615, %v3615
      %v3648 = vpack.c.b16 %v3616, %v3616
      %v3649 = vpack.c.b16 %v3617, %v3617
      %v3650 = vpack.c.b16 %v3618, %v3618
      %vm3675 = vcmask 130048
      %v3677 = vsel %vm3675, %v3622, 0
      %v3680 = vsel %vm3675, %v3626, 0
      %v3683 = vsel %vm3675, %v3630, 0
      %v3686 = vsel %vm3675, %v3634, 0
      %v3689 = vsel %vm3675, %v3638, 0
      %v3692 = vsel %vm3675, %v3642, 0
      %v3695 = vsel %vm3675, %v3646, 0
      %v3698 = vsel %vm3675, %v3650, 0
      %3700 = vmatpush.msra.mxu0 %v3404
      %3701 = vmatpush.msra.mxu0 %v3403
      %3702 = vmatpush.msra.mxu0 %v3402
      %3703 = vmatpush.msra.mxu0 %v3401
      %3704 = vmatpush.msra.mxu0 %v3400
      %3705 = vmatpush.msra.mxu0 %v3399
      %3706 = vmatpush.msra.mxu0 %v3398
      %3707 = vmatpush.msra.mxu0 %v3397
      %3708 = vmatpush.msra.mxu0 %v3396
      %3709 = vmatpush.msra.mxu0 %v3395
      %3710 = vmatpush.msra.mxu0 %v3394
      %3711 = vmatpush.msra.mxu0 %v3393
      %3712 = vmatpush.msra.mxu0 %v3392
      %3713 = vmatpush.msra.mxu0 %v3391
      %3714 = vmatpush.msra.mxu0 %v3390
      %3715 = vmatpush.msra.mxu0 %v3389
      %3716 = vmatmul.bf16.gmra.mxu0 %v3619
      %v3717 = vpop.f32.mrf.mxu0
      %v3718 = vadd.f32 %v3457, %v3717
      %v3719 = vpop.f32.mrf.mxu0
      %v3720 = vadd.f32 %v3462, %v3719
      %3721 = vmatmul.bf16.gmra.mxu0 %v3623
      %v3722 = vpop.f32.mrf.mxu0
      %v3723 = vadd.f32 %v3467, %v3722
      %v3724 = vpop.f32.mrf.mxu0
      %v3725 = vadd.f32 %v3472, %v3724
      %3726 = vmatmul.bf16.gmra.mxu0 %v3627
      %v3727 = vpop.f32.mrf.mxu0
      %v3728 = vadd.f32 %v3477, %v3727
      %v3729 = vpop.f32.mrf.mxu0
      %v3730 = vadd.f32 %v3482, %v3729
      %3731 = vmatmul.bf16.gmra.mxu0 %v3631
      %v3732 = vpop.f32.mrf.mxu0
      %v3733 = vadd.f32 %v3487, %v3732
      %v3734 = vpop.f32.mrf.mxu0
      %v3735 = vadd.f32 %v3492, %v3734
      %3736 = vmatmul.bf16.gmra.mxu0 %v3635
      %v3737 = vpop.f32.mrf.mxu0
      %v3738 = vadd.f32 %v3497, %v3737
      %v3739 = vpop.f32.mrf.mxu0
      %v3740 = vadd.f32 %v3502, %v3739
      %3741 = vmatmul.bf16.gmra.mxu0 %v3639
      %v3742 = vpop.f32.mrf.mxu0
      %v3743 = vadd.f32 %v3507, %v3742
      %v3744 = vpop.f32.mrf.mxu0
      %v3745 = vadd.f32 %v3512, %v3744
      %3746 = vmatmul.bf16.gmra.mxu0 %v3643
      %v3747 = vpop.f32.mrf.mxu0
      %v3748 = vadd.f32 %v3517, %v3747
      %v3749 = vpop.f32.mrf.mxu0
      %v3750 = vadd.f32 %v3522, %v3749
      %3751 = vmatmul.bf16.gmra.mxu0 %v3647
      %v3752 = vpop.f32.mrf.mxu0
      %v3753 = vadd.f32 %v3527, %v3752
      %v3754 = vpop.f32.mrf.mxu0
      %3755 = vdwg.mxu0
      %3756 = vmatpush.msra.mxu0 %v3420
      %3757 = vmatpush.msra.mxu0 %v3419
      %3758 = vmatpush.msra.mxu0 %v3418
      %3759 = vmatpush.msra.mxu0 %v3417
      %3760 = vmatpush.msra.mxu0 %v3416
      %3761 = vmatpush.msra.mxu0 %v3415
      %3762 = vmatpush.msra.mxu0 %v3414
      %3763 = vmatpush.msra.mxu0 %v3413
      %3764 = vmatpush.msra.mxu0 %v3412
      %3765 = vmatpush.msra.mxu0 %v3411
      %3766 = vmatpush.msra.mxu0 %v3410
      %3767 = vmatpush.msra.mxu0 %v3409
      %3768 = vmatpush.msra.mxu0 %v3408
      %3769 = vmatpush.msra.mxu0 %v3407
      %3770 = vmatpush.msra.mxu0 %v3406
      %3771 = vmatpush.msra.mxu0 %v3405
      %3772 = vmatmul.bf16.gmra.mxu0 %v3620
      %v3773 = vpop.f32.mrf.mxu0
      %v3774 = vadd.f32 %v3718, %v3773
      %v3775 = vpop.f32.mrf.mxu0
      %v3776 = vadd.f32 %v3720, %v3775
      %3777 = vmatmul.bf16.gmra.mxu0 %v3624
      %v3778 = vpop.f32.mrf.mxu0
      %v3779 = vadd.f32 %v3723, %v3778
      %v3780 = vpop.f32.mrf.mxu0
      %v3781 = vadd.f32 %v3725, %v3780
      %3782 = vmatmul.bf16.gmra.mxu0 %v3628
      %v3783 = vpop.f32.mrf.mxu0
      %v3784 = vadd.f32 %v3728, %v3783
      %v3785 = vpop.f32.mrf.mxu0
      %v3786 = vadd.f32 %v3730, %v3785
      %3787 = vmatmul.bf16.gmra.mxu0 %v3632
      %v3788 = vpop.f32.mrf.mxu0
      %v3789 = vadd.f32 %v3733, %v3788
      %v3790 = vpop.f32.mrf.mxu0
      %v3791 = vadd.f32 %v3735, %v3790
      %3792 = vmatmul.bf16.gmra.mxu0 %v3636
      %v3793 = vpop.f32.mrf.mxu0
      %v3794 = vadd.f32 %v3738, %v3793
      %v3795 = vpop.f32.mrf.mxu0
      %v3796 = vadd.f32 %v3740, %v3795
      %3797 = vmatmul.bf16.gmra.mxu0 %v3640
      %v3798 = vpop.f32.mrf.mxu0
      %v3799 = vadd.f32 %v3743, %v3798
      %v3800 = vpop.f32.mrf.mxu0
      %v3801 = vadd.f32 %v3745, %v3800
      %3802 = vmatmul.bf16.gmra.mxu0 %v3644
      %v3803 = vpop.f32.mrf.mxu0
      %v3804 = vadd.f32 %v3748, %v3803
      %v3805 = vpop.f32.mrf.mxu0
      %v3806 = vadd.f32 %v3750, %v3805
      %3807 = vmatmul.bf16.gmra.mxu0 %v3648
      %v3808 = vpop.f32.mrf.mxu0
      %v3809 = vadd.f32 %v3753, %v3808
      %v3810 = vpop.f32.mrf.mxu0
      %3811 = vdwg.mxu0
      %3812 = vmatpush.msra.mxu0 %v3436
      %3813 = vmatpush.msra.mxu0 %v3435
      %3814 = vmatpush.msra.mxu0 %v3434
      %3815 = vmatpush.msra.mxu0 %v3433
      %3816 = vmatpush.msra.mxu0 %v3432
      %3817 = vmatpush.msra.mxu0 %v3431
      %3818 = vmatpush.msra.mxu0 %v3430
      %3819 = vmatpush.msra.mxu0 %v3429
      %3820 = vmatpush.msra.mxu0 %v3428
      %3821 = vmatpush.msra.mxu0 %v3427
      %3822 = vmatpush.msra.mxu0 %v3426
      %3823 = vmatpush.msra.mxu0 %v3425
      %3824 = vmatpush.msra.mxu0 %v3424
      %3825 = vmatpush.msra.mxu0 %v3423
      %3826 = vmatpush.msra.mxu0 %v3422
      %3827 = vmatpush.msra.mxu0 %v3421
      %3828 = vmatmul.bf16.gmra.mxu0 %v3621
      %v3829 = vpop.f32.mrf.mxu0
      %v3830 = vadd.f32 %v3774, %v3829
      %v3831 = vpop.f32.mrf.mxu0
      %v3832 = vadd.f32 %v3776, %v3831
      %3833 = vmatmul.bf16.gmra.mxu0 %v3625
      %v3834 = vpop.f32.mrf.mxu0
      %v3835 = vadd.f32 %v3779, %v3834
      %v3836 = vpop.f32.mrf.mxu0
      %v3837 = vadd.f32 %v3781, %v3836
      %3838 = vmatmul.bf16.gmra.mxu0 %v3629
      %v3839 = vpop.f32.mrf.mxu0
      %v3840 = vadd.f32 %v3784, %v3839
      %v3841 = vpop.f32.mrf.mxu0
      %v3842 = vadd.f32 %v3786, %v3841
      %3843 = vmatmul.bf16.gmra.mxu0 %v3633
      %v3844 = vpop.f32.mrf.mxu0
      %v3845 = vadd.f32 %v3789, %v3844
      %v3846 = vpop.f32.mrf.mxu0
      %v3847 = vadd.f32 %v3791, %v3846
      %3848 = vmatmul.bf16.gmra.mxu0 %v3637
      %v3849 = vpop.f32.mrf.mxu0
      %v3850 = vadd.f32 %v3794, %v3849
      %v3851 = vpop.f32.mrf.mxu0
      %v3852 = vadd.f32 %v3796, %v3851
      %3853 = vmatmul.bf16.gmra.mxu0 %v3641
      %v3854 = vpop.f32.mrf.mxu0
      %v3855 = vadd.f32 %v3799, %v3854
      %v3856 = vpop.f32.mrf.mxu0
      %v3857 = vadd.f32 %v3801, %v3856
      %3858 = vmatmul.bf16.gmra.mxu0 %v3645
      %v3859 = vpop.f32.mrf.mxu0
      %v3860 = vadd.f32 %v3804, %v3859
      %v3861 = vpop.f32.mrf.mxu0
      %v3862 = vadd.f32 %v3806, %v3861
      %3863 = vmatmul.bf16.gmra.mxu0 %v3649
      %v3864 = vpop.f32.mrf.mxu0
      %v3865 = vadd.f32 %v3809, %v3864
      %v3866 = vpop.f32.mrf.mxu0
      %3867 = vdwg.mxu0
      %3868 = vmatpush.msra.mxu0 0.0
      %3869 = vmatpush.msra.mxu0 0.0
      %3870 = vmatpush.msra.mxu0 0.0
      %3871 = vmatpush.msra.mxu0 0.0
      %3872 = vmatpush.msra.mxu0 0.0
      %3873 = vmatpush.msra.mxu0 0.0
      %3874 = vmatpush.msra.mxu0 0.0
      %3875 = vmatpush.msra.mxu0 0.0
      %3876 = vmatpush.msra.mxu0 0.0
      %3877 = vmatpush.msra.mxu0 0.0
      %3878 = vmatpush.msra.mxu0 0.0
      %3879 = vmatpush.msra.mxu0 0.0
      %3880 = vmatpush.msra.mxu0 0.0
      %3881 = vmatpush.msra.mxu0 0.0
      %3882 = vmatpush.msra.mxu0 %v3438
      %3883 = vmatpush.msra.mxu0 %v3437
      %3884 = vmatmul.bf16.gmra.mxu0 %v3677
      %v3885 = vpop.f32.mrf.mxu0
      %v3886 = vadd.f32 %v3830, %v3885
      %v3887 = vpop.f32.mrf.mxu0
      %v3888 = vadd.f32 %v3832, %v3887
      %3889 = vmatmul.bf16.gmra.mxu0 %v3680
      %v3890 = vpop.f32.mrf.mxu0
      %v3891 = vadd.f32 %v3835, %v3890
      %v3892 = vpop.f32.mrf.mxu0
      %v3893 = vadd.f32 %v3837, %v3892
      %3894 = vmatmul.bf16.gmra.mxu0 %v3683
      %v3895 = vpop.f32.mrf.mxu0
      %v3896 = vadd.f32 %v3840, %v3895
      %v3897 = vpop.f32.mrf.mxu0
      %v3898 = vadd.f32 %v3842, %v3897
      %3899 = vmatmul.bf16.gmra.mxu0 %v3686
      %v3900 = vpop.f32.mrf.mxu0
      %v3901 = vadd.f32 %v3845, %v3900
      %v3902 = vpop.f32.mrf.mxu0
      %v3903 = vadd.f32 %v3847, %v3902
      %3904 = vmatmul.bf16.gmra.mxu0 %v3689
      %v3905 = vpop.f32.mrf.mxu0
      %v3906 = vadd.f32 %v3850, %v3905
      %v3907 = vpop.f32.mrf.mxu0
      %v3908 = vadd.f32 %v3852, %v3907
      %3909 = vmatmul.bf16.gmra.mxu0 %v3692
      %v3910 = vpop.f32.mrf.mxu0
      %v3911 = vadd.f32 %v3855, %v3910
      %v3912 = vpop.f32.mrf.mxu0
      %v3913 = vadd.f32 %v3857, %v3912
      %3914 = vmatmul.bf16.gmra.mxu0 %v3695
      %v3915 = vpop.f32.mrf.mxu0
      %v3916 = vadd.f32 %v3860, %v3915
      %v3917 = vpop.f32.mrf.mxu0
      %v3918 = vadd.f32 %v3862, %v3917
      %3919 = vmatmul.bf16.gmra.mxu0 %v3698
      %v3920 = vpop.f32.mrf.mxu0
      %v3921 = vadd.f32 %v3865, %v3920
      %v3922 = vpop.f32.mrf.mxu0
      %3923 = vdwg.mxu0
      %v3924 = vmax.f32 %v3886, 0.0
      %v3925 = vmax.f32 %v3888, 0.0
      %v3926 = vmax.f32 %v3891, 0.0
      %v3927 = vmax.f32 %v3893, 0.0
      %v3928 = vmax.f32 %v3896, 0.0
      %v3929 = vmax.f32 %v3898, 0.0
      %v3930 = vmax.f32 %v3901, 0.0
      %v3931 = vmax.f32 %v3903, 0.0
      %v3932 = vmax.f32 %v3906, 0.0
      %v3933 = vmax.f32 %v3908, 0.0
      %v3934 = vmax.f32 %v3911, 0.0
      %v3935 = vmax.f32 %v3913, 0.0
      %v3936 = vmax.f32 %v3916, 0.0
      %v3937 = vmax.f32 %v3918, 0.0
      %v3938 = vmax.f32 %v3921, 0.0
      %v3939 = vld [vmem:[%s15] sm:$0xf]
      %v3940 = vld [vmem:[%s15 + $0x4] sm:$0xf]
      %v3941 = vld [vmem:[%s15 + $0x8] sm:$0xf]
      %v3942 = vld [vmem:[%s15 + $0xc] sm:$0xf]
      %v3943 = vld [vmem:[%s15 + $0x10] sm:$0xf]
      %v3944 = vld [vmem:[%s15 + $0x14] sm:$0xf]
      %v3945 = vld [vmem:[%s15 + $0x18] sm:$0xf]
      %v3946 = vld [vmem:[%s15 + $0x1c] sm:$0xf]
      %v3947 = vld [vmem:[%s15 + $0x20] sm:$0xf]
      %v3948 = vld [vmem:[%s15 + $0x24] sm:$0xf]
      %v3949 = vld [vmem:[%s15 + $0x28] sm:$0x3]
      %v3950 = vld [vmem:[%s16] sm:$0xff]
      %v3951 = vld [vmem:[%s16 + $0x8] sm:$0xff]
      %v3952 = vld [vmem:[%s16 + $0x10] sm:$0xff]
      %v3953 = vld [vmem:[%s16 + $0x18] sm:$0xff]
      %v3954 = vld [vmem:[%s16 + $0x20] sm:$0xff]
      %v3955 = vld [vmem:[%s16 + $0x28] sm:$0xff]
      %v3956 = vld [vmem:[%s16 + $0x30] sm:$0xff]
      %v3957 = vld [vmem:[%s16 + $0x38] sm:$0xff]
      %v3958 = vld [vmem:[%s16 + $0x40] sm:$0xff]
      %v3959 = vld [vmem:[%s16 + $0x48] sm:$0xff]
      %v3960 = vld [vmem:[%s16 + $0x50] sm:$0xf]
      %3962 = vset.pattern.permute.xlu0 0
      %3963 = vperm.xlu0 %3962, %v3950
      %v3964 = vpop.permute.xlu0 %3963
      %3967 = vset.pattern.permute.xlu0 0
      %3968 = vperm.xlu0 %3967, %v3951
      %v3969 = vpop.permute.xlu0 %3968
      %3972 = vset.pattern.permute.xlu0 0
      %3973 = vperm.xlu0 %3972, %v3952
      %v3974 = vpop.permute.xlu0 %3973
      %3977 = vset.pattern.permute.xlu0 0
      %3978 = vperm.xlu0 %3977, %v3953
      %v3979 = vpop.permute.xlu0 %3978
      %3982 = vset.pattern.permute.xlu0 0
      %3983 = vperm.xlu0 %3982, %v3954
      %v3984 = vpop.permute.xlu0 %3983
      %3987 = vset.pattern.permute.xlu0 0
      %3988 = vperm.xlu0 %3987, %v3955
      %v3989 = vpop.permute.xlu0 %3988
      %3992 = vset.pattern.permute.xlu0 0
      %3993 = vperm.xlu0 %3992, %v3956
      %v3994 = vpop.permute.xlu0 %3993
      %3997 = vset.pattern.permute.xlu0 0
      %3998 = vperm.xlu0 %3997, %v3957
      %v3999 = vpop.permute.xlu0 %3998
      %4002 = vset.pattern.permute.xlu0 0
      %4003 = vperm.xlu0 %4002, %v3958
      %v4004 = vpop.permute.xlu0 %4003
      %4007 = vset.pattern.permute.xlu0 0
      %4008 = vperm.xlu0 %4007, %v3959
      %v4009 = vpop.permute.xlu0 %4008
      %4012 = vset.pattern.permute.xlu0 0
      %4013 = vperm.xlu0 %4012, %v3960
      %v4014 = vpop.permute.xlu0 %4013
      %v4027 = vunpack.c.l.b16 %v3939
      %v4028 = vunpack.c.l.b16 %v3940
      %v4029 = vunpack.c.l.b16 %v3941
      %v4030 = vunpack.c.l.b16 %v3942
      %v4031 = vunpack.c.l.b16 %v3943
      %v4032 = vunpack.c.l.b16 %v3944
      %v4033 = vunpack.c.l.b16 %v3945
      %v4034 = vunpack.c.l.b16 %v3946
      %v4035 = vunpack.c.l.b16 %v3947
      %v4036 = vunpack.c.l.b16 %v3948
      %v4037 = vunpack.c.l.b16 %v3949
      %v4038 = vpack.c.b16 %v4028, %v4027
      %v4039 = vpack.c.b16 %v4030, %v4029
      %v4040 = vpack.c.b16 %v4032, %v4031
      %v4041 = vpack.c.b16 %v4034, %v4033
      %v4042 = vpack.c.b16 %v4036, %v4035
      %v4043 = vpack.c.b16 %v4037, %v4037
      %v4045 = vsel %vm645, %v4038, 0
      %v4048 = vsel %vm645, %v4039, 0
      %v4051 = vsel %vm645, %v4040, 0
      %v4054 = vsel %vm645, %v4041, 0
      %v4057 = vsel %vm645, %v4042, 0
      %v4060 = vsel %vm645, %v4043, 0
      %4062 = vmatpush.msra.mxu0 0.0
      %4063 = vmatpush.msra.mxu0 %v3938
      %4064 = vmatpush.msra.mxu0 %v3937
      %4065 = vmatpush.msra.mxu0 %v3936
      %4066 = vmatpush.msra.mxu0 %v3935
      %4067 = vmatpush.msra.mxu0 %v3934
      %4068 = vmatpush.msra.mxu0 %v3933
      %4069 = vmatpush.msra.mxu0 %v3932
      %4070 = vmatpush.msra.mxu0 %v3931
      %4071 = vmatpush.msra.mxu0 %v3930
      %4072 = vmatpush.msra.mxu0 %v3929
      %4073 = vmatpush.msra.mxu0 %v3928
      %4074 = vmatpush.msra.mxu0 %v3927
      %4075 = vmatpush.msra.mxu0 %v3926
      %4076 = vmatpush.msra.mxu0 %v3925
      %4077 = vmatpush.msra.mxu0 %v3924
      %4078 = vmatmul.bf16.gmra.mxu0 %v4045
      %v4079 = vpop.f32.mrf.mxu0
      %v4080 = vadd.f32 %v3964, %v4079
      %v4081 = vpop.f32.mrf.mxu0
      %v4082 = vadd.f32 %v3969, %v4081
      %4083 = vmatmul.bf16.gmra.mxu0 %v4048
      %v4084 = vpop.f32.mrf.mxu0
      %v4085 = vadd.f32 %v3974, %v4084
      %v4086 = vpop.f32.mrf.mxu0
      %v4087 = vadd.f32 %v3979, %v4086
      %4088 = vmatmul.bf16.gmra.mxu0 %v4051
      %v4089 = vpop.f32.mrf.mxu0
      %v4090 = vadd.f32 %v3984, %v4089
      %v4091 = vpop.f32.mrf.mxu0
      %v4092 = vadd.f32 %v3989, %v4091
      %4093 = vmatmul.bf16.gmra.mxu0 %v4054
      %v4094 = vpop.f32.mrf.mxu0
      %v4095 = vadd.f32 %v3994, %v4094
      %v4096 = vpop.f32.mrf.mxu0
      %v4097 = vadd.f32 %v3999, %v4096
      %4098 = vmatmul.bf16.gmra.mxu0 %v4057
      %v4099 = vpop.f32.mrf.mxu0
      %v4100 = vadd.f32 %v4004, %v4099
      %v4101 = vpop.f32.mrf.mxu0
      %v4102 = vadd.f32 %v4009, %v4101
      %4103 = vmatmul.bf16.gmra.mxu0 %v4060
      %v4104 = vpop.f32.mrf.mxu0
      %v4105 = vadd.f32 %v4014, %v4104
      %v4106 = vpop.f32.mrf.mxu0
      %4107 = vdwg.mxu0
      %v4108 = vmax.f32 %v4080, 0.0
      %v4109 = vmax.f32 %v4082, 0.0
      %v4110 = vmax.f32 %v4085, 0.0
      %v4111 = vmax.f32 %v4087, 0.0
      %v4112 = vmax.f32 %v4090, 0.0
      %v4113 = vmax.f32 %v4092, 0.0
      %v4114 = vmax.f32 %v4095, 0.0
      %v4115 = vmax.f32 %v4097, 0.0
      %v4116 = vmax.f32 %v4100, 0.0
      %v4117 = vmax.f32 %v4102, 0.0
      %v4118 = vmax.f32 %v4105, 0.0
      %v4119 = vld [vmem:[%s17] sm:$0xf]
      %v4120 = vld [vmem:[%s17 + $0x4] sm:$0x1]
      %v4121 = vld [vmem:[%s18] sm:$0xff]
      %v4122 = vld [vmem:[%s18 + $0x8] sm:$0x3]
      %4124 = vset.pattern.permute.xlu0 0
      %4125 = vperm.xlu0 %4124, %v4121
      %v4126 = vpop.permute.xlu0 %4125
      %4129 = vset.pattern.permute.xlu0 0
      %4130 = vperm.xlu0 %4129, %v4122
      %v4131 = vpop.permute.xlu0 %4130
      %v4135 = vunpack.c.l.b16 %v4119
      %v4136 = vunpack.c.l.b16 %v4120
      %v4137 = vpack.c.b16 %v4136, %v4135
      %vm4138 = vcmask 687104
      %v4140 = vsel %vm4138, %v4137, 0
      %vm4142 = vcmask 1043456
      %v4144 = vsel %vm4142, %v4118, 0
      %4146 = vmatpush.msra.mxu0 0.0
      %4147 = vmatpush.msra.mxu0 0.0
      %4148 = vmatpush.msra.mxu0 0.0
      %4149 = vmatpush.msra.mxu0 0.0
      %4150 = vmatpush.msra.mxu0 0.0
      %4151 = vmatpush.msra.mxu0 %v4144
      %4152 = vmatpush.msra.mxu0 %v4117
      %4153 = vmatpush.msra.mxu0 %v4116
      %4154 = vmatpush.msra.mxu0 %v4115
      %4155 = vmatpush.msra.mxu0 %v4114
      %4156 = vmatpush.msra.mxu0 %v4113
      %4157 = vmatpush.msra.mxu0 %v4112
      %4158 = vmatpush.msra.mxu0 %v4111
      %4159 = vmatpush.msra.mxu0 %v4110
      %4160 = vmatpush.msra.mxu0 %v4109
      %4161 = vmatpush.msra.mxu0 %v4108
      %4162 = vmatmul.bf16.gmra.mxu0 %v4140
      %v4163 = vpop.f32.mrf.mxu0
      %v4164 = vadd.f32 %v4126, %v4163
      %v4165 = vpop.f32.mrf.mxu0
      %v4166 = vadd.f32 %v4131, %v4165
      %4167 = vdwg.mxu0
      %4168 = vst.msk [vmem:[%s602] sm:$0xff] %vm3178, %v4164
      %vm4169 = vcmask 58368
      %4170 = vst.msk [vmem:[%s602 + $0x8] sm:$0x3] %vm4169, %v4166
      %p4171 = scmp.lt.s32.totalorder %s30, 1
      %s4172 = scalar_select %p4171, %s30, 1
      %s4173 = smul.addr %s4172, 2
      %s4174 = smul.addr %s4173, 8
      %s4175 = scalar_lea.vmem %s19, %s4174
      // Predicated region
      $region97: #{net_forward.1} parent=95 // pred_check
        %p4176 = pneg %p452
      $region98: #{net_forward.1} parent=95 // pred_check_branch
        %4178 = sbr.rel (%p4176) target = $region100
      $region99: #{net_forward.1} parent=95 // pred_region
        _
      $region100: #{net_forward.1} parent=95 // pred_fallthru
        _
    $region96: #{net_forward.1} parent=5 // pred_fallthru
      _
    %p4179 = scmp.le.s32.totalorder 2, %s25
    // Predicated region
    $region101: #{net_forward.1} parent=5 // pred_check
      %p4180 = pneg %p4179
    $region102: #{net_forward.1} parent=5 // pred_check_branch
      %4182 = sbr.rel (%p4180) target = $region104
    $region103: #{net_forward.1} parent=5 // pred_region
      %s4183 = ssub.s32 %s25, 2
      // Predicated region
      $region105: #{net_forward.1} parent=103 // pred_check
        %p4184 = pneg %p458
      $region106: #{net_forward.1} parent=103 // pred_check_branch
        %4186 = sbr.rel (%p4184) target = $region108
      $region107: #{net_forward.1} parent=103 // pred_region
        %p4187 = scmp.lt.s32.totalorder %s31, 1
        %s4188 = scalar_select %p4187, %s31, 1
        %s4189 = smul.addr %s4188, 2
        %s4190 = smul.addr %s4189, 8
        %s4191 = scalar_lea.vmem %s19, %s4190
      $region108: #{net_forward.1} parent=103 // pred_fallthru
        _
    $region104: #{net_forward.1} parent=5 // pred_fallthru
      _
  $region6: #{net_forward.1} parent=0 // loop_footer
    %s29 = sadd.s32 1, %s25
  $region7: #{net_forward.1} parent=0 // loop_footer_branch
    %24 = sbr.rel target = $region3
  $region8: #{net_forward.1} parent=0 // loop_exit
    _

</llo_original>
